<compile_context>
chip_gen: v7x
topology: tpu7x:2x2x1
jax: 0.10.0
libtpu: 0.0.40
codegen_flags: <defaults>
</compile_context>

<pallas_src>
import functools

import jax
import jax.numpy as jnp
from jax import lax
from jax.experimental import pallas as pl
from jax.experimental.pallas import tpu as pltpu

EPS = 1e-5
LANES = 128


# ------------------------------- helpers -------------------------------------

def _round_up(x, m):
    return ((x + m - 1) // m) * m


def _pick_tile(total, cap):
    """Largest divisor of `total` that is <= cap (always succeeds; worst case 1)."""
    cap = max(1, min(cap, total))
    for d in range(cap, 0, -1):
        if total % d == 0:
            return d
    return 1


@functools.lru_cache(maxsize=None)
def _vmem_limit():
    """Generation-aware VMEM budget: 3/4 of physical capacity (fallback 48 MiB)."""
    try:
        cap = int(pltpu.get_tpu_info().vmem_capacity_bytes)
    except Exception:
        cap = 64 * 1024 * 1024
    return max(32 * 1024 * 1024, (cap * 3) // 4)


# ----------------------------- Pallas kernels --------------------------------

def _maxpool_kernel(x_ref, o_ref, *, cp):
    # x_ref: (T, 2, Wo, 2*Cp) bf16  ->  o_ref: (T, Wo, Cp) bf16
    t = x_ref[...]
    m = jnp.maximum(t[:, 0], t[:, 1])              # H-pair max (major axis)
    o_ref[...] = jnp.maximum(m[..., :cp], m[..., cp:])   # W-pair max: 128-aligned lane slice


def _conv3x3_kernel(*refs, tile_h, wo, cp, cop, fuse):
    # fuse=False: refs = (x, w, y, stats, col_scr)
    # fuse=True : refs = (x, w, scale, shift, y, stats, act_scr, col_scr)
    # x_ref : (1, Hp, Wp, cp) bf16 halo-padded input (raw y1 when fuse=True)
    # w_ref : (9*cp, cop) bf16 taps stacked along the contraction dim
    # y_ref : (1, tile_h, wo, cop) bf16 pre-BN conv output
    # stats : (1, 1, 1, 2*cop) f32 per-tile [sum | sum_sq]
    if fuse:
        (x_ref, w_ref, scale_ref, shift_ref, y_ref, stats_ref,
         act_scr, col_scr) = refs
    else:
        x_ref, w_ref, y_ref, stats_ref, col_scr = refs

    wp = wo + 2
    r = pl.program_id(1)
    h0 = pl.multiple_of(r * tile_h, tile_h)

    if fuse:
        # BN1 + ReLU1 fused into the input stage; re-zero the halo ring so the
        # zero padding of the *activated* feature map is preserved.
        slab = x_ref[0, pl.ds(h0, tile_h + 2), :, :].astype(jnp.float32)
        act = jnp.maximum(slab * scale_ref[...] + shift_ref[...], 0.0)
        hi = lax.broadcasted_iota(jnp.int32, (tile_h + 2, wp, 1), 0)
        wi = lax.broadcasted_iota(jnp.int32, (tile_h + 2, wp, 1), 1)
        row_lo = jnp.where(r == 0, 1, 0)
        row_hi = jnp.where(r == pl.num_programs(1) - 1, tile_h, tile_h + 1)
        ok = (hi >= row_lo) & (hi <= row_hi) & (wi >= 1) & (wi <= wp - 2)
        act_scr[...] = jnp.where(ok, act, 0.0).astype(act_scr.dtype)

        def tap(dh, dw):
            return act_scr[pl.ds(dh, tile_h), pl.ds(dw, wo), :]
    else:
        def tap(dh, dw):
            return x_ref[0, pl.ds(h0 + dh, tile_h), pl.ds(dw, wo), :]

    # im2col: 9 shifted (tile_h, wo, cp) views -> one (tile_h*wo, 9*cp) slab,
    # then a single K = 9*cp MXU matmul with a single f32 accumulation.
    for dh in range(3):
        for dw in range(3):
            t = dh * 3 + dw
            col_scr[:, t * cp:(t + 1) * cp] = tap(dh, dw).reshape(tile_h * wo, cp)

    acc = jnp.dot(col_scr[...], w_ref[...], preferred_element_type=jnp.float32)
    y_ref[...] = acc.reshape(1, tile_h, wo, cop).astype(y_ref.dtype)

    s = jnp.sum(acc, axis=0, keepdims=True)
    ss = jnp.sum(acc * acc, axis=0, keepdims=True)
    stats_ref[...] = jnp.concatenate([s, ss], axis=-1).reshape(1, 1, 1, 2 * cop)


def _bn_relu_kernel(y_ref, scale_ref, shift_ref, o_ref):
    # final per-channel affine (scale = gamma*rsqrt(var+eps), shift = beta - mean*scale) + ReLU
    y = y_ref[...].astype(jnp.float32)
    o_ref[...] = jnp.maximum(y * scale_ref[...] + shift_ref[...], 0.0)


# ------------------------------ pallas_call glue ------------------------------

def _maxpool2x2(x, N, Ho, Wo):
    # x: (N, H, W, Cp) bf16 channels-last, Cp multiple of 128.
    Cp = x.shape[-1]
    x = x[:, :2 * Ho, :2 * Wo, :]                       # floor mode (matches PyTorch)
    R = N * Ho
    x4 = x.reshape(R, 2, Wo, 2 * Cp)                    # free contiguous reshape
    tile_r = max(1, min(R, (4 << 20) // max(1, 8 * Wo * Cp)))   # ~4 MiB input block
    out = pl.pallas_call(
        functools.partial(_maxpool_kernel, cp=Cp),
        out_shape=jax.ShapeDtypeStruct((R, Wo, Cp), x.dtype),
        grid=(pl.cdiv(R, tile_r),),
        in_specs=[pl.BlockSpec((tile_r, 2, Wo, 2 * Cp), lambda i: (i, 0, 0, 0))],
        out_specs=pl.BlockSpec((tile_r, Wo, Cp), lambda i: (i, 0, 0)),
        compiler_params=pltpu.CompilerParams(
            dimension_semantics=("parallel",),
            vmem_limit_bytes=_vmem_limit()),
    )(x4)
    return out.reshape(N, Ho, Wo, Cp)


def _conv3x3(xp, wm, Ho, Wo, scale=None, shift=None):
    # xp: (N, Ho+2, Wo+2, Cp) halo-padded bf16; wm: (9*Cp, Cop) bf16.
    # When scale/shift are given, BN+ReLU of the *previous* layer is applied to
    # the input slab in-kernel (the halo ring is re-zeroed after activation).
    N, Hp, Wp, Cp = xp.shape
    Cop = wm.shape[-1]
    fuse = scale is not None

    # tile_h divides Ho; cap so the bf16 im2col scratch stays around <= 4 MiB.
    cap = max(1, (4 << 20) // max(1, Wo * 9 * Cp * 2))
    tile_h = _pick_tile(Ho, cap)
    n_r = Ho // tile_h

    kernel = functools.partial(_conv3x3_kernel, tile_h=tile_h, wo=Wo,
                               cp=Cp, cop=Cop, fuse=fuse)
    in_specs = [pl.BlockSpec((1, Hp, Wp, Cp), lambda n, r: (n, 0, 0, 0)),
                pl.BlockSpec((9 * Cp, Cop), lambda n, r: (0, 0))]
    args = [xp, wm]
    scratch = []
    if fuse:
        in_specs += [pl.BlockSpec((1, Cp), lambda n, r: (0, 0)),
                     pl.BlockSpec((1, Cp), lambda n, r: (0, 0))]
        args += [scale, shift]
        scratch.append(pltpu.VMEM((tile_h + 2, Wp, Cp), jnp.bfloat16))
    scratch.append(pltpu.VMEM((tile_h * Wo, 9 * Cp), jnp.bfloat16))

    y, stats = pl.pallas_call(
        kernel,
        out_shape=(jax.ShapeDtypeStruct((N, Ho, Wo, Cop), jnp.bfloat16),
                   jax.ShapeDtypeStruct((N, n_r, 1, 2 * Cop), jnp.float32)),
        grid=(N, n_r),
        in_specs=in_specs,
        out_specs=(pl.BlockSpec((1, tile_h, Wo, Cop), lambda n, r: (n, r, 0, 0)),
                   pl.BlockSpec((1, 1, 1, 2 * Cop), lambda n, r: (n, r, 0, 0))),
        scratch_shapes=scratch,
        compiler_params=pltpu.CompilerParams(
            dimension_semantics=("parallel", "parallel"),
            vmem_limit_bytes=_vmem_limit()),
    )(*args)
    return y, stats


def _bn_relu(y, scale, shift):
    # y: (N, Ho, Wo, Cop) bf16 -> (N, Ho, Wo, Cop) f32 normalized+ReLU output.
    N, Ho, Wo, Cop = y.shape
    M = N * Ho * Wo
    y2 = y.reshape(M, Cop)
    cap = max(8, (((4 << 20) // max(1, 6 * Cop)) // 8) * 8)
    tile_m = M if M <= cap else cap
    out = pl.pallas_call(
        _bn_relu_kernel,
        out_shape=jax.ShapeDtypeStruct((M, Cop), jnp.float32),
        grid=(pl.cdiv(M, tile_m),),
        in_specs=[pl.BlockSpec((tile_m, Cop), lambda i: (i, 0)),
                  pl.BlockSpec((1, Cop), lambda i: (0, 0)),
                  pl.BlockSpec((1, Cop), lambda i: (0, 0))],
        out_specs=pl.BlockSpec((tile_m, Cop), lambda i: (i, 0)),
        compiler_params=pltpu.CompilerParams(
            dimension_semantics=("parallel",),
            vmem_limit_bytes=_vmem_limit()),
    )(y2, scale, shift)
    return out.reshape(N, Ho, Wo, Cop)


def _prep_weight(w_oihw, cin_p, cout_p):
    # PyTorch OIHW -> (9*Cin_pad, Cout_pad) bf16: tap t occupies rows [t*Cp, (t+1)*Cp).
    co, ci, kh, kw = w_oihw.shape
    w = jnp.transpose(w_oihw, (2, 3, 1, 0)).reshape(kh * kw, ci, co)
    w = jnp.pad(w, ((0, 0), (0, cin_p - ci), (0, cout_p - co)))
    return w.reshape(kh * kw * cin_p, cout_p).astype(jnp.bfloat16)


def _bn_affine(stats, gamma, beta, c_pad, count):
    # stats: (N, n_r, 1, 2*Cp) per-tile [sum | sumsq] -> per-channel scale/shift (f32).
    # Note: E[x^2]-E[x]^2 in f32; fine at these scales (see review caveat).
    tot = jnp.sum(stats, axis=(0, 1, 2))                 # (2*Cp,)
    mean = tot[:c_pad] / count
    var = jnp.maximum(tot[c_pad:] / count - mean * mean, 0.0)   # biased batch variance
    inv = lax.rsqrt(var + EPS)
    gp = jnp.pad(gamma.astype(jnp.float32), (0, c_pad - gamma.shape[0]))
    bp = jnp.pad(beta.astype(jnp.float32), (0, c_pad - beta.shape[0]))
    scale = gp * inv
    shift = bp - mean * scale
    return scale.reshape(1, c_pad), shift.reshape(1, c_pad)


def down_forward(x_nchw, params):
    """Down.forward: MaxPool2d(2) -> (conv3x3 -> BN -> ReLU) x 2.  NCHW in/out."""
    w1, g1, b1, w2, g2, b2 = params
    N, Cin, H, W = x_nchw.shape
    Cmid, Cout = w1.shape[0], w2.shape[0]
    Ho, Wo = H // 2, W // 2

    # Channels zero-padded to 128 lanes (wasteful when C << 128; see header TODO).
    cin_p, cmid_p, cout_p = (_round_up(c, LANES) for c in (Cin, Cmid, Cout))

    # NCHW -> NHWC, lane-dense channel pad, bf16 (max pooling commutes with rounding).
    x = jnp.transpose(x_nchw, (0, 2, 3, 1)).astype(jnp.bfloat16)
    x = jnp.pad(x, ((0, 0), (0, 0), (0, 0), (0, cin_p - Cin)))

    pooled = _maxpool2x2(x, N, Ho, Wo)                   # (N, Ho, Wo, cin_p) bf16

    w1m = _prep_weight(w1, cin_p, cmid_p)                # (9*cin_p, cmid_p) bf16
    w2m = _prep_weight(w2, cmid_p, cout_p)               # (9*cmid_p, cout_p) bf16
    count = N * Ho * Wo

    # conv1 (no input activation): zero-padded pooled input.
    a0 = jnp.pad(pooled, ((0, 0), (1, 1), (1, 1), (0, 0)))
    y1, s1 = _conv3x3(a0, w1m, Ho, Wo)                   # y1 bf16, stats f32
    sc1, sh1 = _bn_affine(s1, g1, b1, cmid_p, count)

    # conv2 with BN1+ReLU1 fused into its input stage (reads raw padded y1).
    y1p = jnp.pad(y1, ((0, 0), (1, 1), (1, 1), (0, 0)))
    y2, s2 = _conv3x3(y1p, w2m, Ho, Wo, scale=sc1, shift=sh1)
    sc2, sh2 = _bn_affine(s2, g2, b2, cout_p, count)
    a2 = _bn_relu(y2, sc2, sh2)                          # (N, Ho, Wo, cout_p) f32

    out = a2[..., :Cout]                                 # drop channel padding
    return jnp.transpose(out, (0, 3, 1, 2))              # NHWC -> NCHW


# ------------------------------ pure-JAX reference ----------------------------

def _ref_bn_relu(y_nchw, gamma, beta):
    mean = jnp.mean(y_nchw, axis=(0, 2, 3), keepdims=True)
    var = jnp.mean((y_nchw - mean) ** 2, axis=(0, 2, 3), keepdims=True)
    yn = (y_nchw - mean) * lax.rsqrt(var + EPS)
    yn = yn * gamma.reshape(1, -1, 1, 1) + beta.reshape(1, -1, 1, 1)
    return jnp.maximum(yn, 0.0)


def down_reference(x_nchw, params):
    w1, g1, b1, w2, g2, b2 = params
    x = lax.reduce_window(x_nchw, -jnp.inf, lax.max,
                          (1, 1, 2, 2), (1, 1, 2, 2), "VALID")
    dn = ("NCHW", "OIHW", "NCHW")
    y = lax.conv_general_dilated(x, w1, (1, 1), ((1, 1), (1, 1)),
                                 dimension_numbers=dn)
    y = _ref_bn_relu(y, g1, b1)
    y = lax.conv_general_dilated(y, w2, (1, 1), ((1, 1), (1, 1)),
                                 dimension_numbers=dn)
    return _ref_bn_relu(y, g2, b2)


# ----------------------------------- main -------------------------------------

if __name__ == "__main__":
    N, Cin, H, W = 2, 4, 16, 16
    Cout = 8  # DoubleConv: mid_channels == out_channels

    key = jax.random.PRNGKey(0)
    kx, k1, k2 = jax.random.split(key, 3)

    x = jax.random.normal(kx, (N, Cin, H, W), jnp.float32)

    # deterministic parameter init (PyTorch shapes: OIHW conv weights, per-channel BN)
    w1 = jax.random.normal(k1, (Cout, Cin, 3, 3), jnp.float32) * 0.1
    w2 = jax.random.normal(k2, (Cout, Cout, 3, 3), jnp.float32) * 0.1
    g1 = 1.0 + 0.1 * jnp.arange(Cout, dtype=jnp.float32)
    b1 = 0.05 * jnp.arange(Cout, dtype=jnp.float32)
    g2 = 1.0 - 0.05 * jnp.arange(Cout, dtype=jnp.float32)
    b2 = -0.02 * jnp.arange(Cout, dtype=jnp.float32)
    params = (w1, g1, b1, w2, g2, b2)

    out = jax.jit(down_forward)(x, params)
    out = jax.block_until_ready(out)

    ref = down_reference(x, params)
    assert out.shape == (N, Cout, H // 2, W // 2), out.shape
    # bf16 MXU inputs (f32 accumulation / BN stats) -> loosened tolerance vs f32 ref.
    max_err = float(jnp.max(jnp.abs(out - ref)))
    assert jnp.allclose(out, ref, rtol=5e-2, atol=5e-2), max_err

    print("KERNEL_OK")
</pallas_src>

<mosaic_0001>
module attributes {stable_mosaic.version = 11 : i64} {
  func.func @_maxpool_kernel(%arg0: i32, %arg1: memref<16x2x8x256xbf16, #tpu.memory_space<vmem>>, %arg2: memref<16x8x128xbf16, #tpu.memory_space<vmem>>) attributes {dimension_semantics = [#tpu.dimension_semantics<parallel>], iteration_bounds = array<i64: 1>, scalar_prefetch = 0 : i64, scratch_operands = 0 : i64, tpu.core_type = #tpu.core_type<tc>, window_params = [{transform_indices = @transform_0, window_bounds = array<i64: 16, 2, 8, 256>}, {transform_indices = @transform_1, window_bounds = array<i64: 16, 8, 128>}]} {
    %c0 = arith.constant 0 : index
    %c0_0 = arith.constant 0 : index
    %c0_1 = arith.constant 0 : index
    %c0_2 = arith.constant 0 : index
    %0 = vector.load %arg1[%c0, %c0_0, %c0_1, %c0_2] : memref<16x2x8x256xbf16, #tpu.memory_space<vmem>>, vector<16x2x8x256xbf16>
    %1 = vector.extract_strided_slice %0 {offsets = [0, 0, 0, 0], sizes = [16, 1, 8, 256], strides = [1, 1, 1, 1]} : vector<16x2x8x256xbf16> to vector<16x1x8x256xbf16>
    %2 = vector.shape_cast %1 : vector<16x1x8x256xbf16> to vector<16x8x256xbf16>
    %3 = vector.extract_strided_slice %0 {offsets = [0, 1, 0, 0], sizes = [16, 1, 8, 256], strides = [1, 1, 1, 1]} : vector<16x2x8x256xbf16> to vector<16x1x8x256xbf16>
    %4 = vector.shape_cast %3 : vector<16x1x8x256xbf16> to vector<16x8x256xbf16>
    %5 = arith.maximumf %2, %4 : vector<16x8x256xbf16>
    %6 = vector.extract_strided_slice %5 {offsets = [0, 0, 0], sizes = [16, 8, 128], strides = [1, 1, 1]} : vector<16x8x256xbf16> to vector<16x8x128xbf16>
    %7 = vector.extract_strided_slice %5 {offsets = [0, 0, 128], sizes = [16, 8, 128], strides = [1, 1, 1]} : vector<16x8x256xbf16> to vector<16x8x128xbf16>
    %8 = arith.maximumf %6, %7 : vector<16x8x128xbf16>
    %c0_3 = arith.constant 0 : index
    %c0_4 = arith.constant 0 : index
    %c0_5 = arith.constant 0 : index
    %9 = vector.load %arg2[%c0_3, %c0_4, %c0_5] : memref<16x8x128xbf16, #tpu.memory_space<vmem>>, vector<16x8x128xbf16>
    tpu.vector_store %arg2[%c0_3, %c0_4, %c0_5], %8 {strides = array<i32>} : memref<16x8x128xbf16, #tpu.memory_space<vmem>>, vector<16x8x128xbf16>,
    return
  }
  func.func @transform_0(%arg0: i32) -> (i32, i32, i32, i32) {
    %c0_i32 = arith.constant 0 : i32
    %c0_i32_0 = arith.constant 0 : i32
    %c0_i32_1 = arith.constant 0 : i32
    %c0_i32_2 = arith.constant 0 : i32
    return %arg0, %c0_i32, %c0_i32_0, %c0_i32_1 : i32, i32, i32, i32
  }
  func.func @transform_1(%arg0: i32) -> (i32, i32, i32) {
    %c0_i32 = arith.constant 0 : i32
    %c0_i32_0 = arith.constant 0 : i32
    %c0_i32_1 = arith.constant 0 : i32
    return %arg0, %c0_i32, %c0_i32_0 : i32, i32, i32
  }
}

module attributes {stable_mosaic.version = 11 : i64} {
  func.func @_conv3x3_kernel(%arg0: i32, %arg1: i32, %arg2: memref<1x10x10x128xbf16, #tpu.memory_space<vmem>>, %arg3: memref<1152x128xbf16, #tpu.memory_space<vmem>>, %arg4: memref<1x8x8x128xbf16, #tpu.memory_space<vmem>>, %arg5: memref<1x1x1x256xf32, #tpu.memory_space<vmem>>, %arg6: memref<64x1152xbf16, #tpu.memory_space<vmem>>) attributes {dimension_semantics = [#tpu.dimension_semantics<parallel>, #tpu.dimension_semantics<parallel>], iteration_bounds = array<i64: 2, 1>, scalar_prefetch = 0 : i64, scratch_operands = 1 : i64, tpu.core_type = #tpu.core_type<tc>, window_params = [{transform_indices = @transform_0, window_bounds = array<i64: 1, 10, 10, 128>}, {pipeline_mode = #tpu.pipeline_mode<synchronous>, transform_indices = @transform_1, window_bounds = array<i64: 1152, 128>}, {transform_indices = @transform_2, window_bounds = array<i64: 1, 8, 8, 128>}, {transform_indices = @transform_3, window_bounds = array<i64: 1, 1, 1, 256>}]} {
    %c8_i32 = arith.constant 8 : i32
    %0 = arith.muli %arg1, %c8_i32 : i32
    %1 = tpu.assume_multiple %0, 8 : i32
    %c0_i32 = arith.constant 0 : i32
    %2 = arith.addi %1, %c0_i32 : i32
    %c0 = arith.constant 0 : index
    %3 = arith.index_cast %2 : i32 to index
    %c0_0 = arith.constant 0 : index
    %c0_1 = arith.constant 0 : index
    %4 = vector.load %arg2[%c0, %3, %c0_0, %c0_1] : memref<1x10x10x128xbf16, #tpu.memory_space<vmem>>, vector<1x8x8x128xbf16>
    %5 = vector.shape_cast %4 : vector<1x8x8x128xbf16> to vector<8x8x128xbf16>
    %6 = vector.shape_cast %5 : vector<8x8x128xbf16> to vector<64x128xbf16>
    %c0_2 = arith.constant 0 : index
    %c0_3 = arith.constant 0 : index
    %7 = vector.load %arg6[%c0_2, %c0_3] : memref<64x1152xbf16, #tpu.memory_space<vmem>>, vector<64x128xbf16>
    tpu.vector_store %arg6[%c0_2, %c0_3], %6 {strides = array<i32>} : memref<64x1152xbf16, #tpu.memory_space<vmem>>, vector<64x128xbf16>,
    %c0_i32_4 = arith.constant 0 : i32
    %8 = arith.addi %1, %c0_i32_4 : i32
    %c0_5 = arith.constant 0 : index
    %9 = arith.index_cast %8 : i32 to index
    %c1 = arith.constant 1 : index
    %c0_6 = arith.constant 0 : index
    %10 = vector.load %arg2[%c0_5, %9, %c1, %c0_6] : memref<1x10x10x128xbf16, #tpu.memory_space<vmem>>, vector<1x8x8x128xbf16>
    %11 = vector.shape_cast %10 : vector<1x8x8x128xbf16> to vector<8x8x128xbf16>
    %12 = vector.shape_cast %11 : vector<8x8x128xbf16> to vector<64x128xbf16>
    %c0_7 = arith.constant 0 : index
    %c128 = arith.constant 128 : index
    %13 = vector.load %arg6[%c0_7, %c128] : memref<64x1152xbf16, #tpu.memory_space<vmem>>, vector<64x128xbf16>
    tpu.vector_store %arg6[%c0_7, %c128], %12 {strides = array<i32>} : memref<64x1152xbf16, #tpu.memory_space<vmem>>, vector<64x128xbf16>,
    %c0_i32_8 = arith.constant 0 : i32
    %14 = arith.addi %1, %c0_i32_8 : i32
    %c0_9 = arith.constant 0 : index
    %15 = arith.index_cast %14 : i32 to index
    %c2 = arith.constant 2 : index
    %c0_10 = arith.constant 0 : index
    %16 = vector.load %arg2[%c0_9, %15, %c2, %c0_10] : memref<1x10x10x128xbf16, #tpu.memory_space<vmem>>, vector<1x8x8x128xbf16>
    %17 = vector.shape_cast %16 : vector<1x8x8x128xbf16> to vector<8x8x128xbf16>
    %18 = vector.shape_cast %17 : vector<8x8x128xbf16> to vector<64x128xbf16>
    %c0_11 = arith.constant 0 : index
    %c256 = arith.constant 256 : index
    %19 = vector.load %arg6[%c0_11, %c256] : memref<64x1152xbf16, #tpu.memory_space<vmem>>, vector<64x128xbf16>
    tpu.vector_store %arg6[%c0_11, %c256], %18 {strides = array<i32>} : memref<64x1152xbf16, #tpu.memory_space<vmem>>, vector<64x128xbf16>,
    %c1_i32 = arith.constant 1 : i32
    %20 = arith.addi %1, %c1_i32 : i32
    %c0_12 = arith.constant 0 : index
    %21 = arith.index_cast %20 : i32 to index
    %c0_13 = arith.constant 0 : index
    %c0_14 = arith.constant 0 : index
    %22 = vector.load %arg2[%c0_12, %21, %c0_13, %c0_14] : memref<1x10x10x128xbf16, #tpu.memory_space<vmem>>, vector<1x8x8x128xbf16>
    %23 = vector.shape_cast %22 : vector<1x8x8x128xbf16> to vector<8x8x128xbf16>
    %24 = vector.shape_cast %23 : vector<8x8x128xbf16> to vector<64x128xbf16>
    %c0_15 = arith.constant 0 : index
    %c384 = arith.constant 384 : index
    %25 = vector.load %arg6[%c0_15, %c384] : memref<64x1152xbf16, #tpu.memory_space<vmem>>, vector<64x128xbf16>
    tpu.vector_store %arg6[%c0_15, %c384], %24 {strides = array<i32>} : memref<64x1152xbf16, #tpu.memory_space<vmem>>, vector<64x128xbf16>,
    %c1_i32_16 = arith.constant 1 : i32
    %26 = arith.addi %1, %c1_i32_16 : i32
    %c0_17 = arith.constant 0 : index
    %27 = arith.index_cast %26 : i32 to index
    %c1_18 = arith.constant 1 : index
    %c0_19 = arith.constant 0 : index
    %28 = vector.load %arg2[%c0_17, %27, %c1_18, %c0_19] : memref<1x10x10x128xbf16, #tpu.memory_space<vmem>>, vector<1x8x8x128xbf16>
    %29 = vector.shape_cast %28 : vector<1x8x8x128xbf16> to vector<8x8x128xbf16>
    %30 = vector.shape_cast %29 : vector<8x8x128xbf16> to vector<64x128xbf16>
    %c0_20 = arith.constant 0 : index
    %c512 = arith.constant 512 : index
    %31 = vector.load %arg6[%c0_20, %c512] : memref<64x1152xbf16, #tpu.memory_space<vmem>>, vector<64x128xbf16>
    tpu.vector_store %arg6[%c0_20, %c512], %30 {strides = array<i32>} : memref<64x1152xbf16, #tpu.memory_space<vmem>>, vector<64x128xbf16>,
    %c1_i32_21 = arith.constant 1 : i32
    %32 = arith.addi %1, %c1_i32_21 : i32
    %c0_22 = arith.constant 0 : index
    %33 = arith.index_cast %32 : i32 to index
    %c2_23 = arith.constant 2 : index
    %c0_24 = arith.constant 0 : index
    %34 = vector.load %arg2[%c0_22, %33, %c2_23, %c0_24] : memref<1x10x10x128xbf16, #tpu.memory_space<vmem>>, vector<1x8x8x128xbf16>
    %35 = vector.shape_cast %34 : vector<1x8x8x128xbf16> to vector<8x8x128xbf16>
    %36 = vector.shape_cast %35 : vector<8x8x128xbf16> to vector<64x128xbf16>
    %c0_25 = arith.constant 0 : index
    %c640 = arith.constant 640 : index
    %37 = vector.load %arg6[%c0_25, %c640] : memref<64x1152xbf16, #tpu.memory_space<vmem>>, vector<64x128xbf16>
    tpu.vector_store %arg6[%c0_25, %c640], %36 {strides = array<i32>} : memref<64x1152xbf16, #tpu.memory_space<vmem>>, vector<64x128xbf16>,
    %c2_i32 = arith.constant 2 : i32
    %38 = arith.addi %1, %c2_i32 : i32
    %c0_26 = arith.constant 0 : index
    %39 = arith.index_cast %38 : i32 to index
    %c0_27 = arith.constant 0 : index
    %c0_28 = arith.constant 0 : index
    %40 = vector.load %arg2[%c0_26, %39, %c0_27, %c0_28] : memref<1x10x10x128xbf16, #tpu.memory_space<vmem>>, vector<1x8x8x128xbf16>
    %41 = vector.shape_cast %40 : vector<1x8x8x128xbf16> to vector<8x8x128xbf16>
    %42 = vector.shape_cast %41 : vector<8x8x128xbf16> to vector<64x128xbf16>
    %c0_29 = arith.constant 0 : index
    %c768 = arith.constant 768 : index
    %43 = vector.load %arg6[%c0_29, %c768] : memref<64x1152xbf16, #tpu.memory_space<vmem>>, vector<64x128xbf16>
    tpu.vector_store %arg6[%c0_29, %c768], %42 {strides = array<i32>} : memref<64x1152xbf16, #tpu.memory_space<vmem>>, vector<64x128xbf16>,
    %c2_i32_30 = arith.constant 2 : i32
    %44 = arith.addi %1, %c2_i32_30 : i32
    %c0_31 = arith.constant 0 : index
    %45 = arith.index_cast %44 : i32 to index
    %c1_32 = arith.constant 1 : index
    %c0_33 = arith.constant 0 : index
    %46 = vector.load %arg2[%c0_31, %45, %c1_32, %c0_33] : memref<1x10x10x128xbf16, #tpu.memory_space<vmem>>, vector<1x8x8x128xbf16>
    %47 = vector.shape_cast %46 : vector<1x8x8x128xbf16> to vector<8x8x128xbf16>
    %48 = vector.shape_cast %47 : vector<8x8x128xbf16> to vector<64x128xbf16>
    %c0_34 = arith.constant 0 : index
    %c896 = arith.constant 896 : index
    %49 = vector.load %arg6[%c0_34, %c896] : memref<64x1152xbf16, #tpu.memory_space<vmem>>, vector<64x128xbf16>
    tpu.vector_store %arg6[%c0_34, %c896], %48 {strides = array<i32>} : memref<64x1152xbf16, #tpu.memory_space<vmem>>, vector<64x128xbf16>,
    %c2_i32_35 = arith.constant 2 : i32
    %50 = arith.addi %1, %c2_i32_35 : i32
    %c0_36 = arith.constant 0 : index
    %51 = arith.index_cast %50 : i32 to index
    %c2_37 = arith.constant 2 : index
    %c0_38 = arith.constant 0 : index
    %52 = vector.load %arg2[%c0_36, %51, %c2_37, %c0_38] : memref<1x10x10x128xbf16, #tpu.memory_space<vmem>>, vector<1x8x8x128xbf16>
    %53 = vector.shape_cast %52 : vector<1x8x8x128xbf16> to vector<8x8x128xbf16>
    %54 = vector.shape_cast %53 : vector<8x8x128xbf16> to vector<64x128xbf16>
    %c0_39 = arith.constant 0 : index
    %c1024 = arith.constant 1024 : index
    %55 = vector.load %arg6[%c0_39, %c1024] : memref<64x1152xbf16, #tpu.memory_space<vmem>>, vector<64x128xbf16>
    tpu.vector_store %arg6[%c0_39, %c1024], %54 {strides = array<i32>} : memref<64x1152xbf16, #tpu.memory_space<vmem>>, vector<64x128xbf16>,
    %c0_40 = arith.constant 0 : index
    %c0_41 = arith.constant 0 : index
    %56 = vector.load %arg6[%c0_40, %c0_41] : memref<64x1152xbf16, #tpu.memory_space<vmem>>, vector<64x1152xbf16>
    %c0_42 = arith.constant 0 : index
    %c0_43 = arith.constant 0 : index
    %57 = vector.load %arg3[%c0_42, %c0_43] : memref<1152x128xbf16, #tpu.memory_space<vmem>>, vector<1152x128xbf16>
    %cst = arith.constant dense<0.000000e+00> : vector<64x128xf32>
    %58 = tpu.matmul %56, %57, %cst {dimension_numbers = #tpu.dot_dimension_numbers<[1], [0], [0], [1], [0, 0, 1, 1], [], []>} : vector<64x1152xbf16>, vector<1152x128xbf16>, vector<64x128xf32> -> vector<64x128xf32>
    %59 = vector.shape_cast %58 : vector<64x128xf32> to vector<1x8x8x128xf32>
    %60 = arith.truncf %59 : vector<1x8x8x128xf32> to vector<1x8x8x128xbf16>
    %c0_44 = arith.constant 0 : index
    %c0_45 = arith.constant 0 : index
    %c0_46 = arith.constant 0 : index
    %c0_47 = arith.constant 0 : index
    %61 = vector.load %arg4[%c0_44, %c0_45, %c0_46, %c0_47] : memref<1x8x8x128xbf16, #tpu.memory_space<vmem>>, vector<1x8x8x128xbf16>
    tpu.vector_store %arg4[%c0_44, %c0_45, %c0_46, %c0_47], %60 {strides = array<i32>} : memref<1x8x8x128xbf16, #tpu.memory_space<vmem>>, vector<1x8x8x128xbf16>,
    %cst_48 = arith.constant dense<0.000000e+00> : vector<128xf32>
    %62 = vector.multi_reduction <add>, %58, %cst_48 [0] : vector<64x128xf32> to vector<128xf32>
    %63 = vector.shape_cast %62 : vector<128xf32> to vector<1x128xf32>
    %64 = arith.mulf %58, %58 : vector<64x128xf32>
    %cst_49 = arith.constant dense<0.000000e+00> : vector<128xf32>
    %65 = vector.multi_reduction <add>, %64, %cst_49 [0] : vector<64x128xf32> to vector<128xf32>
    %66 = vector.shape_cast %65 : vector<128xf32> to vector<1x128xf32>
    %67 = tpu.concatenate %63, %66 in 1 : vector<1x128xf32>, vector<1x128xf32> -> vector<1x256xf32>
    %68 = vector.shape_cast %67 : vector<1x256xf32> to vector<1x1x1x256xf32>
    %c0_50 = arith.constant 0 : index
    %c0_51 = arith.constant 0 : index
    %c0_52 = arith.constant 0 : index
    %c0_53 = arith.constant 0 : index
    %69 = vector.load %arg5[%c0_50, %c0_51, %c0_52, %c0_53] : memref<1x1x1x256xf32, #tpu.memory_space<vmem>>, vector<1x1x1x256xf32>
    tpu.vector_store %arg5[%c0_50, %c0_51, %c0_52, %c0_53], %68 {strides = array<i32>} : memref<1x1x1x256xf32, #tpu.memory_space<vmem>>, vector<1x1x1x256xf32>,
    return
  }
  func.func @transform_0(%arg0: i32, %arg1: i32) -> (i32, i32, i32, i32) {
    %c0_i32 = arith.constant 0 : i32
    %c0_i32_0 = arith.constant 0 : i32
    %c0_i32_1 = arith.constant 0 : i32
    %c0_i32_2 = arith.constant 0 : i32
    return %arg0, %c0_i32, %c0_i32_0, %c0_i32_1 : i32, i32, i32, i32
  }
  func.func @transform_1(%arg0: i32, %arg1: i32) -> (i32, i32) {
    %c0_i32 = arith.constant 0 : i32
    %c0_i32_0 = arith.constant 0 : i32
    %c0_i32_1 = arith.constant 0 : i32
    return %c0_i32, %c0_i32_0 : i32, i32
  }
  func.func @transform_2(%arg0: i32, %arg1: i32) -> (i32, i32, i32, i32) {
    %c0_i32 = arith.constant 0 : i32
    %c0_i32_0 = arith.constant 0 : i32
    %c0_i32_1 = arith.constant 0 : i32
    return %arg0, %arg1, %c0_i32, %c0_i32_0 : i32, i32, i32, i32
  }
  func.func @transform_3(%arg0: i32, %arg1: i32) -> (i32, i32, i32, i32) {
    %c0_i32 = arith.constant 0 : i32
    %c0_i32_0 = arith.constant 0 : i32
    %c0_i32_1 = arith.constant 0 : i32
    return %arg0, %arg1, %c0_i32, %c0_i32_0 : i32, i32, i32, i32
  }
}

module attributes {stable_mosaic.version = 11 : i64} {
  func.func @_bn_relu_kernel(%arg0: i32, %arg1: memref<128x128xbf16, #tpu.memory_space<vmem>>, %arg2: memref<1x128xf32, #tpu.memory_space<vmem>>, %arg3: memref<1x128xf32, #tpu.memory_space<vmem>>, %arg4: memref<128x128xf32, #tpu.memory_space<vmem>>) attributes {dimension_semantics = [#tpu.dimension_semantics<parallel>], iteration_bounds = array<i64: 1>, scalar_prefetch = 0 : i64, scratch_operands = 0 : i64, tpu.core_type = #tpu.core_type<tc>, window_params = [{transform_indices = @transform_0, window_bounds = array<i64: 128, 128>}, {pipeline_mode = #tpu.pipeline_mode<synchronous>, transform_indices = @transform_1, window_bounds = array<i64: 1, 128>}, {pipeline_mode = #tpu.pipeline_mode<synchronous>, transform_indices = @transform_2, window_bounds = array<i64: 1, 128>}, {transform_indices = @transform_3, window_bounds = array<i64: 128, 128>}]} {
    %c0 = arith.constant 0 : index
    %c0_0 = arith.constant 0 : index
    %0 = vector.load %arg1[%c0, %c0_0] : memref<128x128xbf16, #tpu.memory_space<vmem>>, vector<128x128xbf16>
    %1 = arith.extf %0 : vector<128x128xbf16> to vector<128x128xf32>
    %c0_1 = arith.constant 0 : index
    %c0_2 = arith.constant 0 : index
    %2 = vector.load %arg2[%c0_1, %c0_2] : memref<1x128xf32, #tpu.memory_space<vmem>>, vector<1x128xf32>
    %3 = vector.broadcast %2 : vector<1x128xf32> to vector<128x128xf32>
    %4 = arith.mulf %1, %3 : vector<128x128xf32>
    %c0_3 = arith.constant 0 : index
    %c0_4 = arith.constant 0 : index
    %5 = vector.load %arg3[%c0_3, %c0_4] : memref<1x128xf32, #tpu.memory_space<vmem>>, vector<1x128xf32>
    %6 = vector.broadcast %5 : vector<1x128xf32> to vector<128x128xf32>
    %7 = arith.addf %4, %6 : vector<128x128xf32>
    %cst = arith.constant 0.000000e+00 : f32
    %8 = vector.broadcast %cst : f32 to vector<128x128xf32>
    %9 = arith.maximumf %7, %8 : vector<128x128xf32>
    %c0_5 = arith.constant 0 : index
    %c0_6 = arith.constant 0 : index
    %10 = vector.load %arg4[%c0_5, %c0_6] : memref<128x128xf32, #tpu.memory_space<vmem>>, vector<128x128xf32>
    tpu.vector_store %arg4[%c0_5, %c0_6], %9 {strides = array<i32>} : memref<128x128xf32, #tpu.memory_space<vmem>>, vector<128x128xf32>,
    return
  }
  func.func @transform_0(%arg0: i32) -> (i32, i32) {
    %c0_i32 = arith.constant 0 : i32
    %c0_i32_0 = arith.constant 0 : i32
    return %arg0, %c0_i32 : i32, i32
  }
  func.func @transform_1(%arg0: i32) -> (i32, i32) {
    %c0_i32 = arith.constant 0 : i32
    %c0_i32_0 = arith.constant 0 : i32
    %c0_i32_1 = arith.constant 0 : i32
    return %c0_i32, %c0_i32_0 : i32, i32
  }
  func.func @transform_2(%arg0: i32) -> (i32, i32) {
    %c0_i32 = arith.constant 0 : i32
    %c0_i32_0 = arith.constant 0 : i32
    %c0_i32_1 = arith.constant 0 : i32
    return %c0_i32, %c0_i32_0 : i32, i32
  }
  func.func @transform_3(%arg0: i32) -> (i32, i32) {
    %c0_i32 = arith.constant 0 : i32
    %c0_i32_0 = arith.constant 0 : i32
    return %arg0, %c0_i32 : i32, i32
  }
}

module attributes {stable_mosaic.version = 11 : i64} {
  func.func @_conv3x3_kernel(%arg0: i32, %arg1: i32, %arg2: memref<1x10x10x128xbf16, #tpu.memory_space<vmem>>, %arg3: memref<1152x128xbf16, #tpu.memory_space<vmem>>, %arg4: memref<1x128xf32, #tpu.memory_space<vmem>>, %arg5: memref<1x128xf32, #tpu.memory_space<vmem>>, %arg6: memref<1x8x8x128xbf16, #tpu.memory_space<vmem>>, %arg7: memref<1x1x1x256xf32, #tpu.memory_space<vmem>>, %arg8: memref<10x10x128xbf16, #tpu.memory_space<vmem>>, %arg9: memref<64x1152xbf16, #tpu.memory_space<vmem>>) attributes {dimension_semantics = [#tpu.dimension_semantics<parallel>, #tpu.dimension_semantics<parallel>], iteration_bounds = array<i64: 2, 1>, scalar_prefetch = 0 : i64, scratch_operands = 2 : i64, tpu.core_type = #tpu.core_type<tc>, window_params = [{transform_indices = @transform_0, window_bounds = array<i64: 1, 10, 10, 128>}, {pipeline_mode = #tpu.pipeline_mode<synchronous>, transform_indices = @transform_1, window_bounds = array<i64: 1152, 128>}, {pipeline_mode = #tpu.pipeline_mode<synchronous>, transform_indices = @transform_2, window_bounds = array<i64: 1, 128>}, {pipeline_mode = #tpu.pipeline_mode<synchronous>, transform_indices = @transform_3, window_bounds = array<i64: 1, 128>}, {transform_indices = @transform_4, window_bounds = array<i64: 1, 8, 8, 128>}, {transform_indices = @transform_5, window_bounds = array<i64: 1, 1, 1, 256>}]} {
    %c8_i32 = arith.constant 8 : i32
    %0 = arith.muli %arg1, %c8_i32 : i32
    %1 = tpu.assume_multiple %0, 8 : i32
    %c0 = arith.constant 0 : index
    %2 = arith.index_cast %1 : i32 to index
    %c0_0 = arith.constant 0 : index
    %c0_1 = arith.constant 0 : index
    %3 = vector.load %arg2[%c0, %2, %c0_0, %c0_1] : memref<1x10x10x128xbf16, #tpu.memory_space<vmem>>, vector<1x10x10x128xbf16>
    %4 = vector.shape_cast %3 : vector<1x10x10x128xbf16> to vector<10x10x128xbf16>
    %5 = arith.extf %4 : vector<10x10x128xbf16> to vector<10x10x128xf32>
    %c0_2 = arith.constant 0 : index
    %c0_3 = arith.constant 0 : index
    %6 = vector.load %arg4[%c0_2, %c0_3] : memref<1x128xf32, #tpu.memory_space<vmem>>, vector<1x128xf32>
    %7 = vector.shape_cast %6 : vector<1x128xf32> to vector<1x1x128xf32>
    %8 = vector.broadcast %7 : vector<1x1x128xf32> to vector<10x10x128xf32>
    %9 = arith.mulf %5, %8 : vector<10x10x128xf32>
    %c0_4 = arith.constant 0 : index
    %c0_5 = arith.constant 0 : index
    %10 = vector.load %arg5[%c0_4, %c0_5] : memref<1x128xf32, #tpu.memory_space<vmem>>, vector<1x128xf32>
    %11 = vector.shape_cast %10 : vector<1x128xf32> to vector<1x1x128xf32>
    %12 = vector.broadcast %11 : vector<1x1x128xf32> to vector<10x10x128xf32>
    %13 = arith.addf %9, %12 : vector<10x10x128xf32>
    %cst = arith.constant 0.000000e+00 : f32
    %14 = vector.broadcast %cst : f32 to vector<10x10x128xf32>
    %15 = arith.maximumf %13, %14 : vector<10x10x128xf32>
    %16 = tpu.iota {dimensions = array<i32: 0>} : vector<10x10x1xi32>
    %17 = tpu.iota {dimensions = array<i32: 1>} : vector<10x10x1xi32>
    %c0_i32 = arith.constant 0 : i32
    %18 = arith.cmpi eq, %arg1, %c0_i32 : i32
    %c1_i32 = arith.constant 1 : i32
    %c0_i32_6 = arith.constant 0 : i32
    %19 = arith.select %18, %c1_i32, %c0_i32_6 : i32
    %c0_i32_7 = arith.constant 0 : i32
    %20 = arith.cmpi eq, %arg1, %c0_i32_7 : i32
    %c8_i32_8 = arith.constant 8 : i32
    %c9_i32 = arith.constant 9 : i32
    %21 = arith.select %20, %c8_i32_8, %c9_i32 : i32
    %22 = vector.broadcast %19 : i32 to vector<10x10x1xi32>
    %23 = arith.cmpi sge, %16, %22 : vector<10x10x1xi32>
    %24 = vector.broadcast %21 : i32 to vector<10x10x1xi32>
    %25 = arith.cmpi sle, %16, %24 : vector<10x10x1xi32>
    %26 = arith.andi %23, %25 : vector<10x10x1xi1>
    %c1_i32_9 = arith.constant 1 : i32
    %27 = vector.broadcast %c1_i32_9 : i32 to vector<10x10x1xi32>
    %28 = arith.cmpi sge, %17, %27 : vector<10x10x1xi32>
    %29 = arith.andi %26, %28 : vector<10x10x1xi1>
    %c8_i32_10 = arith.constant 8 : i32
    %30 = vector.broadcast %c8_i32_10 : i32 to vector<10x10x1xi32>
    %31 = arith.cmpi sle, %17, %30 : vector<10x10x1xi32>
    %32 = arith.andi %29, %31 : vector<10x10x1xi1>
    %cst_11 = arith.constant 0.000000e+00 : f32
    %33 = vector.shape_cast %32 : vector<10x10x1xi1> to vector<10x10x1xi1>
    %34 = vector.broadcast %33 : vector<10x10x1xi1> to vector<10x10x128xi1>
    %35 = vector.broadcast %cst_11 : f32 to vector<10x10x128xf32>
    %36 = arith.select %34, %15, %35 : vector<10x10x128xi1>, vector<10x10x128xf32>
    %37 = arith.truncf %36 : vector<10x10x128xf32> to vector<10x10x128xbf16>
    %c0_12 = arith.constant 0 : index
    %c0_13 = arith.constant 0 : index
    %c0_14 = arith.constant 0 : index
    %38 = vector.load %arg8[%c0_12, %c0_13, %c0_14] : memref<10x10x128xbf16, #tpu.memory_space<vmem>>, vector<10x10x128xbf16>
    tpu.vector_store %arg8[%c0_12, %c0_13, %c0_14], %37 {strides = array<i32>} : memref<10x10x128xbf16, #tpu.memory_space<vmem>>, vector<10x10x128xbf16>,
    %c0_15 = arith.constant 0 : index
    %c0_16 = arith.constant 0 : index
    %c0_17 = arith.constant 0 : index
    %39 = vector.load %arg8[%c0_15, %c0_16, %c0_17] : memref<10x10x128xbf16, #tpu.memory_space<vmem>>, vector<8x8x128xbf16>
    %40 = vector.shape_cast %39 : vector<8x8x128xbf16> to vector<64x128xbf16>
    %c0_18 = arith.constant 0 : index
    %c0_19 = arith.constant 0 : index
    %41 = vector.load %arg9[%c0_18, %c0_19] : memref<64x1152xbf16, #tpu.memory_space<vmem>>, vector<64x128xbf16>
    tpu.vector_store %arg9[%c0_18, %c0_19], %40 {strides = array<i32>} : memref<64x1152xbf16, #tpu.memory_space<vmem>>, vector<64x128xbf16>,
    %c0_20 = arith.constant 0 : index
    %c1 = arith.constant 1 : index
    %c0_21 = arith.constant 0 : index
    %42 = vector.load %arg8[%c0_20, %c1, %c0_21] : memref<10x10x128xbf16, #tpu.memory_space<vmem>>, vector<8x8x128xbf16>
    %43 = vector.shape_cast %42 : vector<8x8x128xbf16> to vector<64x128xbf16>
    %c0_22 = arith.constant 0 : index
    %c128 = arith.constant 128 : index
    %44 = vector.load %arg9[%c0_22, %c128] : memref<64x1152xbf16, #tpu.memory_space<vmem>>, vector<64x128xbf16>
    tpu.vector_store %arg9[%c0_22, %c128], %43 {strides = array<i32>} : memref<64x1152xbf16, #tpu.memory_space<vmem>>, vector<64x128xbf16>,
    %c0_23 = arith.constant 0 : index
    %c2 = arith.constant 2 : index
    %c0_24 = arith.constant 0 : index
    %45 = vector.load %arg8[%c0_23, %c2, %c0_24] : memref<10x10x128xbf16, #tpu.memory_space<vmem>>, vector<8x8x128xbf16>
    %46 = vector.shape_cast %45 : vector<8x8x128xbf16> to vector<64x128xbf16>
    %c0_25 = arith.constant 0 : index
    %c256 = arith.constant 256 : index
    %47 = vector.load %arg9[%c0_25, %c256] : memref<64x1152xbf16, #tpu.memory_space<vmem>>, vector<64x128xbf16>
    tpu.vector_store %arg9[%c0_25, %c256], %46 {strides = array<i32>} : memref<64x1152xbf16, #tpu.memory_space<vmem>>, vector<64x128xbf16>,
    %c1_26 = arith.constant 1 : index
    %c0_27 = arith.constant 0 : index
    %c0_28 = arith.constant 0 : index
    %48 = vector.load %arg8[%c1_26, %c0_27, %c0_28] : memref<10x10x128xbf16, #tpu.memory_space<vmem>>, vector<8x8x128xbf16>
    %49 = vector.shape_cast %48 : vector<8x8x128xbf16> to vector<64x128xbf16>
    %c0_29 = arith.constant 0 : index
    %c384 = arith.constant 384 : index
    %50 = vector.load %arg9[%c0_29, %c384] : memref<64x1152xbf16, #tpu.memory_space<vmem>>, vector<64x128xbf16>
    tpu.vector_store %arg9[%c0_29, %c384], %49 {strides = array<i32>} : memref<64x1152xbf16, #tpu.memory_space<vmem>>, vector<64x128xbf16>,
    %c1_30 = arith.constant 1 : index
    %c1_31 = arith.constant 1 : index
    %c0_32 = arith.constant 0 : index
    %51 = vector.load %arg8[%c1_30, %c1_31, %c0_32] : memref<10x10x128xbf16, #tpu.memory_space<vmem>>, vector<8x8x128xbf16>
    %52 = vector.shape_cast %51 : vector<8x8x128xbf16> to vector<64x128xbf16>
    %c0_33 = arith.constant 0 : index
    %c512 = arith.constant 512 : index
    %53 = vector.load %arg9[%c0_33, %c512] : memref<64x1152xbf16, #tpu.memory_space<vmem>>, vector<64x128xbf16>
    tpu.vector_store %arg9[%c0_33, %c512], %52 {strides = array<i32>} : memref<64x1152xbf16, #tpu.memory_space<vmem>>, vector<64x128xbf16>,
    %c1_34 = arith.constant 1 : index
    %c2_35 = arith.constant 2 : index
    %c0_36 = arith.constant 0 : index
    %54 = vector.load %arg8[%c1_34, %c2_35, %c0_36] : memref<10x10x128xbf16, #tpu.memory_space<vmem>>, vector<8x8x128xbf16>
    %55 = vector.shape_cast %54 : vector<8x8x128xbf16> to vector<64x128xbf16>
    %c0_37 = arith.constant 0 : index
    %c640 = arith.constant 640 : index
    %56 = vector.load %arg9[%c0_37, %c640] : memref<64x1152xbf16, #tpu.memory_space<vmem>>, vector<64x128xbf16>
    tpu.vector_store %arg9[%c0_37, %c640], %55 {strides = array<i32>} : memref<64x1152xbf16, #tpu.memory_space<vmem>>, vector<64x128xbf16>,
    %c2_38 = arith.constant 2 : index
    %c0_39 = arith.constant 0 : index
    %c0_40 = arith.constant 0 : index
    %57 = vector.load %arg8[%c2_38, %c0_39, %c0_40] : memref<10x10x128xbf16, #tpu.memory_space<vmem>>, vector<8x8x128xbf16>
    %58 = vector.shape_cast %57 : vector<8x8x128xbf16> to vector<64x128xbf16>
    %c0_41 = arith.constant 0 : index
    %c768 = arith.constant 768 : index
    %59 = vector.load %arg9[%c0_41, %c768] : memref<64x1152xbf16, #tpu.memory_space<vmem>>, vector<64x128xbf16>
    tpu.vector_store %arg9[%c0_41, %c768], %58 {strides = array<i32>} : memref<64x1152xbf16, #tpu.memory_space<vmem>>, vector<64x128xbf16>,
    %c2_42 = arith.constant 2 : index
    %c1_43 = arith.constant 1 : index
    %c0_44 = arith.constant 0 : index
    %60 = vector.load %arg8[%c2_42, %c1_43, %c0_44] : memref<10x10x128xbf16, #tpu.memory_space<vmem>>, vector<8x8x128xbf16>
    %61 = vector.shape_cast %60 : vector<8x8x128xbf16> to vector<64x128xbf16>
    %c0_45 = arith.constant 0 : index
    %c896 = arith.constant 896 : index
    %62 = vector.load %arg9[%c0_45, %c896] : memref<64x1152xbf16, #tpu.memory_space<vmem>>, vector<64x128xbf16>
    tpu.vector_store %arg9[%c0_45, %c896], %61 {strides = array<i32>} : memref<64x1152xbf16, #tpu.memory_space<vmem>>, vector<64x128xbf16>,
    %c2_46 = arith.constant 2 : index
    %c2_47 = arith.constant 2 : index
    %c0_48 = arith.constant 0 : index
    %63 = vector.load %arg8[%c2_46, %c2_47, %c0_48] : memref<10x10x128xbf16, #tpu.memory_space<vmem>>, vector<8x8x128xbf16>
    %64 = vector.shape_cast %63 : vector<8x8x128xbf16> to vector<64x128xbf16>
    %c0_49 = arith.constant 0 : index
    %c1024 = arith.constant 1024 : index
    %65 = vector.load %arg9[%c0_49, %c1024] : memref<64x1152xbf16, #tpu.memory_space<vmem>>, vector<64x128xbf16>
    tpu.vector_store %arg9[%c0_49, %c1024], %64 {strides = array<i32>} : memref<64x1152xbf16, #tpu.memory_space<vmem>>, vector<64x128xbf16>,
    %c0_50 = arith.constant 0 : index
    %c0_51 = arith.constant 0 : index
    %66 = vector.load %arg9[%c0_50, %c0_51] : memref<64x1152xbf16, #tpu.memory_space<vmem>>, vector<64x1152xbf16>
    %c0_52 = arith.constant 0 : index
    %c0_53 = arith.constant 0 : index
    %67 = vector.load %arg3[%c0_52, %c0_53] : memref<1152x128xbf16, #tpu.memory_space<vmem>>, vector<1152x128xbf16>
    %cst_54 = arith.constant dense<0.000000e+00> : vector<64x128xf32>
    %68 = tpu.matmul %66, %67, %cst_54 {dimension_numbers = #tpu.dot_dimension_numbers<[1], [0], [0], [1], [0, 0, 1, 1], [], []>} : vector<64x1152xbf16>, vector<1152x128xbf16>, vector<64x128xf32> -> vector<64x128xf32>
    %69 = vector.shape_cast %68 : vector<64x128xf32> to vector<1x8x8x128xf32>
    %70 = arith.truncf %69 : vector<1x8x8x128xf32> to vector<1x8x8x128xbf16>
    %c0_55 = arith.constant 0 : index
    %c0_56 = arith.constant 0 : index
    %c0_57 = arith.constant 0 : index
    %c0_58 = arith.constant 0 : index
    %71 = vector.load %arg6[%c0_55, %c0_56, %c0_57, %c0_58] : memref<1x8x8x128xbf16, #tpu.memory_space<vmem>>, vector<1x8x8x128xbf16>
    tpu.vector_store %arg6[%c0_55, %c0_56, %c0_57, %c0_58], %70 {strides = array<i32>} : memref<1x8x8x128xbf16, #tpu.memory_space<vmem>>, vector<1x8x8x128xbf16>,
    %cst_59 = arith.constant dense<0.000000e+00> : vector<128xf32>
    %72 = vector.multi_reduction <add>, %68, %cst_59 [0] : vector<64x128xf32> to vector<128xf32>
    %73 = vector.shape_cast %72 : vector<128xf32> to vector<1x128xf32>
    %74 = arith.mulf %68, %68 : vector<64x128xf32>
    %cst_60 = arith.constant dense<0.000000e+00> : vector<128xf32>
    %75 = vector.multi_reduction <add>, %74, %cst_60 [0] : vector<64x128xf32> to vector<128xf32>
    %76 = vector.shape_cast %75 : vector<128xf32> to vector<1x128xf32>
    %77 = tpu.concatenate %73, %76 in 1 : vector<1x128xf32>, vector<1x128xf32> -> vector<1x256xf32>
    %78 = vector.shape_cast %77 : vector<1x256xf32> to vector<1x1x1x256xf32>
    %c0_61 = arith.constant 0 : index
    %c0_62 = arith.constant 0 : index
    %c0_63 = arith.constant 0 : index
    %c0_64 = arith.constant 0 : index
    %79 = vector.load %arg7[%c0_61, %c0_62, %c0_63, %c0_64] : memref<1x1x1x256xf32, #tpu.memory_space<vmem>>, vector<1x1x1x256xf32>
    tpu.vector_store %arg7[%c0_61, %c0_62, %c0_63, %c0_64], %78 {strides = array<i32>} : memref<1x1x1x256xf32, #tpu.memory_space<vmem>>, vector<1x1x1x256xf32>,
    return
  }
  func.func @transform_0(%arg0: i32, %arg1: i32) -> (i32, i32, i32, i32) {
    %c0_i32 = arith.constant 0 : i32
    %c0_i32_0 = arith.constant 0 : i32
    %c0_i32_1 = arith.constant 0 : i32
    %c0_i32_2 = arith.constant 0 : i32
    return %arg0, %c0_i32, %c0_i32_0, %c0_i32_1 : i32, i32, i32, i32
  }
  func.func @transform_1(%arg0: i32, %arg1: i32) -> (i32, i32) {
    %c0_i32 = arith.constant 0 : i32
    %c0_i32_0 = arith.constant 0 : i32
    %c0_i32_1 = arith.constant 0 : i32
    return %c0_i32, %c0_i32_0 : i32, i32
  }
  func.func @transform_2(%arg0: i32, %arg1: i32) -> (i32, i32) {
    %c0_i32 = arith.constant 0 : i32
    %c0_i32_0 = arith.constant 0 : i32
    %c0_i32_1 = arith.constant 0 : i32
    return %c0_i32, %c0_i32_0 : i32, i32
  }
  func.func @transform_3(%arg0: i32, %arg1: i32) -> (i32, i32) {
    %c0_i32 = arith.constant 0 : i32
    %c0_i32_0 = arith.constant 0 : i32
    %c0_i32_1 = arith.constant 0 : i32
    return %c0_i32, %c0_i32_0 : i32, i32
  }
  func.func @transform_4(%arg0: i32, %arg1: i32) -> (i32, i32, i32, i32) {
    %c0_i32 = arith.constant 0 : i32
    %c0_i32_0 = arith.constant 0 : i32
    %c0_i32_1 = arith.constant 0 : i32
    return %arg0, %arg1, %c0_i32, %c0_i32_0 : i32, i32, i32, i32
  }
  func.func @transform_5(%arg0: i32, %arg1: i32) -> (i32, i32, i32, i32) {
    %c0_i32 = arith.constant 0 : i32
    %c0_i32_0 = arith.constant 0 : i32
    %c0_i32_1 = arith.constant 0 : i32
    return %arg0, %arg1, %c0_i32, %c0_i32_0 : i32, i32, i32, i32
  }
}

</mosaic_0001>

<llo_original>
// kernel: down_forward.7
$region0: #{down_forward.7}
  #allocation0 [shape = 'u32[]', space=smem, size = 0x4, offset = 0x4, fixed_abs, tag = 'smem constant byte address 0x4 - core index']
  #allocation1 [shape = 'u32[144,128]{1,0:T(1,128)}', space=vmem, size = 0x12000, scoped, tag = 'internal scratch']
  %s0 = inlined_call_operand.vmem [shape: bf16[128,128], index: 0, kind: input, shape index: {}]
  %s1 = inlined_call_operand.vmem [shape: f32[1,128], index: 1, kind: input, shape index: {}]
  %s2 = inlined_call_operand.vmem [shape: f32[1,128], index: 2, kind: input, shape index: {}]
  %s3 = inlined_call_operand.vmem [shape: f32[128,128], index: 3, kind: output, shape index: {}]
  %s4 = sld [smem:[#allocation0]]
  $region22: #{down_forward.7} parent=0
    _
  %s6 = ssub.s32 1, %s4
  %s7 = scalar_select 0, %s6, %s4
  // Predicated region
  $region2: #{down_forward.7} parent=0 // pred_check
    _
  $region3: #{down_forward.7} parent=0 // pred_check_branch
    %9 = sbr.rel (0) target = $region5
  $region4: #{down_forward.7} parent=0 // pred_region
    _
  $region5: #{down_forward.7} parent=0 // pred_fallthru
    _
  // Predicated region
  $region6: #{down_forward.7} parent=0 // pred_check
    _
  $region7: #{down_forward.7} parent=0 // pred_check_branch
    %11 = sbr.rel (0) target = $region9
  $region8: #{down_forward.7} parent=0 // pred_region
    _
  $region9: #{down_forward.7} parent=0 // pred_fallthru
    _
  // Predicated region
  $region10: #{down_forward.7} parent=0 // pred_check
    _
  $region11: #{down_forward.7} parent=0 // pred_check_branch
    %13 = sbr.rel (0) target = $region13
  $region12: #{down_forward.7} parent=0 // pred_region
    _
  $region13: #{down_forward.7} parent=0 // pred_fallthru
    _
  %v14 = vld [vmem:[%s0] sm:$0xf]
  %v15 = vld [vmem:[%s0 + $0x4] sm:$0xf]
  %v16 = vld [vmem:[%s0 + $0x8] sm:$0xf]
  %v17 = vld [vmem:[%s0 + $0xc] sm:$0xf]
  %v18 = vld [vmem:[%s0 + $0x10] sm:$0xf]
  %v19 = vld [vmem:[%s0 + $0x14] sm:$0xf]
  %v20 = vld [vmem:[%s0 + $0x18] sm:$0xf]
  %v21 = vld [vmem:[%s0 + $0x1c] sm:$0xf]
  %v22 = vld [vmem:[%s0 + $0x20] sm:$0xf]
  %v23 = vld [vmem:[%s0 + $0x24] sm:$0xf]
  %v24 = vld [vmem:[%s0 + $0x28] sm:$0xf]
  %v25 = vld [vmem:[%s0 + $0x2c] sm:$0xf]
  %v26 = vld [vmem:[%s0 + $0x30] sm:$0xf]
  %v27 = vld [vmem:[%s0 + $0x34] sm:$0xf]
  %v28 = vld [vmem:[%s0 + $0x38] sm:$0xf]
  %v29 = vld [vmem:[%s0 + $0x3c] sm:$0xf]
  %v30 = vunpack.c.l.bf16 %v14
  %v31 = vunpack.c.l.bf16 %v15
  %v32 = vunpack.c.l.bf16 %v16
  %v33 = vunpack.c.l.bf16 %v17
  %v34 = vunpack.c.l.bf16 %v18
  %v35 = vunpack.c.l.bf16 %v19
  %v36 = vunpack.c.l.bf16 %v20
  %v37 = vunpack.c.l.bf16 %v21
  %v38 = vunpack.c.l.bf16 %v22
  %v39 = vunpack.c.l.bf16 %v23
  %v40 = vunpack.c.l.bf16 %v24
  %v41 = vunpack.c.l.bf16 %v25
  %v42 = vunpack.c.l.bf16 %v26
  %v43 = vunpack.c.l.bf16 %v27
  %v44 = vunpack.c.l.bf16 %v28
  %v45 = vunpack.c.l.bf16 %v29
  %v46 = vld [vmem:[%s1] sm:$0x1]
  %v48 = vlaneseq
  %v49 = vshrl.u32 %v48, 7
  %v50 = vsub.s32 0, %v49
  %v51 = vrot.slane %v46, %v50
  %v53 = vmul.f32 %v30, %v51
  %v54 = vmul.f32 %v31, %v51
  %v55 = vmul.f32 %v32, %v51
  %v56 = vmul.f32 %v33, %v51
  %v57 = vmul.f32 %v34, %v51
  %v58 = vmul.f32 %v35, %v51
  %v59 = vmul.f32 %v36, %v51
  %v60 = vmul.f32 %v37, %v51
  %v61 = vmul.f32 %v38, %v51
  %v62 = vmul.f32 %v39, %v51
  %v63 = vmul.f32 %v40, %v51
  %v64 = vmul.f32 %v41, %v51
  %v65 = vmul.f32 %v42, %v51
  %v66 = vmul.f32 %v43, %v51
  %v67 = vmul.f32 %v44, %v51
  %v68 = vmul.f32 %v45, %v51
  %v69 = vld [vmem:[%s2] sm:$0x1]
  %v71 = vlaneseq
  %v72 = vshrl.u32 %v71, 7
  %v73 = vsub.s32 0, %v72
  %v74 = vrot.slane %v69, %v73
  %v76 = vadd.f32 %v53, %v74
  %v77 = vadd.f32 %v54, %v74
  %v78 = vadd.f32 %v55, %v74
  %v79 = vadd.f32 %v56, %v74
  %v80 = vadd.f32 %v57, %v74
  %v81 = vadd.f32 %v58, %v74
  %v82 = vadd.f32 %v59, %v74
  %v83 = vadd.f32 %v60, %v74
  %v84 = vadd.f32 %v61, %v74
  %v85 = vadd.f32 %v62, %v74
  %v86 = vadd.f32 %v63, %v74
  %v87 = vadd.f32 %v64, %v74
  %v88 = vadd.f32 %v65, %v74
  %v89 = vadd.f32 %v66, %v74
  %v90 = vadd.f32 %v67, %v74
  %v91 = vadd.f32 %v68, %v74
  %v92 = vmax.f32 %v76, 0.0
  %v93 = vmax.f32 %v77, 0.0
  %v94 = vmax.f32 %v78, 0.0
  %v95 = vmax.f32 %v79, 0.0
  %v96 = vmax.f32 %v80, 0.0
  %v97 = vmax.f32 %v81, 0.0
  %v98 = vmax.f32 %v82, 0.0
  %v99 = vmax.f32 %v83, 0.0
  %v100 = vmax.f32 %v84, 0.0
  %v101 = vmax.f32 %v85, 0.0
  %v102 = vmax.f32 %v86, 0.0
  %v103 = vmax.f32 %v87, 0.0
  %v104 = vmax.f32 %v88, 0.0
  %v105 = vmax.f32 %v89, 0.0
  %v106 = vmax.f32 %v90, 0.0
  %v107 = vmax.f32 %v91, 0.0
  %108 = vst [vmem:[%s3] sm:$0xff] %v92
  %109 = vst [vmem:[%s3 + $0x8] sm:$0xff] %v93
  %110 = vst [vmem:[%s3 + $0x10] sm:$0xff] %v94
  %111 = vst [vmem:[%s3 + $0x18] sm:$0xff] %v95
  %112 = vst [vmem:[%s3 + $0x20] sm:$0xff] %v96
  %113 = vst [vmem:[%s3 + $0x28] sm:$0xff] %v97
  %114 = vst [vmem:[%s3 + $0x30] sm:$0xff] %v98
  %115 = vst [vmem:[%s3 + $0x38] sm:$0xff] %v99
  %116 = vst [vmem:[%s3 + $0x40] sm:$0xff] %v100
  %117 = vst [vmem:[%s3 + $0x48] sm:$0xff] %v101
  %118 = vst [vmem:[%s3 + $0x50] sm:$0xff] %v102
  %119 = vst [vmem:[%s3 + $0x58] sm:$0xff] %v103
  %120 = vst [vmem:[%s3 + $0x60] sm:$0xff] %v104
  %121 = vst [vmem:[%s3 + $0x68] sm:$0xff] %v105
  %122 = vst [vmem:[%s3 + $0x70] sm:$0xff] %v106
  %123 = vst [vmem:[%s3 + $0x78] sm:$0xff] %v107
  // Predicated region
  $region14: #{down_forward.7} parent=0 // pred_check
    _
  $region15: #{down_forward.7} parent=0 // pred_check_branch
    %125 = sbr.rel (0) target = $region17
  $region16: #{down_forward.7} parent=0 // pred_region
    _
  $region17: #{down_forward.7} parent=0 // pred_fallthru
    _
  // Predicated region
  $region18: #{down_forward.7} parent=0 // pred_check
    _
  $region19: #{down_forward.7} parent=0 // pred_check_branch
    %127 = sbr.rel (0) target = $region21
  $region20: #{down_forward.7} parent=0 // pred_region
    _
  $region21: #{down_forward.7} parent=0 // pred_fallthru
    _

// kernel: down_forward.4
$region0: #{down_forward.4}
  #allocation0 [shape = 'u32[]', space=smem, size = 0x4, offset = 0x4, fixed_abs, tag = 'smem constant byte address 0x4 - core index']
  #allocation1 [shape = 'u32[144,128]{1,0:T(1,128)}', space=vmem, size = 0x12000, scoped, tag = 'internal scratch']
  %s0 = inlined_call_operand.vmem [shape: bf16[16,2,8,256], index: 0, kind: input, shape index: {}]
  %s1 = inlined_call_operand.vmem [shape: bf16[16,8,128], index: 1, kind: output, shape index: {}]
  %s2 = sld [smem:[#allocation0]]
  $region14: #{down_forward.4} parent=0
    _
  %s4 = ssub.s32 1, %s2
  %s5 = scalar_select 0, %s4, %s2
  // Predicated region
  $region2: #{down_forward.4} parent=0 // pred_check
    _
  $region3: #{down_forward.4} parent=0 // pred_check_branch
    %7 = sbr.rel (0) target = $region5
  $region4: #{down_forward.4} parent=0 // pred_region
    _
  $region5: #{down_forward.4} parent=0 // pred_fallthru
    _
  %v8 = vld [vmem:[%s0] sm:$0xff]
  %v9 = vld [vmem:[%s0 + $0x8] sm:$0xff]
  %v10 = vld [vmem:[%s0 + $0x10] sm:$0xff]
  %v11 = vld [vmem:[%s0 + $0x18] sm:$0xff]
  %v12 = vld [vmem:[%s0 + $0x20] sm:$0xff]
  %v13 = vld [vmem:[%s0 + $0x28] sm:$0xff]
  %v14 = vld [vmem:[%s0 + $0x30] sm:$0xff]
  %v15 = vld [vmem:[%s0 + $0x38] sm:$0xff]
  %v16 = vld [vmem:[%s0 + $0x40] sm:$0xff]
  %v17 = vld [vmem:[%s0 + $0x48] sm:$0xff]
  %v18 = vld [vmem:[%s0 + $0x50] sm:$0xff]
  %v19 = vld [vmem:[%s0 + $0x58] sm:$0xff]
  %v20 = vld [vmem:[%s0 + $0x60] sm:$0xff]
  %v21 = vld [vmem:[%s0 + $0x68] sm:$0xff]
  %v22 = vld [vmem:[%s0 + $0x70] sm:$0xff]
  %v23 = vld [vmem:[%s0 + $0x78] sm:$0xff]
  %v24 = vld [vmem:[%s0 + $0x80] sm:$0xff]
  %v25 = vld [vmem:[%s0 + $0x88] sm:$0xff]
  %v26 = vld [vmem:[%s0 + $0x90] sm:$0xff]
  %v27 = vld [vmem:[%s0 + $0x98] sm:$0xff]
  %v28 = vld [vmem:[%s0 + $0xa0] sm:$0xff]
  %v29 = vld [vmem:[%s0 + $0xa8] sm:$0xff]
  %v30 = vld [vmem:[%s0 + $0xb0] sm:$0xff]
  %v31 = vld [vmem:[%s0 + $0xb8] sm:$0xff]
  %v32 = vld [vmem:[%s0 + $0xc0] sm:$0xff]
  %v33 = vld [vmem:[%s0 + $0xc8] sm:$0xff]
  %v34 = vld [vmem:[%s0 + $0xd0] sm:$0xff]
  %v35 = vld [vmem:[%s0 + $0xd8] sm:$0xff]
  %v36 = vld [vmem:[%s0 + $0xe0] sm:$0xff]
  %v37 = vld [vmem:[%s0 + $0xe8] sm:$0xff]
  %v38 = vld [vmem:[%s0 + $0xf0] sm:$0xff]
  %v39 = vld [vmem:[%s0 + $0xf8] sm:$0xff]
  %v40 = vmax.bf16 %v8, %v9
  %v41 = vmax.bf16 %v10, %v11
  %v42 = vmax.bf16 %v12, %v13
  %v43 = vmax.bf16 %v14, %v15
  %v44 = vmax.bf16 %v16, %v17
  %v45 = vmax.bf16 %v18, %v19
  %v46 = vmax.bf16 %v20, %v21
  %v47 = vmax.bf16 %v22, %v23
  %v48 = vmax.bf16 %v24, %v25
  %v49 = vmax.bf16 %v26, %v27
  %v50 = vmax.bf16 %v28, %v29
  %v51 = vmax.bf16 %v30, %v31
  %v52 = vmax.bf16 %v32, %v33
  %v53 = vmax.bf16 %v34, %v35
  %v54 = vmax.bf16 %v36, %v37
  %v55 = vmax.bf16 %v38, %v39
  %v72 = vrot.slane %v40, 4
  %v73 = vrot.slane %v41, 4
  %v74 = vrot.slane %v42, 4
  %v75 = vrot.slane %v43, 4
  %v76 = vrot.slane %v44, 4
  %v77 = vrot.slane %v45, 4
  %v78 = vrot.slane %v46, 4
  %v79 = vrot.slane %v47, 4
  %v80 = vrot.slane %v48, 4
  %v81 = vrot.slane %v49, 4
  %v82 = vrot.slane %v50, 4
  %v83 = vrot.slane %v51, 4
  %v84 = vrot.slane %v52, 4
  %v85 = vrot.slane %v53, 4
  %v86 = vrot.slane %v54, 4
  %v87 = vrot.slane %v55, 4
  %v104 = vmax.bf16 %v40, %v72
  %v105 = vmax.bf16 %v41, %v73
  %v106 = vmax.bf16 %v42, %v74
  %v107 = vmax.bf16 %v43, %v75
  %v108 = vmax.bf16 %v44, %v76
  %v109 = vmax.bf16 %v45, %v77
  %v110 = vmax.bf16 %v46, %v78
  %v111 = vmax.bf16 %v47, %v79
  %v112 = vmax.bf16 %v48, %v80
  %v113 = vmax.bf16 %v49, %v81
  %v114 = vmax.bf16 %v50, %v82
  %v115 = vmax.bf16 %v51, %v83
  %v116 = vmax.bf16 %v52, %v84
  %v117 = vmax.bf16 %v53, %v85
  %v118 = vmax.bf16 %v54, %v86
  %v119 = vmax.bf16 %v55, %v87
  %120 = vst [vmem:[%s1] sm:$0xf] %v104
  %121 = vst [vmem:[%s1 + $0x4] sm:$0xf] %v105
  %122 = vst [vmem:[%s1 + $0x8] sm:$0xf] %v106
  %123 = vst [vmem:[%s1 + $0xc] sm:$0xf] %v107
  %124 = vst [vmem:[%s1 + $0x10] sm:$0xf] %v108
  %125 = vst [vmem:[%s1 + $0x14] sm:$0xf] %v109
  %126 = vst [vmem:[%s1 + $0x18] sm:$0xf] %v110
  %127 = vst [vmem:[%s1 + $0x1c] sm:$0xf] %v111
  %128 = vst [vmem:[%s1 + $0x20] sm:$0xf] %v112
  %129 = vst [vmem:[%s1 + $0x24] sm:$0xf] %v113
  %130 = vst [vmem:[%s1 + $0x28] sm:$0xf] %v114
  %131 = vst [vmem:[%s1 + $0x2c] sm:$0xf] %v115
  %132 = vst [vmem:[%s1 + $0x30] sm:$0xf] %v116
  %133 = vst [vmem:[%s1 + $0x34] sm:$0xf] %v117
  %134 = vst [vmem:[%s1 + $0x38] sm:$0xf] %v118
  %135 = vst [vmem:[%s1 + $0x3c] sm:$0xf] %v119
  // Predicated region
  $region6: #{down_forward.4} parent=0 // pred_check
    _
  $region7: #{down_forward.4} parent=0 // pred_check_branch
    %137 = sbr.rel (0) target = $region9
  $region8: #{down_forward.4} parent=0 // pred_region
    _
  $region9: #{down_forward.4} parent=0 // pred_fallthru
    _
  // Predicated region
  $region10: #{down_forward.4} parent=0 // pred_check
    _
  $region11: #{down_forward.4} parent=0 // pred_check_branch
    %139 = sbr.rel (0) target = $region13
  $region12: #{down_forward.4} parent=0 // pred_region
    _
  $region13: #{down_forward.4} parent=0 // pred_fallthru
    _

// kernel: down_forward.5
$region0: #{down_forward.5}
  #allocation0 [shape = 'u32[]', space=smem, size = 0x4, offset = 0x4, fixed_abs, tag = 'smem constant byte address 0x4 - core index']
  #allocation1 [shape = 'u32[144,128]{1,0:T(1,128)}', space=vmem, size = 0x12000, scoped, tag = 'internal scratch']
  #allocation2 [shape = 'bf16[64,1152]{1,0:T(16,128)(2,1)}', space=vmem, size = 0x24000, scoped, tag = 'scratch operand']
  %s0 = inlined_call_operand.vmem [shape: bf16[2,10,10,128], index: 0, kind: input, shape index: {}]
  %s1 = inlined_call_operand.vmem [shape: bf16[1152,128], index: 1, kind: input, shape index: {}]
  %s2 = inlined_call_operand.vmem [shape: bf16[2,8,8,128], index: 2, kind: output, shape index: {0}]
  %s3 = inlined_call_operand.vmem [shape: f32[2,1,1,256], index: 3, kind: output, shape index: {1}]
  %4 = xla_tuple %s2, %s3
  %s5 = sld [smem:[#allocation0]]
  $region49: #{down_forward.5} parent=0
    _
  %s7 = ssub.s32 1, %s5
  %s8 = scalar_select 0, %s7, %s5
  loop: start=0, step=1, limit=4
  $region2: #{down_forward.5} parent=0 // loop_pre_header
    _
  $region3: #{down_forward.5} parent=0 // loop_header
    %s10 = sphi 0, %s14
    %p11 = scmp.ge.s32.totalorder %s10, 4
    %s17 = sphi 0, %s29
    %s18 = sphi 0, %s25
    %s19 = sphi 0, %s17
    %s20 = sphi 0, %s18
    %s21 = sphi 0, %s19
    %s22 = sphi 0, %s20
    %s32 = sphi 0, %s34
    %s35 = sphi 0, %s32
    %s36 = sphi 0, %s35
    %s52 = sphi 0, %s36
    %s56 = sphi 0, %s56
    %s58 = sphi 0, %s56
    %s59 = sphi 0, %s58
    %s73 = sphi 0, %s59
    %s81 = sphi 0, %s83
    %s84 = sphi 0, %s81
    %s85 = sphi 0, %s84
    %s101 = sphi 0, %s85
    %s109 = sphi 0, %s111
    %s112 = sphi 0, %s109
    %s113 = sphi 0, %s112
    %s129 = sphi 0, %s113
  $region4: #{down_forward.5} parent=0 // loop_header_branch
    %13 = sbr.rel (%p11) target = $region8
  $region5: #{down_forward.5} parent=0 // loop_body
    %s15 = ssub.s32 %s10, 1
    %s16 = ssub.s32 %s10, 2
    %s23 = sadd.s32 1, %s18
    %p24 = scmp.ge.s32.totalorder %s23, 1
    %s25 = scalar_select %p24, 0, %s23
    %s26 = sadd.s32 1, %s17
    %s27 = scalar_select %p24, %s26, %s17
    %p28 = scmp.ge.s32.totalorder %s27, 2
    %s29 = scalar_select %p28, 0, %s27
    %s30 = ssub.s32 %s17, %s29
    %p31 = scmp.eq.s32.totalorder %s30, 0
    %s33 = sadd.s32 %s32, 1
    %s34 = scalar_select %p31, %s32, %s33
    %p37 = pneg %p31
    %p38 = scmp.eq.s32.totalorder %s10, 1
    %p39 = por %p37, %p38
    %p40 = scmp.ne.s32.totalorder %s32, %s35
    %p41 = scmp.eq.s32.totalorder %s10, 0
    %p42 = por %p40, %p41
    %p43 = scmp.ne.s32.totalorder %s32, %s35
    %p44 = scmp.eq.s32.totalorder %s15, 1
    %p45 = por %p43, %p44
    %p46 = scmp.ne.s32.totalorder %s35, %s36
    %p47 = scmp.eq.s32.totalorder %s15, 0
    %p48 = por %p46, %p47
    %p49 = scmp.ne.s32.totalorder %s35, %s36
    %p50 = scmp.eq.s32.totalorder %s16, 1
    %p51 = por %p49, %p50
    %p53 = scmp.ne.s32.totalorder %s36, %s52
    %p54 = scmp.eq.s32.totalorder %s16, 0
    %p55 = por %p53, %p54
    %s57 = sadd.s32 %s56, 1
    %p60 = scmp.eq.s32.totalorder %s10, 1
    %p61 = scmp.ne.s32.totalorder %s56, %s58
    %p62 = scmp.eq.s32.totalorder %s10, 0
    %p63 = por %p61, %p62
    %p64 = scmp.ne.s32.totalorder %s56, %s58
    %p65 = scmp.eq.s32.totalorder %s15, 1
    %p66 = por %p64, %p65
    %p67 = scmp.ne.s32.totalorder %s58, %s59
    %p68 = scmp.eq.s32.totalorder %s15, 0
    %p69 = por %p67, %p68
    %p70 = scmp.ne.s32.totalorder %s58, %s59
    %p71 = scmp.eq.s32.totalorder %s16, 1
    %p72 = por %p70, %p71
    %p74 = scmp.ne.s32.totalorder %s59, %s73
    %p75 = scmp.eq.s32.totalorder %s16, 0
    %p76 = por %p74, %p75
    %s77 = ssub.s32 %s17, %s29
    %s78 = ssub.s32 %s18, %s25
    %s79 = sor.u32 %s77, %s78
    %p80 = scmp.eq.s32.totalorder %s79, 0
    %s82 = sadd.s32 %s81, 1
    %s83 = scalar_select %p80, %s81, %s82
    %p86 = pneg %p80
    %p87 = scmp.eq.s32.totalorder %s10, 1
    %p88 = por %p86, %p87
    %p89 = scmp.ne.s32.totalorder %s81, %s84
    %p90 = scmp.eq.s32.totalorder %s10, 0
    %p91 = por %p89, %p90
    %p92 = scmp.ne.s32.totalorder %s81, %s84
    %p93 = scmp.eq.s32.totalorder %s15, 1
    %p94 = por %p92, %p93
    %p95 = scmp.ne.s32.totalorder %s84, %s85
    %p96 = scmp.eq.s32.totalorder %s15, 0
    %p97 = por %p95, %p96
    %p98 = scmp.ne.s32.totalorder %s84, %s85
    %p99 = scmp.eq.s32.totalorder %s16, 1
    %p100 = por %p98, %p99
    %p102 = scmp.ne.s32.totalorder %s85, %s101
    %p103 = scmp.eq.s32.totalorder %s16, 0
    %p104 = por %p102, %p103
    %s105 = ssub.s32 %s17, %s29
    %s106 = ssub.s32 %s18, %s25
    %s107 = sor.u32 %s105, %s106
    %p108 = scmp.eq.s32.totalorder %s107, 0
    %s110 = sadd.s32 %s109, 1
    %s111 = scalar_select %p108, %s109, %s110
    %p114 = pneg %p108
    %p115 = scmp.eq.s32.totalorder %s10, 1
    %p116 = por %p114, %p115
    %p117 = scmp.ne.s32.totalorder %s109, %s112
    %p118 = scmp.eq.s32.totalorder %s10, 0
    %p119 = por %p117, %p118
    %p120 = scmp.ne.s32.totalorder %s109, %s112
    %p121 = scmp.eq.s32.totalorder %s15, 1
    %p122 = por %p120, %p121
    %p123 = scmp.ne.s32.totalorder %s112, %s113
    %p124 = scmp.eq.s32.totalorder %s15, 0
    %p125 = por %p123, %p124
    %p126 = scmp.ne.s32.totalorder %s112, %s113
    %p127 = scmp.eq.s32.totalorder %s16, 1
    %p128 = por %p126, %p127
    %p130 = scmp.ne.s32.totalorder %s113, %s129
    %p131 = scmp.eq.s32.totalorder %s16, 0
    %p132 = por %p130, %p131
    %p133 = scmp.le.s32.totalorder 1, %s10
    %p134 = scmp.lt.s32.totalorder %s10, 3
    %p135 = pnand %p133, %p134
    %p136 = pneg %p135
    // Predicated region
    $region9: #{down_forward.5} parent=5 // pred_check
      _
    $region10: #{down_forward.5} parent=5 // pred_check_branch
      %138 = sbr.rel (%p135) target = $region12
    $region11: #{down_forward.5} parent=5 // pred_region
      %s139 = ssub.s32 %s10, 1
      // Predicated region
      $region13: #{down_forward.5} parent=11 // pred_check
        %p140 = pneg %p69
      $region14: #{down_forward.5} parent=11 // pred_check_branch
        %142 = sbr.rel (%p140) target = $region16
      $region15: #{down_forward.5} parent=11 // pred_region
        _
      $region16: #{down_forward.5} parent=11 // pred_fallthru
        _
    $region12: #{down_forward.5} parent=5 // pred_fallthru
      _
    %p143 = scmp.lt.s32.totalorder %s10, 2
    // Predicated region
    $region17: #{down_forward.5} parent=5 // pred_check
      %p144 = pneg %p143
    $region18: #{down_forward.5} parent=5 // pred_check_branch
      %146 = sbr.rel (%p144) target = $region20
    $region19: #{down_forward.5} parent=5 // pred_region
      // Predicated region
      $region21: #{down_forward.5} parent=19 // pred_check
        %p147 = pneg %p42
      $region22: #{down_forward.5} parent=19 // pred_check_branch
        %149 = sbr.rel (%p147) target = $region24
      $region23: #{down_forward.5} parent=19 // pred_region
        %p150 = scmp.lt.s32.totalorder %s17, 1
        %s151 = scalar_select %p150, %s17, 1
        %s152 = smul.addr %s151, 20
        %s153 = smul.addr %s152, 4
        %s154 = scalar_lea.vmem %s0, %s153
      $region24: #{down_forward.5} parent=19 // pred_fallthru
        _
    $region20: #{down_forward.5} parent=5 // pred_fallthru
      _
    %p155 = scmp.le.s32.totalorder 1, %s10
    %p156 = scmp.lt.s32.totalorder %s10, 3
    %p157 = pnand %p155, %p156
    %p158 = pneg %p157
    // Predicated region
    $region25: #{down_forward.5} parent=5 // pred_check
      _
    $region26: #{down_forward.5} parent=5 // pred_check_branch
      %160 = sbr.rel (%p157) target = $region28
    $region27: #{down_forward.5} parent=5 // pred_region
      %s161 = ssub.s32 %s10, 1
      %p162 = scmp.lt.s32.totalorder %s19, 1
      %s163 = scalar_select %p162, %s19, 1
      %s164 = smul.addr %s163, 20
      %s165 = smul.addr %s164, 4
      %s166 = scalar_lea.vmem %s0, %s165
      %p167 = pneg %p48
      %p168 = pneg %p45
      %p169 = pneg %p69
      %p170 = pneg %p66
      %p171 = pneg %p97
      %p172 = pneg %p94
      %s173 = smul.u32 8, %s20
      %p174 = scmp.lt.s32.totalorder %s19, 1
      %s175 = scalar_select %p174, %s19, 1
      %p176 = scmp.lt.s32.totalorder %s173, 7
      %s177 = scalar_select %p176, %s173, 7
      %s178 = smul.addr %s175, 8
      %s179 = sadd.s32 %s177, %s178
      %s180 = smul.addr %s179, 4
      %s181 = scalar_lea.vmem %s2, %s180
      %p182 = pneg %p125
      %p183 = pneg %p122
      %p184 = scmp.lt.s32.totalorder %s19, 1
      %s185 = scalar_select %p184, %s19, 1
      %p186 = scmp.lt.s32.totalorder %s20, 0
      %s187 = scalar_select %p186, %s20, 0
      %s188 = smul.addr %s187, 2
      %s189 = smul.addr %s185, 2
      %s190 = sadd.s32 %s188, %s189
      %s191 = scalar_lea.vmem %s3, %s190
      %p192 = scmp.lt.s32.totalorder %s19, 1
      %s193 = scalar_select %p192, %s19, 1
      %s194 = smul.addr %s193, 20
      %s195 = smul.addr %s194, 4
      %s196 = scalar_lea.vmem %s0, %s195
      %s197 = smul.u32 8, %s20
      %p198 = scmp.lt.s32.totalorder %s19, 1
      %s199 = scalar_select %p198, %s19, 1
      %p200 = scmp.lt.s32.totalorder %s197, 7
      %s201 = scalar_select %p200, %s197, 7
      %s202 = smul.addr %s199, 8
      %s203 = sadd.s32 %s201, %s202
      %s204 = smul.addr %s203, 4
      %s205 = scalar_lea.vmem %s2, %s204
      %s206 = smul.u32 8, %s20
      %p207 = scmp.lt.s32.totalorder %s19, 1
      %s208 = scalar_select %p207, %s19, 1
      %p209 = scmp.lt.s32.totalorder %s20, 0
      %s210 = scalar_select %p209, %s20, 0
      %s211 = smul.addr %s210, 2
      %s212 = smul.addr %s208, 2
      %s213 = sadd.s32 %s211, %s212
      %s214 = scalar_lea.vmem %s3, %s213
      %s216 = smul.u32 %s20, 8
      %s217 = smul.u32 %s216, 2
      %s218 = smul.addr %s217, 4
      %s219 = scalar_lea.vmem %s196, %s218
      %v220 = vld [vmem:[%s219] sm:$0xf]
      %v221 = vld [vmem:[%s219 + $0x8] sm:$0xf]
      %v222 = vld [vmem:[%s219 + $0x10] sm:$0xf]
      %v223 = vld [vmem:[%s219 + $0x18] sm:$0xf]
      %v224 = vld [vmem:[%s219 + $0x20] sm:$0xf]
      %v225 = vld [vmem:[%s219 + $0x28] sm:$0xf]
      %v226 = vld [vmem:[%s219 + $0x30] sm:$0xf]
      %v227 = vld [vmem:[%s219 + $0x38] sm:$0xf]
      %v236 = vunpack.c.l.b16 %v220
      %v237 = vunpack.c.l.b16 %v221
      %v238 = vunpack.c.l.b16 %v222
      %v239 = vunpack.c.l.b16 %v223
      %v240 = vunpack.c.l.b16 %v224
      %v241 = vunpack.c.l.b16 %v225
      %v242 = vunpack.c.l.b16 %v226
      %v243 = vunpack.c.l.b16 %v227
      %v244 = vpack.c.b16 %v237, %v236
      %v245 = vpack.c.b16 %v239, %v238
      %v246 = vpack.c.b16 %v241, %v240
      %v247 = vpack.c.b16 %v243, %v242
      %252 = vst [vmem:[#allocation2] sm:$0xff] %v244
      %253 = vst [vmem:[#allocation2 + $0x48] sm:$0xff] %v245
      %254 = vst [vmem:[#allocation2 + $0x90] sm:$0xff] %v246
      %255 = vst [vmem:[#allocation2 + $0xd8] sm:$0xff] %v247
      %v256 = vld [vmem:[%s219] sm:$0xf]
      %v257 = vld [vmem:[%s219 + $0x4] sm:$0x1]
      %v258 = vld [vmem:[%s219 + $0x8] sm:$0xf]
      %v259 = vld [vmem:[%s219 + $0xc] sm:$0x1]
      %v260 = vld [vmem:[%s219 + $0x10] sm:$0xf]
      %v261 = vld [vmem:[%s219 + $0x14] sm:$0x1]
      %v262 = vld [vmem:[%s219 + $0x18] sm:$0xf]
      %v263 = vld [vmem:[%s219 + $0x1c] sm:$0x1]
      %v264 = vld [vmem:[%s219 + $0x20] sm:$0xf]
      %v265 = vld [vmem:[%s219 + $0x24] sm:$0x1]
      %v266 = vld [vmem:[%s219 + $0x28] sm:$0xf]
      %v267 = vld [vmem:[%s219 + $0x2c] sm:$0x1]
      %v268 = vld [vmem:[%s219 + $0x30] sm:$0xf]
      %v269 = vld [vmem:[%s219 + $0x34] sm:$0x1]
      %v270 = vld [vmem:[%s219 + $0x38] sm:$0xf]
      %v271 = vld [vmem:[%s219 + $0x3c] sm:$0x1]
      %vm272 = vsmask.f32 3328
      %vm273 = vsmask.f32 7440
      %vm274 = vmor %vm272, %vm273
      %v276 = vshrl.u32 %v256, 16
      %v278 = vrot.slane %v276, 4
      %v279 = vshll.u32 %v256, 16
      %v281 = vrot.slane %v279, 5
      %v282 = vor.u32 %v278, %v281
      %v283 = vrot.slane %v282, 4
      %v285 = vshll.u32 %v257, 16
      %v287 = vrot.slane %v285, 5
      %v288 = vsel %vm274, %v283, %v287
      %v290 = vshrl.u32 %v258, 16
      %v292 = vrot.slane %v290, 4
      %v293 = vshll.u32 %v258, 16
      %v295 = vrot.slane %v293, 5
      %v296 = vor.u32 %v292, %v295
      %v297 = vrot.slane %v296, 4
      %v299 = vshll.u32 %v259, 16
      %v301 = vrot.slane %v299, 5
      %v302 = vsel %vm274, %v297, %v301
      %v304 = vshrl.u32 %v260, 16
      %v306 = vrot.slane %v304, 4
      %v307 = vshll.u32 %v260, 16
      %v309 = vrot.slane %v307, 5
      %v310 = vor.u32 %v306, %v309
      %v311 = vrot.slane %v310, 4
      %v313 = vshll.u32 %v261, 16
      %v315 = vrot.slane %v313, 5
      %v316 = vsel %vm274, %v311, %v315
      %v318 = vshrl.u32 %v262, 16
      %v320 = vrot.slane %v318, 4
      %v321 = vshll.u32 %v262, 16
      %v323 = vrot.slane %v321, 5
      %v324 = vor.u32 %v320, %v323
      %v325 = vrot.slane %v324, 4
      %v327 = vshll.u32 %v263, 16
      %v329 = vrot.slane %v327, 5
      %v330 = vsel %vm274, %v325, %v329
      %v332 = vshrl.u32 %v264, 16
      %v334 = vrot.slane %v332, 4
      %v335 = vshll.u32 %v264, 16
      %v337 = vrot.slane %v335, 5
      %v338 = vor.u32 %v334, %v337
      %v339 = vrot.slane %v338, 4
      %v341 = vshll.u32 %v265, 16
      %v343 = vrot.slane %v341, 5
      %v344 = vsel %vm274, %v339, %v343
      %v346 = vshrl.u32 %v266, 16
      %v348 = vrot.slane %v346, 4
      %v349 = vshll.u32 %v266, 16
      %v351 = vrot.slane %v349, 5
      %v352 = vor.u32 %v348, %v351
      %v353 = vrot.slane %v352, 4
      %v355 = vshll.u32 %v267, 16
      %v357 = vrot.slane %v355, 5
      %v358 = vsel %vm274, %v353, %v357
      %v360 = vshrl.u32 %v268, 16
      %v362 = vrot.slane %v360, 4
      %v363 = vshll.u32 %v268, 16
      %v365 = vrot.slane %v363, 5
      %v366 = vor.u32 %v362, %v365
      %v367 = vrot.slane %v366, 4
      %v369 = vshll.u32 %v269, 16
      %v371 = vrot.slane %v369, 5
      %v372 = vsel %vm274, %v367, %v371
      %v374 = vshrl.u32 %v270, 16
      %v376 = vrot.slane %v374, 4
      %v377 = vshll.u32 %v270, 16
      %v379 = vrot.slane %v377, 5
      %v380 = vor.u32 %v376, %v379
      %v381 = vrot.slane %v380, 4
      %v383 = vshll.u32 %v271, 16
      %v385 = vrot.slane %v383, 5
      %v386 = vsel %vm274, %v381, %v385
      %v387 = vunpack.c.l.b16 %v288
      %v388 = vunpack.c.l.b16 %v302
      %v389 = vunpack.c.l.b16 %v316
      %v390 = vunpack.c.l.b16 %v330
      %v391 = vunpack.c.l.b16 %v344
      %v392 = vunpack.c.l.b16 %v358
      %v393 = vunpack.c.l.b16 %v372
      %v394 = vunpack.c.l.b16 %v386
      %v395 = vpack.c.b16 %v388, %v387
      %v396 = vpack.c.b16 %v390, %v389
      %v397 = vpack.c.b16 %v392, %v391
      %v398 = vpack.c.b16 %v394, %v393
      %403 = vst [vmem:[#allocation2 + $0x8] sm:$0xff] %v395
      %404 = vst [vmem:[#allocation2 + $0x50] sm:$0xff] %v396
      %405 = vst [vmem:[#allocation2 + $0x98] sm:$0xff] %v397
      %406 = vst [vmem:[#allocation2 + $0xe0] sm:$0xff] %v398
      %v407 = vld [vmem:[%s219] sm:$0xe]
      %v408 = vld [vmem:[%s219 + $0x4] sm:$0x1]
      %v409 = vld [vmem:[%s219 + $0x8] sm:$0xe]
      %v410 = vld [vmem:[%s219 + $0xc] sm:$0x1]
      %v411 = vld [vmem:[%s219 + $0x10] sm:$0xe]
      %v412 = vld [vmem:[%s219 + $0x14] sm:$0x1]
      %v413 = vld [vmem:[%s219 + $0x18] sm:$0xe]
      %v414 = vld [vmem:[%s219 + $0x1c] sm:$0x1]
      %v415 = vld [vmem:[%s219 + $0x20] sm:$0xe]
      %v416 = vld [vmem:[%s219 + $0x24] sm:$0x1]
      %v417 = vld [vmem:[%s219 + $0x28] sm:$0xe]
      %v418 = vld [vmem:[%s219 + $0x2c] sm:$0x1]
      %v419 = vld [vmem:[%s219 + $0x30] sm:$0xe]
      %v420 = vld [vmem:[%s219 + $0x34] sm:$0x1]
      %v421 = vld [vmem:[%s219 + $0x38] sm:$0xe]
      %v422 = vld [vmem:[%s219 + $0x3c] sm:$0x1]
      %vm439 = vcmask 1042432
      %vm440 = vcmask 1046532
      %vm441 = vmor %vm439, %vm440
      %v442 = vrot.slane %v407, 5
      %v443 = vrot.slane %v442, 4
      %v444 = vrot.slane %v408, 5
      %v445 = vsel %vm441, %v443, %v444
      %v446 = vrot.slane %v409, 5
      %v447 = vrot.slane %v446, 4
      %v448 = vrot.slane %v410, 5
      %v449 = vsel %vm441, %v447, %v448
      %v450 = vrot.slane %v411, 5
      %v451 = vrot.slane %v450, 4
      %v452 = vrot.slane %v412, 5
      %v453 = vsel %vm441, %v451, %v452
      %v454 = vrot.slane %v413, 5
      %v455 = vrot.slane %v454, 4
      %v456 = vrot.slane %v414, 5
      %v457 = vsel %vm441, %v455, %v456
      %v458 = vrot.slane %v415, 5
      %v459 = vrot.slane %v458, 4
      %v460 = vrot.slane %v416, 5
      %v461 = vsel %vm441, %v459, %v460
      %v462 = vrot.slane %v417, 5
      %v463 = vrot.slane %v462, 4
      %v464 = vrot.slane %v418, 5
      %v465 = vsel %vm441, %v463, %v464
      %v466 = vrot.slane %v419, 5
      %v467 = vrot.slane %v466, 4
      %v468 = vrot.slane %v420, 5
      %v469 = vsel %vm441, %v467, %v468
      %v470 = vrot.slane %v421, 5
      %v471 = vrot.slane %v470, 4
      %v472 = vrot.slane %v422, 5
      %v473 = vsel %vm441, %v471, %v472
      %v474 = vunpack.c.l.b16 %v445
      %v475 = vunpack.c.l.b16 %v449
      %v476 = vunpack.c.l.b16 %v453
      %v477 = vunpack.c.l.b16 %v457
      %v478 = vunpack.c.l.b16 %v461
      %v479 = vunpack.c.l.b16 %v465
      %v480 = vunpack.c.l.b16 %v469
      %v481 = vunpack.c.l.b16 %v473
      %v482 = vpack.c.b16 %v475, %v474
      %v483 = vpack.c.b16 %v477, %v476
      %v484 = vpack.c.b16 %v479, %v478
      %v485 = vpack.c.b16 %v481, %v480
      %490 = vst [vmem:[#allocation2 + $0x10] sm:$0xff] %v482
      %491 = vst [vmem:[#allocation2 + $0x58] sm:$0xff] %v483
      %492 = vst [vmem:[#allocation2 + $0xa0] sm:$0xff] %v484
      %493 = vst [vmem:[#allocation2 + $0xe8] sm:$0xff] %v485
      %s494 = sadd.s32 %s216, 1
      %s495 = smul.u32 %s494, 2
      %s496 = smul.addr %s495, 4
      %s497 = scalar_lea.vmem %s196, %s496
      %v498 = vld [vmem:[%s497] sm:$0xf]
      %v499 = vld [vmem:[%s497 + $0x8] sm:$0xf]
      %v500 = vld [vmem:[%s497 + $0x10] sm:$0xf]
      %v501 = vld [vmem:[%s497 + $0x18] sm:$0xf]
      %v502 = vld [vmem:[%s497 + $0x20] sm:$0xf]
      %v503 = vld [vmem:[%s497 + $0x28] sm:$0xf]
      %v504 = vld [vmem:[%s497 + $0x30] sm:$0xf]
      %v505 = vld [vmem:[%s497 + $0x38] sm:$0xf]
      %v514 = vunpack.c.l.b16 %v498
      %v515 = vunpack.c.l.b16 %v499
      %v516 = vunpack.c.l.b16 %v500
      %v517 = vunpack.c.l.b16 %v501
      %v518 = vunpack.c.l.b16 %v502
      %v519 = vunpack.c.l.b16 %v503
      %v520 = vunpack.c.l.b16 %v504
      %v521 = vunpack.c.l.b16 %v505
      %v522 = vpack.c.b16 %v515, %v514
      %v523 = vpack.c.b16 %v517, %v516
      %v524 = vpack.c.b16 %v519, %v518
      %v525 = vpack.c.b16 %v521, %v520
      %530 = vst [vmem:[#allocation2 + $0x18] sm:$0xff] %v522
      %531 = vst [vmem:[#allocation2 + $0x60] sm:$0xff] %v523
      %532 = vst [vmem:[#allocation2 + $0xa8] sm:$0xff] %v524
      %533 = vst [vmem:[#allocation2 + $0xf0] sm:$0xff] %v525
      %v534 = vld [vmem:[%s497] sm:$0xf]
      %v535 = vld [vmem:[%s497 + $0x4] sm:$0x1]
      %v536 = vld [vmem:[%s497 + $0x8] sm:$0xf]
      %v537 = vld [vmem:[%s497 + $0xc] sm:$0x1]
      %v538 = vld [vmem:[%s497 + $0x10] sm:$0xf]
      %v539 = vld [vmem:[%s497 + $0x14] sm:$0x1]
      %v540 = vld [vmem:[%s497 + $0x18] sm:$0xf]
      %v541 = vld [vmem:[%s497 + $0x1c] sm:$0x1]
      %v542 = vld [vmem:[%s497 + $0x20] sm:$0xf]
      %v543 = vld [vmem:[%s497 + $0x24] sm:$0x1]
      %v544 = vld [vmem:[%s497 + $0x28] sm:$0xf]
      %v545 = vld [vmem:[%s497 + $0x2c] sm:$0x1]
      %v546 = vld [vmem:[%s497 + $0x30] sm:$0xf]
      %v547 = vld [vmem:[%s497 + $0x34] sm:$0x1]
      %v548 = vld [vmem:[%s497 + $0x38] sm:$0xf]
      %v549 = vld [vmem:[%s497 + $0x3c] sm:$0x1]
      %v551 = vshrl.u32 %v534, 16
      %v553 = vrot.slane %v551, 4
      %v554 = vshll.u32 %v534, 16
      %v556 = vrot.slane %v554, 5
      %v557 = vor.u32 %v553, %v556
      %v558 = vrot.slane %v557, 4
      %v560 = vshll.u32 %v535, 16
      %v562 = vrot.slane %v560, 5
      %v563 = vsel %vm274, %v558, %v562
      %v565 = vshrl.u32 %v536, 16
      %v567 = vrot.slane %v565, 4
      %v568 = vshll.u32 %v536, 16
      %v570 = vrot.slane %v568, 5
      %v571 = vor.u32 %v567, %v570
      %v572 = vrot.slane %v571, 4
      %v574 = vshll.u32 %v537, 16
      %v576 = vrot.slane %v574, 5
      %v577 = vsel %vm274, %v572, %v576
      %v579 = vshrl.u32 %v538, 16
      %v581 = vrot.slane %v579, 4
      %v582 = vshll.u32 %v538, 16
      %v584 = vrot.slane %v582, 5
      %v585 = vor.u32 %v581, %v584
      %v586 = vrot.slane %v585, 4
      %v588 = vshll.u32 %v539, 16
      %v590 = vrot.slane %v588, 5
      %v591 = vsel %vm274, %v586, %v590
      %v593 = vshrl.u32 %v540, 16
      %v595 = vrot.slane %v593, 4
      %v596 = vshll.u32 %v540, 16
      %v598 = vrot.slane %v596, 5
      %v599 = vor.u32 %v595, %v598
      %v600 = vrot.slane %v599, 4
      %v602 = vshll.u32 %v541, 16
      %v604 = vrot.slane %v602, 5
      %v605 = vsel %vm274, %v600, %v604
      %v607 = vshrl.u32 %v542, 16
      %v609 = vrot.slane %v607, 4
      %v610 = vshll.u32 %v542, 16
      %v612 = vrot.slane %v610, 5
      %v613 = vor.u32 %v609, %v612
      %v614 = vrot.slane %v613, 4
      %v616 = vshll.u32 %v543, 16
      %v618 = vrot.slane %v616, 5
      %v619 = vsel %vm274, %v614, %v618
      %v621 = vshrl.u32 %v544, 16
      %v623 = vrot.slane %v621, 4
      %v624 = vshll.u32 %v544, 16
      %v626 = vrot.slane %v624, 5
      %v627 = vor.u32 %v623, %v626
      %v628 = vrot.slane %v627, 4
      %v630 = vshll.u32 %v545, 16
      %v632 = vrot.slane %v630, 5
      %v633 = vsel %vm274, %v628, %v632
      %v635 = vshrl.u32 %v546, 16
      %v637 = vrot.slane %v635, 4
      %v638 = vshll.u32 %v546, 16
      %v640 = vrot.slane %v638, 5
      %v641 = vor.u32 %v637, %v640
      %v642 = vrot.slane %v641, 4
      %v644 = vshll.u32 %v547, 16
      %v646 = vrot.slane %v644, 5
      %v647 = vsel %vm274, %v642, %v646
      %v649 = vshrl.u32 %v548, 16
      %v651 = vrot.slane %v649, 4
      %v652 = vshll.u32 %v548, 16
      %v654 = vrot.slane %v652, 5
      %v655 = vor.u32 %v651, %v654
      %v656 = vrot.slane %v655, 4
      %v658 = vshll.u32 %v549, 16
      %v660 = vrot.slane %v658, 5
      %v661 = vsel %vm274, %v656, %v660
      %v662 = vunpack.c.l.b16 %v563
      %v663 = vunpack.c.l.b16 %v577
      %v664 = vunpack.c.l.b16 %v591
      %v665 = vunpack.c.l.b16 %v605
      %v666 = vunpack.c.l.b16 %v619
      %v667 = vunpack.c.l.b16 %v633
      %v668 = vunpack.c.l.b16 %v647
      %v669 = vunpack.c.l.b16 %v661
      %v670 = vpack.c.b16 %v663, %v662
      %v671 = vpack.c.b16 %v665, %v664
      %v672 = vpack.c.b16 %v667, %v666
      %v673 = vpack.c.b16 %v669, %v668
      %678 = vst [vmem:[#allocation2 + $0x20] sm:$0xff] %v670
      %679 = vst [vmem:[#allocation2 + $0x68] sm:$0xff] %v671
      %680 = vst [vmem:[#allocation2 + $0xb0] sm:$0xff] %v672
      %681 = vst [vmem:[#allocation2 + $0xf8] sm:$0xff] %v673
      %v682 = vld [vmem:[%s497] sm:$0xe]
      %v683 = vld [vmem:[%s497 + $0x4] sm:$0x1]
      %v684 = vld [vmem:[%s497 + $0x8] sm:$0xe]
      %v685 = vld [vmem:[%s497 + $0xc] sm:$0x1]
      %v686 = vld [vmem:[%s497 + $0x10] sm:$0xe]
      %v687 = vld [vmem:[%s497 + $0x14] sm:$0x1]
      %v688 = vld [vmem:[%s497 + $0x18] sm:$0xe]
      %v689 = vld [vmem:[%s497 + $0x1c] sm:$0x1]
      %v690 = vld [vmem:[%s497 + $0x20] sm:$0xe]
      %v691 = vld [vmem:[%s497 + $0x24] sm:$0x1]
      %v692 = vld [vmem:[%s497 + $0x28] sm:$0xe]
      %v693 = vld [vmem:[%s497 + $0x2c] sm:$0x1]
      %v694 = vld [vmem:[%s497 + $0x30] sm:$0xe]
      %v695 = vld [vmem:[%s497 + $0x34] sm:$0x1]
      %v696 = vld [vmem:[%s497 + $0x38] sm:$0xe]
      %v697 = vld [vmem:[%s497 + $0x3c] sm:$0x1]
      %v714 = vrot.slane %v682, 5
      %v715 = vrot.slane %v714, 4
      %v716 = vrot.slane %v683, 5
      %v717 = vsel %vm441, %v715, %v716
      %v718 = vrot.slane %v684, 5
      %v719 = vrot.slane %v718, 4
      %v720 = vrot.slane %v685, 5
      %v721 = vsel %vm441, %v719, %v720
      %v722 = vrot.slane %v686, 5
      %v723 = vrot.slane %v722, 4
      %v724 = vrot.slane %v687, 5
      %v725 = vsel %vm441, %v723, %v724
      %v726 = vrot.slane %v688, 5
      %v727 = vrot.slane %v726, 4
      %v728 = vrot.slane %v689, 5
      %v729 = vsel %vm441, %v727, %v728
      %v730 = vrot.slane %v690, 5
      %v731 = vrot.slane %v730, 4
      %v732 = vrot.slane %v691, 5
      %v733 = vsel %vm441, %v731, %v732
      %v734 = vrot.slane %v692, 5
      %v735 = vrot.slane %v734, 4
      %v736 = vrot.slane %v693, 5
      %v737 = vsel %vm441, %v735, %v736
      %v738 = vrot.slane %v694, 5
      %v739 = vrot.slane %v738, 4
      %v740 = vrot.slane %v695, 5
      %v741 = vsel %vm441, %v739, %v740
      %v742 = vrot.slane %v696, 5
      %v743 = vrot.slane %v742, 4
      %v744 = vrot.slane %v697, 5
      %v745 = vsel %vm441, %v743, %v744
      %v746 = vunpack.c.l.b16 %v717
      %v747 = vunpack.c.l.b16 %v721
      %v748 = vunpack.c.l.b16 %v725
      %v749 = vunpack.c.l.b16 %v729
      %v750 = vunpack.c.l.b16 %v733
      %v751 = vunpack.c.l.b16 %v737
      %v752 = vunpack.c.l.b16 %v741
      %v753 = vunpack.c.l.b16 %v745
      %v754 = vpack.c.b16 %v747, %v746
      %v755 = vpack.c.b16 %v749, %v748
      %v756 = vpack.c.b16 %v751, %v750
      %v757 = vpack.c.b16 %v753, %v752
      %762 = vst [vmem:[#allocation2 + $0x28] sm:$0xff] %v754
      %763 = vst [vmem:[#allocation2 + $0x70] sm:$0xff] %v755
      %764 = vst [vmem:[#allocation2 + $0xb8] sm:$0xff] %v756
      %765 = vst [vmem:[#allocation2 + $0x100] sm:$0xff] %v757
      %s766 = sadd.s32 %s216, 2
      %s767 = smul.u32 %s766, 2
      %s768 = smul.addr %s767, 4
      %s769 = scalar_lea.vmem %s196, %s768
      %v770 = vld [vmem:[%s769] sm:$0xf]
      %v771 = vld [vmem:[%s769 + $0x8] sm:$0xf]
      %v772 = vld [vmem:[%s769 + $0x10] sm:$0xf]
      %v773 = vld [vmem:[%s769 + $0x18] sm:$0xf]
      %v774 = vld [vmem:[%s769 + $0x20] sm:$0xf]
      %v775 = vld [vmem:[%s769 + $0x28] sm:$0xf]
      %v776 = vld [vmem:[%s769 + $0x30] sm:$0xf]
      %v777 = vld [vmem:[%s769 + $0x38] sm:$0xf]
      %v786 = vunpack.c.l.b16 %v770
      %v787 = vunpack.c.l.b16 %v771
      %v788 = vunpack.c.l.b16 %v772
      %v789 = vunpack.c.l.b16 %v773
      %v790 = vunpack.c.l.b16 %v774
      %v791 = vunpack.c.l.b16 %v775
      %v792 = vunpack.c.l.b16 %v776
      %v793 = vunpack.c.l.b16 %v777
      %v794 = vpack.c.b16 %v787, %v786
      %v795 = vpack.c.b16 %v789, %v788
      %v796 = vpack.c.b16 %v791, %v790
      %v797 = vpack.c.b16 %v793, %v792
      %802 = vst [vmem:[#allocation2 + $0x30] sm:$0xff] %v794
      %803 = vst [vmem:[#allocation2 + $0x78] sm:$0xff] %v795
      %804 = vst [vmem:[#allocation2 + $0xc0] sm:$0xff] %v796
      %805 = vst [vmem:[#allocation2 + $0x108] sm:$0xff] %v797
      %v806 = vld [vmem:[%s769] sm:$0xf]
      %v807 = vld [vmem:[%s769 + $0x4] sm:$0x1]
      %v808 = vld [vmem:[%s769 + $0x8] sm:$0xf]
      %v809 = vld [vmem:[%s769 + $0xc] sm:$0x1]
      %v810 = vld [vmem:[%s769 + $0x10] sm:$0xf]
      %v811 = vld [vmem:[%s769 + $0x14] sm:$0x1]
      %v812 = vld [vmem:[%s769 + $0x18] sm:$0xf]
      %v813 = vld [vmem:[%s769 + $0x1c] sm:$0x1]
      %v814 = vld [vmem:[%s769 + $0x20] sm:$0xf]
      %v815 = vld [vmem:[%s769 + $0x24] sm:$0x1]
      %v816 = vld [vmem:[%s769 + $0x28] sm:$0xf]
      %v817 = vld [vmem:[%s769 + $0x2c] sm:$0x1]
      %v818 = vld [vmem:[%s769 + $0x30] sm:$0xf]
      %v819 = vld [vmem:[%s769 + $0x34] sm:$0x1]
      %v820 = vld [vmem:[%s769 + $0x38] sm:$0xf]
      %v821 = vld [vmem:[%s769 + $0x3c] sm:$0x1]
      %v823 = vshrl.u32 %v806, 16
      %v825 = vrot.slane %v823, 4
      %v826 = vshll.u32 %v806, 16
      %v828 = vrot.slane %v826, 5
      %v829 = vor.u32 %v825, %v828
      %v830 = vrot.slane %v829, 4
      %v832 = vshll.u32 %v807, 16
      %v834 = vrot.slane %v832, 5
      %v835 = vsel %vm274, %v830, %v834
      %v837 = vshrl.u32 %v808, 16
      %v839 = vrot.slane %v837, 4
      %v840 = vshll.u32 %v808, 16
      %v842 = vrot.slane %v840, 5
      %v843 = vor.u32 %v839, %v842
      %v844 = vrot.slane %v843, 4
      %v846 = vshll.u32 %v809, 16
      %v848 = vrot.slane %v846, 5
      %v849 = vsel %vm274, %v844, %v848
      %v851 = vshrl.u32 %v810, 16
      %v853 = vrot.slane %v851, 4
      %v854 = vshll.u32 %v810, 16
      %v856 = vrot.slane %v854, 5
      %v857 = vor.u32 %v853, %v856
      %v858 = vrot.slane %v857, 4
      %v860 = vshll.u32 %v811, 16
      %v862 = vrot.slane %v860, 5
      %v863 = vsel %vm274, %v858, %v862
      %v865 = vshrl.u32 %v812, 16
      %v867 = vrot.slane %v865, 4
      %v868 = vshll.u32 %v812, 16
      %v870 = vrot.slane %v868, 5
      %v871 = vor.u32 %v867, %v870
      %v872 = vrot.slane %v871, 4
      %v874 = vshll.u32 %v813, 16
      %v876 = vrot.slane %v874, 5
      %v877 = vsel %vm274, %v872, %v876
      %v879 = vshrl.u32 %v814, 16
      %v881 = vrot.slane %v879, 4
      %v882 = vshll.u32 %v814, 16
      %v884 = vrot.slane %v882, 5
      %v885 = vor.u32 %v881, %v884
      %v886 = vrot.slane %v885, 4
      %v888 = vshll.u32 %v815, 16
      %v890 = vrot.slane %v888, 5
      %v891 = vsel %vm274, %v886, %v890
      %v893 = vshrl.u32 %v816, 16
      %v895 = vrot.slane %v893, 4
      %v896 = vshll.u32 %v816, 16
      %v898 = vrot.slane %v896, 5
      %v899 = vor.u32 %v895, %v898
      %v900 = vrot.slane %v899, 4
      %v902 = vshll.u32 %v817, 16
      %v904 = vrot.slane %v902, 5
      %v905 = vsel %vm274, %v900, %v904
      %v907 = vshrl.u32 %v818, 16
      %v909 = vrot.slane %v907, 4
      %v910 = vshll.u32 %v818, 16
      %v912 = vrot.slane %v910, 5
      %v913 = vor.u32 %v909, %v912
      %v914 = vrot.slane %v913, 4
      %v916 = vshll.u32 %v819, 16
      %v918 = vrot.slane %v916, 5
      %v919 = vsel %vm274, %v914, %v918
      %v921 = vshrl.u32 %v820, 16
      %v923 = vrot.slane %v921, 4
      %v924 = vshll.u32 %v820, 16
      %v926 = vrot.slane %v924, 5
      %v927 = vor.u32 %v923, %v926
      %v928 = vrot.slane %v927, 4
      %v930 = vshll.u32 %v821, 16
      %v932 = vrot.slane %v930, 5
      %v933 = vsel %vm274, %v928, %v932
      %v934 = vunpack.c.l.b16 %v835
      %v935 = vunpack.c.l.b16 %v849
      %v936 = vunpack.c.l.b16 %v863
      %v937 = vunpack.c.l.b16 %v877
      %v938 = vunpack.c.l.b16 %v891
      %v939 = vunpack.c.l.b16 %v905
      %v940 = vunpack.c.l.b16 %v919
      %v941 = vunpack.c.l.b16 %v933
      %v942 = vpack.c.b16 %v935, %v934
      %v943 = vpack.c.b16 %v937, %v936
      %v944 = vpack.c.b16 %v939, %v938
      %v945 = vpack.c.b16 %v941, %v940
      %950 = vst [vmem:[#allocation2 + $0x38] sm:$0xff] %v942
      %951 = vst [vmem:[#allocation2 + $0x80] sm:$0xff] %v943
      %952 = vst [vmem:[#allocation2 + $0xc8] sm:$0xff] %v944
      %953 = vst [vmem:[#allocation2 + $0x110] sm:$0xff] %v945
      %v954 = vld [vmem:[%s769] sm:$0xe]
      %v955 = vld [vmem:[%s769 + $0x4] sm:$0x1]
      %v956 = vld [vmem:[%s769 + $0x8] sm:$0xe]
      %v957 = vld [vmem:[%s769 + $0xc] sm:$0x1]
      %v958 = vld [vmem:[%s769 + $0x10] sm:$0xe]
      %v959 = vld [vmem:[%s769 + $0x14] sm:$0x1]
      %v960 = vld [vmem:[%s769 + $0x18] sm:$0xe]
      %v961 = vld [vmem:[%s769 + $0x1c] sm:$0x1]
      %v962 = vld [vmem:[%s769 + $0x20] sm:$0xe]
      %v963 = vld [vmem:[%s769 + $0x24] sm:$0x1]
      %v964 = vld [vmem:[%s769 + $0x28] sm:$0xe]
      %v965 = vld [vmem:[%s769 + $0x2c] sm:$0x1]
      %v966 = vld [vmem:[%s769 + $0x30] sm:$0xe]
      %v967 = vld [vmem:[%s769 + $0x34] sm:$0x1]
      %v968 = vld [vmem:[%s769 + $0x38] sm:$0xe]
      %v969 = vld [vmem:[%s769 + $0x3c] sm:$0x1]
      %v986 = vrot.slane %v954, 5
      %v987 = vrot.slane %v986, 4
      %v988 = vrot.slane %v955, 5
      %v989 = vsel %vm441, %v987, %v988
      %v990 = vrot.slane %v956, 5
      %v991 = vrot.slane %v990, 4
      %v992 = vrot.slane %v957, 5
      %v993 = vsel %vm441, %v991, %v992
      %v994 = vrot.slane %v958, 5
      %v995 = vrot.slane %v994, 4
      %v996 = vrot.slane %v959, 5
      %v997 = vsel %vm441, %v995, %v996
      %v998 = vrot.slane %v960, 5
      %v999 = vrot.slane %v998, 4
      %v1000 = vrot.slane %v961, 5
      %v1001 = vsel %vm441, %v999, %v1000
      %v1002 = vrot.slane %v962, 5
      %v1003 = vrot.slane %v1002, 4
      %v1004 = vrot.slane %v963, 5
      %v1005 = vsel %vm441, %v1003, %v1004
      %v1006 = vrot.slane %v964, 5
      %v1007 = vrot.slane %v1006, 4
      %v1008 = vrot.slane %v965, 5
      %v1009 = vsel %vm441, %v1007, %v1008
      %v1010 = vrot.slane %v966, 5
      %v1011 = vrot.slane %v1010, 4
      %v1012 = vrot.slane %v967, 5
      %v1013 = vsel %vm441, %v1011, %v1012
      %v1014 = vrot.slane %v968, 5
      %v1015 = vrot.slane %v1014, 4
      %v1016 = vrot.slane %v969, 5
      %v1017 = vsel %vm441, %v1015, %v1016
      %v1018 = vunpack.c.l.b16 %v989
      %v1019 = vunpack.c.l.b16 %v993
      %v1020 = vunpack.c.l.b16 %v997
      %v1021 = vunpack.c.l.b16 %v1001
      %v1022 = vunpack.c.l.b16 %v1005
      %v1023 = vunpack.c.l.b16 %v1009
      %v1024 = vunpack.c.l.b16 %v1013
      %v1025 = vunpack.c.l.b16 %v1017
      %v1026 = vpack.c.b16 %v1019, %v1018
      %v1027 = vpack.c.b16 %v1021, %v1020
      %v1028 = vpack.c.b16 %v1023, %v1022
      %v1029 = vpack.c.b16 %v1025, %v1024
      %1034 = vst [vmem:[#allocation2 + $0x40] sm:$0xff] %v1026
      %1035 = vst [vmem:[#allocation2 + $0x88] sm:$0xff] %v1027
      %1036 = vst [vmem:[#allocation2 + $0xd0] sm:$0xff] %v1028
      %1037 = vst [vmem:[#allocation2 + $0x118] sm:$0xff] %v1029
      %v1038 = vld [vmem:[#allocation2] sm:$0xff]
      %v1039 = vld [vmem:[#allocation2 + $0x8] sm:$0xff]
      %v1040 = vld [vmem:[#allocation2 + $0x10] sm:$0xff]
      %v1041 = vld [vmem:[#allocation2 + $0x18] sm:$0xff]
      %v1042 = vld [vmem:[#allocation2 + $0x20] sm:$0xff]
      %v1043 = vld [vmem:[#allocation2 + $0x28] sm:$0xff]
      %v1044 = vld [vmem:[#allocation2 + $0x30] sm:$0xff]
      %v1045 = vld [vmem:[#allocation2 + $0x38] sm:$0xff]
      %v1046 = vld [vmem:[#allocation2 + $0x40] sm:$0xff]
      %v1047 = vld [vmem:[#allocation2 + $0x48] sm:$0xff]
      %v1048 = vld [vmem:[#allocation2 + $0x50] sm:$0xff]
      %v1049 = vld [vmem:[#allocation2 + $0x58] sm:$0xff]
      %v1050 = vld [vmem:[#allocation2 + $0x60] sm:$0xff]
      %v1051 = vld [vmem:[#allocation2 + $0x68] sm:$0xff]
      %v1052 = vld [vmem:[#allocation2 + $0x70] sm:$0xff]
      %v1053 = vld [vmem:[#allocation2 + $0x78] sm:$0xff]
      %v1054 = vld [vmem:[#allocation2 + $0x80] sm:$0xff]
      %v1055 = vld [vmem:[#allocation2 + $0x88] sm:$0xff]
      %v1056 = vld [vmem:[#allocation2 + $0x90] sm:$0xff]
      %v1057 = vld [vmem:[#allocation2 + $0x98] sm:$0xff]
      %v1058 = vld [vmem:[#allocation2 + $0xa0] sm:$0xff]
      %v1059 = vld [vmem:[#allocation2 + $0xa8] sm:$0xff]
      %v1060 = vld [vmem:[#allocation2 + $0xb0] sm:$0xff]
      %v1061 = vld [vmem:[#allocation2 + $0xb8] sm:$0xff]
      %v1062 = vld [vmem:[#allocation2 + $0xc0] sm:$0xff]
      %v1063 = vld [vmem:[#allocation2 + $0xc8] sm:$0xff]
      %v1064 = vld [vmem:[#allocation2 + $0xd0] sm:$0xff]
      %v1065 = vld [vmem:[#allocation2 + $0xd8] sm:$0xff]
      %v1066 = vld [vmem:[#allocation2 + $0xe0] sm:$0xff]
      %v1067 = vld [vmem:[#allocation2 + $0xe8] sm:$0xff]
      %v1068 = vld [vmem:[#allocation2 + $0xf0] sm:$0xff]
      %v1069 = vld [vmem:[#allocation2 + $0xf8] sm:$0xff]
      %v1070 = vld [vmem:[#allocation2 + $0x100] sm:$0xff]
      %v1071 = vld [vmem:[#allocation2 + $0x108] sm:$0xff]
      %v1072 = vld [vmem:[#allocation2 + $0x110] sm:$0xff]
      %v1073 = vld [vmem:[#allocation2 + $0x118] sm:$0xff]
      %v1074 = vld [vmem:[%s1] sm:$0xf]
      %v1075 = vld [vmem:[%s1 + $0x4] sm:$0xf]
      %v1076 = vld [vmem:[%s1 + $0x8] sm:$0xf]
      %v1077 = vld [vmem:[%s1 + $0xc] sm:$0xf]
      %v1078 = vld [vmem:[%s1 + $0x10] sm:$0xf]
      %v1079 = vld [vmem:[%s1 + $0x14] sm:$0xf]
      %v1080 = vld [vmem:[%s1 + $0x18] sm:$0xf]
      %v1081 = vld [vmem:[%s1 + $0x1c] sm:$0xf]
      %v1082 = vld [vmem:[%s1 + $0x20] sm:$0xf]
      %v1083 = vld [vmem:[%s1 + $0x24] sm:$0xf]
      %v1084 = vld [vmem:[%s1 + $0x28] sm:$0xf]
      %v1085 = vld [vmem:[%s1 + $0x2c] sm:$0xf]
      %v1086 = vld [vmem:[%s1 + $0x30] sm:$0xf]
      %v1087 = vld [vmem:[%s1 + $0x34] sm:$0xf]
      %v1088 = vld [vmem:[%s1 + $0x38] sm:$0xf]
      %v1089 = vld [vmem:[%s1 + $0x3c] sm:$0xf]
      %v1090 = vld [vmem:[%s1 + $0x40] sm:$0xf]
      %v1091 = vld [vmem:[%s1 + $0x44] sm:$0xf]
      %v1092 = vld [vmem:[%s1 + $0x48] sm:$0xf]
      %v1093 = vld [vmem:[%s1 + $0x4c] sm:$0xf]
      %v1094 = vld [vmem:[%s1 + $0x50] sm:$0xf]
      %v1095 = vld [vmem:[%s1 + $0x54] sm:$0xf]
      %v1096 = vld [vmem:[%s1 + $0x58] sm:$0xf]
      %v1097 = vld [vmem:[%s1 + $0x5c] sm:$0xf]
      %v1098 = vld [vmem:[%s1 + $0x60] sm:$0xf]
      %v1099 = vld [vmem:[%s1 + $0x64] sm:$0xf]
      %v1100 = vld [vmem:[%s1 + $0x68] sm:$0xf]
      %v1101 = vld [vmem:[%s1 + $0x6c] sm:$0xf]
      %v1102 = vld [vmem:[%s1 + $0x70] sm:$0xf]
      %v1103 = vld [vmem:[%s1 + $0x74] sm:$0xf]
      %v1104 = vld [vmem:[%s1 + $0x78] sm:$0xf]
      %v1105 = vld [vmem:[%s1 + $0x7c] sm:$0xf]
      %v1106 = vld [vmem:[%s1 + $0x80] sm:$0xf]
      %v1107 = vld [vmem:[%s1 + $0x84] sm:$0xf]
      %v1108 = vld [vmem:[%s1 + $0x88] sm:$0xf]
      %v1109 = vld [vmem:[%s1 + $0x8c] sm:$0xf]
      %v1110 = vld [vmem:[%s1 + $0x90] sm:$0xf]
      %v1111 = vld [vmem:[%s1 + $0x94] sm:$0xf]
      %v1112 = vld [vmem:[%s1 + $0x98] sm:$0xf]
      %v1113 = vld [vmem:[%s1 + $0x9c] sm:$0xf]
      %v1114 = vld [vmem:[%s1 + $0xa0] sm:$0xf]
      %v1115 = vld [vmem:[%s1 + $0xa4] sm:$0xf]
      %v1116 = vld [vmem:[%s1 + $0xa8] sm:$0xf]
      %v1117 = vld [vmem:[%s1 + $0xac] sm:$0xf]
      %v1118 = vld [vmem:[%s1 + $0xb0] sm:$0xf]
      %v1119 = vld [vmem:[%s1 + $0xb4] sm:$0xf]
      %v1120 = vld [vmem:[%s1 + $0xb8] sm:$0xf]
      %v1121 = vld [vmem:[%s1 + $0xbc] sm:$0xf]
      %v1122 = vld [vmem:[%s1 + $0xc0] sm:$0xf]
      %v1123 = vld [vmem:[%s1 + $0xc4] sm:$0xf]
      %v1124 = vld [vmem:[%s1 + $0xc8] sm:$0xf]
      %v1125 = vld [vmem:[%s1 + $0xcc] sm:$0xf]
      %v1126 = vld [vmem:[%s1 + $0xd0] sm:$0xf]
      %v1127 = vld [vmem:[%s1 + $0xd4] sm:$0xf]
      %v1128 = vld [vmem:[%s1 + $0xd8] sm:$0xf]
      %v1129 = vld [vmem:[%s1 + $0xdc] sm:$0xf]
      %v1130 = vld [vmem:[%s1 + $0xe0] sm:$0xf]
      %v1131 = vld [vmem:[%s1 + $0xe4] sm:$0xf]
      %v1132 = vld [vmem:[%s1 + $0xe8] sm:$0xf]
      %v1133 = vld [vmem:[%s1 + $0xec] sm:$0xf]
      %v1134 = vld [vmem:[%s1 + $0xf0] sm:$0xf]
      %v1135 = vld [vmem:[%s1 + $0xf4] sm:$0xf]
      %v1136 = vld [vmem:[%s1 + $0xf8] sm:$0xf]
      %v1137 = vld [vmem:[%s1 + $0xfc] sm:$0xf]
      %v1138 = vld [vmem:[%s1 + $0x100] sm:$0xf]
      %v1139 = vld [vmem:[%s1 + $0x104] sm:$0xf]
      %v1140 = vld [vmem:[%s1 + $0x108] sm:$0xf]
      %v1141 = vld [vmem:[%s1 + $0x10c] sm:$0xf]
      %v1142 = vld [vmem:[%s1 + $0x110] sm:$0xf]
      %v1143 = vld [vmem:[%s1 + $0x114] sm:$0xf]
      %v1144 = vld [vmem:[%s1 + $0x118] sm:$0xf]
      %v1145 = vld [vmem:[%s1 + $0x11c] sm:$0xf]
      %v1146 = vld [vmem:[%s1 + $0x120] sm:$0xf]
      %v1147 = vld [vmem:[%s1 + $0x124] sm:$0xf]
      %v1148 = vld [vmem:[%s1 + $0x128] sm:$0xf]
      %v1149 = vld [vmem:[%s1 + $0x12c] sm:$0xf]
      %v1150 = vld [vmem:[%s1 + $0x130] sm:$0xf]
      %v1151 = vld [vmem:[%s1 + $0x134] sm:$0xf]
      %v1152 = vld [vmem:[%s1 + $0x138] sm:$0xf]
      %v1153 = vld [vmem:[%s1 + $0x13c] sm:$0xf]
      %v1154 = vld [vmem:[%s1 + $0x140] sm:$0xf]
      %v1155 = vld [vmem:[%s1 + $0x144] sm:$0xf]
      %v1156 = vld [vmem:[%s1 + $0x148] sm:$0xf]
      %v1157 = vld [vmem:[%s1 + $0x14c] sm:$0xf]
      %v1158 = vld [vmem:[%s1 + $0x150] sm:$0xf]
      %v1159 = vld [vmem:[%s1 + $0x154] sm:$0xf]
      %v1160 = vld [vmem:[%s1 + $0x158] sm:$0xf]
      %v1161 = vld [vmem:[%s1 + $0x15c] sm:$0xf]
      %v1162 = vld [vmem:[%s1 + $0x160] sm:$0xf]
      %v1163 = vld [vmem:[%s1 + $0x164] sm:$0xf]
      %v1164 = vld [vmem:[%s1 + $0x168] sm:$0xf]
      %v1165 = vld [vmem:[%s1 + $0x16c] sm:$0xf]
      %v1166 = vld [vmem:[%s1 + $0x170] sm:$0xf]
      %v1167 = vld [vmem:[%s1 + $0x174] sm:$0xf]
      %v1168 = vld [vmem:[%s1 + $0x178] sm:$0xf]
      %v1169 = vld [vmem:[%s1 + $0x17c] sm:$0xf]
      %v1170 = vld [vmem:[%s1 + $0x180] sm:$0xf]
      %v1171 = vld [vmem:[%s1 + $0x184] sm:$0xf]
      %v1172 = vld [vmem:[%s1 + $0x188] sm:$0xf]
      %v1173 = vld [vmem:[%s1 + $0x18c] sm:$0xf]
      %v1174 = vld [vmem:[%s1 + $0x190] sm:$0xf]
      %v1175 = vld [vmem:[%s1 + $0x194] sm:$0xf]
      %v1176 = vld [vmem:[%s1 + $0x198] sm:$0xf]
      %v1177 = vld [vmem:[%s1 + $0x19c] sm:$0xf]
      %v1178 = vld [vmem:[%s1 + $0x1a0] sm:$0xf]
      %v1179 = vld [vmem:[%s1 + $0x1a4] sm:$0xf]
      %v1180 = vld [vmem:[%s1 + $0x1a8] sm:$0xf]
      %v1181 = vld [vmem:[%s1 + $0x1ac] sm:$0xf]
      %v1182 = vld [vmem:[%s1 + $0x1b0] sm:$0xf]
      %v1183 = vld [vmem:[%s1 + $0x1b4] sm:$0xf]
      %v1184 = vld [vmem:[%s1 + $0x1b8] sm:$0xf]
      %v1185 = vld [vmem:[%s1 + $0x1bc] sm:$0xf]
      %v1186 = vld [vmem:[%s1 + $0x1c0] sm:$0xf]
      %v1187 = vld [vmem:[%s1 + $0x1c4] sm:$0xf]
      %v1188 = vld [vmem:[%s1 + $0x1c8] sm:$0xf]
      %v1189 = vld [vmem:[%s1 + $0x1cc] sm:$0xf]
      %v1190 = vld [vmem:[%s1 + $0x1d0] sm:$0xf]
      %v1191 = vld [vmem:[%s1 + $0x1d4] sm:$0xf]
      %v1192 = vld [vmem:[%s1 + $0x1d8] sm:$0xf]
      %v1193 = vld [vmem:[%s1 + $0x1dc] sm:$0xf]
      %v1194 = vld [vmem:[%s1 + $0x1e0] sm:$0xf]
      %v1195 = vld [vmem:[%s1 + $0x1e4] sm:$0xf]
      %v1196 = vld [vmem:[%s1 + $0x1e8] sm:$0xf]
      %v1197 = vld [vmem:[%s1 + $0x1ec] sm:$0xf]
      %v1198 = vld [vmem:[%s1 + $0x1f0] sm:$0xf]
      %v1199 = vld [vmem:[%s1 + $0x1f4] sm:$0xf]
      %v1200 = vld [vmem:[%s1 + $0x1f8] sm:$0xf]
      %v1201 = vld [vmem:[%s1 + $0x1fc] sm:$0xf]
      %v1202 = vld [vmem:[%s1 + $0x200] sm:$0xf]
      %v1203 = vld [vmem:[%s1 + $0x204] sm:$0xf]
      %v1204 = vld [vmem:[%s1 + $0x208] sm:$0xf]
      %v1205 = vld [vmem:[%s1 + $0x20c] sm:$0xf]
      %v1206 = vld [vmem:[%s1 + $0x210] sm:$0xf]
      %v1207 = vld [vmem:[%s1 + $0x214] sm:$0xf]
      %v1208 = vld [vmem:[%s1 + $0x218] sm:$0xf]
      %v1209 = vld [vmem:[%s1 + $0x21c] sm:$0xf]
      %v1210 = vld [vmem:[%s1 + $0x220] sm:$0xf]
      %v1211 = vld [vmem:[%s1 + $0x224] sm:$0xf]
      %v1212 = vld [vmem:[%s1 + $0x228] sm:$0xf]
      %v1213 = vld [vmem:[%s1 + $0x22c] sm:$0xf]
      %v1214 = vld [vmem:[%s1 + $0x230] sm:$0xf]
      %v1215 = vld [vmem:[%s1 + $0x234] sm:$0xf]
      %v1216 = vld [vmem:[%s1 + $0x238] sm:$0xf]
      %v1217 = vld [vmem:[%s1 + $0x23c] sm:$0xf]
      %v1362 = vunpack.c.l.b16 %v1074
      %v1363 = vunpack.c.l.b16 %v1075
      %v1364 = vunpack.c.l.b16 %v1076
      %v1365 = vunpack.c.l.b16 %v1077
      %v1366 = vunpack.c.l.b16 %v1078
      %v1367 = vunpack.c.l.b16 %v1079
      %v1368 = vunpack.c.l.b16 %v1080
      %v1369 = vunpack.c.l.b16 %v1081
      %v1370 = vunpack.c.l.b16 %v1082
      %v1371 = vunpack.c.l.b16 %v1083
      %v1372 = vunpack.c.l.b16 %v1084
      %v1373 = vunpack.c.l.b16 %v1085
      %v1374 = vunpack.c.l.b16 %v1086
      %v1375 = vunpack.c.l.b16 %v1087
      %v1376 = vunpack.c.l.b16 %v1088
      %v1377 = vunpack.c.l.b16 %v1089
      %v1378 = vunpack.c.l.b16 %v1090
      %v1379 = vunpack.c.l.b16 %v1091
      %v1380 = vunpack.c.l.b16 %v1092
      %v1381 = vunpack.c.l.b16 %v1093
      %v1382 = vunpack.c.l.b16 %v1094
      %v1383 = vunpack.c.l.b16 %v1095
      %v1384 = vunpack.c.l.b16 %v1096
      %v1385 = vunpack.c.l.b16 %v1097
      %v1386 = vunpack.c.l.b16 %v1098
      %v1387 = vunpack.c.l.b16 %v1099
      %v1388 = vunpack.c.l.b16 %v1100
      %v1389 = vunpack.c.l.b16 %v1101
      %v1390 = vunpack.c.l.b16 %v1102
      %v1391 = vunpack.c.l.b16 %v1103
      %v1392 = vunpack.c.l.b16 %v1104
      %v1393 = vunpack.c.l.b16 %v1105
      %v1394 = vunpack.c.l.b16 %v1106
      %v1395 = vunpack.c.l.b16 %v1107
      %v1396 = vunpack.c.l.b16 %v1108
      %v1397 = vunpack.c.l.b16 %v1109
      %v1398 = vunpack.c.l.b16 %v1110
      %v1399 = vunpack.c.l.b16 %v1111
      %v1400 = vunpack.c.l.b16 %v1112
      %v1401 = vunpack.c.l.b16 %v1113
      %v1402 = vunpack.c.l.b16 %v1114
      %v1403 = vunpack.c.l.b16 %v1115
      %v1404 = vunpack.c.l.b16 %v1116
      %v1405 = vunpack.c.l.b16 %v1117
      %v1406 = vunpack.c.l.b16 %v1118
      %v1407 = vunpack.c.l.b16 %v1119
      %v1408 = vunpack.c.l.b16 %v1120
      %v1409 = vunpack.c.l.b16 %v1121
      %v1410 = vunpack.c.l.b16 %v1122
      %v1411 = vunpack.c.l.b16 %v1123
      %v1412 = vunpack.c.l.b16 %v1124
      %v1413 = vunpack.c.l.b16 %v1125
      %v1414 = vunpack.c.l.b16 %v1126
      %v1415 = vunpack.c.l.b16 %v1127
      %v1416 = vunpack.c.l.b16 %v1128
      %v1417 = vunpack.c.l.b16 %v1129
      %v1418 = vunpack.c.l.b16 %v1130
      %v1419 = vunpack.c.l.b16 %v1131
      %v1420 = vunpack.c.l.b16 %v1132
      %v1421 = vunpack.c.l.b16 %v1133
      %v1422 = vunpack.c.l.b16 %v1134
      %v1423 = vunpack.c.l.b16 %v1135
      %v1424 = vunpack.c.l.b16 %v1136
      %v1425 = vunpack.c.l.b16 %v1137
      %v1426 = vunpack.c.l.b16 %v1138
      %v1427 = vunpack.c.l.b16 %v1139
      %v1428 = vunpack.c.l.b16 %v1140
      %v1429 = vunpack.c.l.b16 %v1141
      %v1430 = vunpack.c.l.b16 %v1142
      %v1431 = vunpack.c.l.b16 %v1143
      %v1432 = vunpack.c.l.b16 %v1144
      %v1433 = vunpack.c.l.b16 %v1145
      %v1434 = vunpack.c.l.b16 %v1146
      %v1435 = vunpack.c.l.b16 %v1147
      %v1436 = vunpack.c.l.b16 %v1148
      %v1437 = vunpack.c.l.b16 %v1149
      %v1438 = vunpack.c.l.b16 %v1150
      %v1439 = vunpack.c.l.b16 %v1151
      %v1440 = vunpack.c.l.b16 %v1152
      %v1441 = vunpack.c.l.b16 %v1153
      %v1442 = vunpack.c.l.b16 %v1154
      %v1443 = vunpack.c.l.b16 %v1155
      %v1444 = vunpack.c.l.b16 %v1156
      %v1445 = vunpack.c.l.b16 %v1157
      %v1446 = vunpack.c.l.b16 %v1158
      %v1447 = vunpack.c.l.b16 %v1159
      %v1448 = vunpack.c.l.b16 %v1160
      %v1449 = vunpack.c.l.b16 %v1161
      %v1450 = vunpack.c.l.b16 %v1162
      %v1451 = vunpack.c.l.b16 %v1163
      %v1452 = vunpack.c.l.b16 %v1164
      %v1453 = vunpack.c.l.b16 %v1165
      %v1454 = vunpack.c.l.b16 %v1166
      %v1455 = vunpack.c.l.b16 %v1167
      %v1456 = vunpack.c.l.b16 %v1168
      %v1457 = vunpack.c.l.b16 %v1169
      %v1458 = vunpack.c.l.b16 %v1170
      %v1459 = vunpack.c.l.b16 %v1171
      %v1460 = vunpack.c.l.b16 %v1172
      %v1461 = vunpack.c.l.b16 %v1173
      %v1462 = vunpack.c.l.b16 %v1174
      %v1463 = vunpack.c.l.b16 %v1175
      %v1464 = vunpack.c.l.b16 %v1176
      %v1465 = vunpack.c.l.b16 %v1177
      %v1466 = vunpack.c.l.b16 %v1178
      %v1467 = vunpack.c.l.b16 %v1179
      %v1468 = vunpack.c.l.b16 %v1180
      %v1469 = vunpack.c.l.b16 %v1181
      %v1470 = vunpack.c.l.b16 %v1182
      %v1471 = vunpack.c.l.b16 %v1183
      %v1472 = vunpack.c.l.b16 %v1184
      %v1473 = vunpack.c.l.b16 %v1185
      %v1474 = vunpack.c.l.b16 %v1186
      %v1475 = vunpack.c.l.b16 %v1187
      %v1476 = vunpack.c.l.b16 %v1188
      %v1477 = vunpack.c.l.b16 %v1189
      %v1478 = vunpack.c.l.b16 %v1190
      %v1479 = vunpack.c.l.b16 %v1191
      %v1480 = vunpack.c.l.b16 %v1192
      %v1481 = vunpack.c.l.b16 %v1193
      %v1482 = vunpack.c.l.b16 %v1194
      %v1483 = vunpack.c.l.b16 %v1195
      %v1484 = vunpack.c.l.b16 %v1196
      %v1485 = vunpack.c.l.b16 %v1197
      %v1486 = vunpack.c.l.b16 %v1198
      %v1487 = vunpack.c.l.b16 %v1199
      %v1488 = vunpack.c.l.b16 %v1200
      %v1489 = vunpack.c.l.b16 %v1201
      %v1490 = vunpack.c.l.b16 %v1202
      %v1491 = vunpack.c.l.b16 %v1203
      %v1492 = vunpack.c.l.b16 %v1204
      %v1493 = vunpack.c.l.b16 %v1205
      %v1494 = vunpack.c.l.b16 %v1206
      %v1495 = vunpack.c.l.b16 %v1207
      %v1496 = vunpack.c.l.b16 %v1208
      %v1497 = vunpack.c.l.b16 %v1209
      %v1498 = vunpack.c.l.b16 %v1210
      %v1499 = vunpack.c.l.b16 %v1211
      %v1500 = vunpack.c.l.b16 %v1212
      %v1501 = vunpack.c.l.b16 %v1213
      %v1502 = vunpack.c.l.b16 %v1214
      %v1503 = vunpack.c.l.b16 %v1215
      %v1504 = vunpack.c.l.b16 %v1216
      %v1505 = vunpack.c.l.b16 %v1217
      %v1506 = vpack.c.b16 %v1363, %v1362
      %v1507 = vpack.c.b16 %v1365, %v1364
      %v1508 = vpack.c.b16 %v1367, %v1366
      %v1509 = vpack.c.b16 %v1369, %v1368
      %v1510 = vpack.c.b16 %v1371, %v1370
      %v1511 = vpack.c.b16 %v1373, %v1372
      %v1512 = vpack.c.b16 %v1375, %v1374
      %v1513 = vpack.c.b16 %v1377, %v1376
      %v1514 = vpack.c.b16 %v1379, %v1378
      %v1515 = vpack.c.b16 %v1381, %v1380
      %v1516 = vpack.c.b16 %v1383, %v1382
      %v1517 = vpack.c.b16 %v1385, %v1384
      %v1518 = vpack.c.b16 %v1387, %v1386
      %v1519 = vpack.c.b16 %v1389, %v1388
      %v1520 = vpack.c.b16 %v1391, %v1390
      %v1521 = vpack.c.b16 %v1393, %v1392
      %v1522 = vpack.c.b16 %v1395, %v1394
      %v1523 = vpack.c.b16 %v1397, %v1396
      %v1524 = vpack.c.b16 %v1399, %v1398
      %v1525 = vpack.c.b16 %v1401, %v1400
      %v1526 = vpack.c.b16 %v1403, %v1402
      %v1527 = vpack.c.b16 %v1405, %v1404
      %v1528 = vpack.c.b16 %v1407, %v1406
      %v1529 = vpack.c.b16 %v1409, %v1408
      %v1530 = vpack.c.b16 %v1411, %v1410
      %v1531 = vpack.c.b16 %v1413, %v1412
      %v1532 = vpack.c.b16 %v1415, %v1414
      %v1533 = vpack.c.b16 %v1417, %v1416
      %v1534 = vpack.c.b16 %v1419, %v1418
      %v1535 = vpack.c.b16 %v1421, %v1420
      %v1536 = vpack.c.b16 %v1423, %v1422
      %v1537 = vpack.c.b16 %v1425, %v1424
      %v1538 = vpack.c.b16 %v1427, %v1426
      %v1539 = vpack.c.b16 %v1429, %v1428
      %v1540 = vpack.c.b16 %v1431, %v1430
      %v1541 = vpack.c.b16 %v1433, %v1432
      %v1542 = vpack.c.b16 %v1435, %v1434
      %v1543 = vpack.c.b16 %v1437, %v1436
      %v1544 = vpack.c.b16 %v1439, %v1438
      %v1545 = vpack.c.b16 %v1441, %v1440
      %v1546 = vpack.c.b16 %v1443, %v1442
      %v1547 = vpack.c.b16 %v1445, %v1444
      %v1548 = vpack.c.b16 %v1447, %v1446
      %v1549 = vpack.c.b16 %v1449, %v1448
      %v1550 = vpack.c.b16 %v1451, %v1450
      %v1551 = vpack.c.b16 %v1453, %v1452
      %v1552 = vpack.c.b16 %v1455, %v1454
      %v1553 = vpack.c.b16 %v1457, %v1456
      %v1554 = vpack.c.b16 %v1459, %v1458
      %v1555 = vpack.c.b16 %v1461, %v1460
      %v1556 = vpack.c.b16 %v1463, %v1462
      %v1557 = vpack.c.b16 %v1465, %v1464
      %v1558 = vpack.c.b16 %v1467, %v1466
      %v1559 = vpack.c.b16 %v1469, %v1468
      %v1560 = vpack.c.b16 %v1471, %v1470
      %v1561 = vpack.c.b16 %v1473, %v1472
      %v1562 = vpack.c.b16 %v1475, %v1474
      %v1563 = vpack.c.b16 %v1477, %v1476
      %v1564 = vpack.c.b16 %v1479, %v1478
      %v1565 = vpack.c.b16 %v1481, %v1480
      %v1566 = vpack.c.b16 %v1483, %v1482
      %v1567 = vpack.c.b16 %v1485, %v1484
      %v1568 = vpack.c.b16 %v1487, %v1486
      %v1569 = vpack.c.b16 %v1489, %v1488
      %v1570 = vpack.c.b16 %v1491, %v1490
      %v1571 = vpack.c.b16 %v1493, %v1492
      %v1572 = vpack.c.b16 %v1495, %v1494
      %v1573 = vpack.c.b16 %v1497, %v1496
      %v1574 = vpack.c.b16 %v1499, %v1498
      %v1575 = vpack.c.b16 %v1501, %v1500
      %v1576 = vpack.c.b16 %v1503, %v1502
      %v1577 = vpack.c.b16 %v1505, %v1504
      %1650 = vmatprep.subr.bf16.mxu0 0
      %1651 = vmatpush1.bf16.msra.mxu0 %v1506
      %1652 = vmatprep.subr.bf16.mxu0 0
      %1653 = vmatpush1.bf16.msra.mxu0 %v1507
      %1654 = vmatprep.subr.bf16.mxu0 0
      %1655 = vmatpush1.bf16.msra.mxu0 %v1508
      %1656 = vmatprep.subr.bf16.mxu0 0
      %1657 = vmatpush1.bf16.msra.mxu0 %v1509
      %1658 = vmatprep.subr.bf16.mxu0 0
      %1659 = vmatpush1.bf16.msra.mxu0 %v1510
      %1660 = vmatprep.subr.bf16.mxu0 0
      %1661 = vmatpush1.bf16.msra.mxu0 %v1511
      %1662 = vmatprep.subr.bf16.mxu0 0
      %1663 = vmatpush1.bf16.msra.mxu0 %v1512
      %1664 = vmatprep.subr.bf16.mxu0 0
      %1665 = vmatpush1.bf16.msra.mxu0 %v1513
      %1666 = vmatprep.subr.bf16.mxu0 0
      %1667 = vmatpush1.bf16.msra.mxu0 %v1514
      %1668 = vmatprep.subr.bf16.mxu0 0
      %1669 = vmatpush1.bf16.msra.mxu0 %v1515
      %1670 = vmatprep.subr.bf16.mxu0 0
      %1671 = vmatpush1.bf16.msra.mxu0 %v1516
      %1672 = vmatprep.subr.bf16.mxu0 0
      %1673 = vmatpush1.bf16.msra.mxu0 %v1517
      %1674 = vmatprep.subr.bf16.mxu0 0
      %1675 = vmatpush1.bf16.msra.mxu0 %v1518
      %1676 = vmatprep.subr.bf16.mxu0 0
      %1677 = vmatpush1.bf16.msra.mxu0 %v1519
      %1678 = vmatprep.subr.bf16.mxu0 0
      %1679 = vmatpush1.bf16.msra.mxu0 %v1520
      %1680 = vmatprep.subr.bf16.mxu0 0
      %1681 = vmatpush1.bf16.msra.mxu0 %v1521
      %1682 = vmatprep.mubr.bf16.mxu0 %v1039
      %1683 = vmatmul.mubr.bf16.gmra.mrb[0].mxu0 %v1038
      %v1684 = vpop.f32.mrb[0].mxu0
      %v1685 = vadd.f32 0.0, %v1684
      %v1686 = vpop.f32.mrb[0].mxu0
      %v1687 = vpop.f32.mrb[0].mxu0
      %v1688 = vadd.f32 0.0, %v1687
      %v1689 = vpop.f32.mrb[0].mxu0
      %1690 = vmatprep.mubr.bf16.mxu0 %v1048
      %1691 = vmatmul.mubr.bf16.gmra.mrb[0].mxu0 %v1047
      %v1692 = vpop.f32.mrb[0].mxu0
      %v1693 = vadd.f32 0.0, %v1692
      %v1694 = vpop.f32.mrb[0].mxu0
      %v1695 = vpop.f32.mrb[0].mxu0
      %v1696 = vadd.f32 0.0, %v1695
      %v1697 = vpop.f32.mrb[0].mxu0
      %1698 = vmatprep.mubr.bf16.mxu0 %v1057
      %1699 = vmatmul.mubr.bf16.gmra.mrb[0].mxu0 %v1056
      %v1700 = vpop.f32.mrb[0].mxu0
      %v1701 = vadd.f32 0.0, %v1700
      %v1702 = vpop.f32.mrb[0].mxu0
      %v1703 = vpop.f32.mrb[0].mxu0
      %v1704 = vadd.f32 0.0, %v1703
      %v1705 = vpop.f32.mrb[0].mxu0
      %1706 = vmatprep.mubr.bf16.mxu0 %v1066
      %1707 = vmatmul.mubr.bf16.gmra.mrb[0].mxu0 %v1065
      %v1708 = vpop.f32.mrb[0].mxu0
      %v1709 = vadd.f32 0.0, %v1708
      %v1710 = vpop.f32.mrb[0].mxu0
      %v1711 = vpop.f32.mrb[0].mxu0
      %v1712 = vadd.f32 0.0, %v1711
      %v1713 = vpop.f32.mrb[0].mxu0
      %1714 = vdwg.mxu0
      %1715 = vmatprep.subr.bf16.mxu0 0
      %1716 = vmatpush1.bf16.msra.mxu0 %v1522
      %1717 = vmatprep.subr.bf16.mxu0 0
      %1718 = vmatpush1.bf16.msra.mxu0 %v1523
      %1719 = vmatprep.subr.bf16.mxu0 0
      %1720 = vmatpush1.bf16.msra.mxu0 %v1524
      %1721 = vmatprep.subr.bf16.mxu0 0
      %1722 = vmatpush1.bf16.msra.mxu0 %v1525
      %1723 = vmatprep.subr.bf16.mxu0 0
      %1724 = vmatpush1.bf16.msra.mxu0 %v1526
      %1725 = vmatprep.subr.bf16.mxu0 0
      %1726 = vmatpush1.bf16.msra.mxu0 %v1527
      %1727 = vmatprep.subr.bf16.mxu0 0
      %1728 = vmatpush1.bf16.msra.mxu0 %v1528
      %1729 = vmatprep.subr.bf16.mxu0 0
      %1730 = vmatpush1.bf16.msra.mxu0 %v1529
      %1731 = vmatprep.subr.bf16.mxu0 0
      %1732 = vmatpush1.bf16.msra.mxu0 %v1530
      %1733 = vmatprep.subr.bf16.mxu0 0
      %1734 = vmatpush1.bf16.msra.mxu0 %v1531
      %1735 = vmatprep.subr.bf16.mxu0 0
      %1736 = vmatpush1.bf16.msra.mxu0 %v1532
      %1737 = vmatprep.subr.bf16.mxu0 0
      %1738 = vmatpush1.bf16.msra.mxu0 %v1533
      %1739 = vmatprep.subr.bf16.mxu0 0
      %1740 = vmatpush1.bf16.msra.mxu0 %v1534
      %1741 = vmatprep.subr.bf16.mxu0 0
      %1742 = vmatpush1.bf16.msra.mxu0 %v1535
      %1743 = vmatprep.subr.bf16.mxu0 0
      %1744 = vmatpush1.bf16.msra.mxu0 %v1536
      %1745 = vmatprep.subr.bf16.mxu0 0
      %1746 = vmatpush1.bf16.msra.mxu0 %v1537
      %1747 = vmatprep.mubr.bf16.mxu0 %v1041
      %1748 = vmatmul.mubr.bf16.gmra.mrb[0].mxu0 %v1040
      %v1749 = vpop.f32.mrb[0].mxu0
      %v1750 = vadd.f32 %v1685, %v1749
      %v1751 = vpop.f32.mrb[0].mxu0
      %v1752 = vpop.f32.mrb[0].mxu0
      %v1753 = vadd.f32 %v1688, %v1752
      %v1754 = vpop.f32.mrb[0].mxu0
      %1755 = vmatprep.mubr.bf16.mxu0 %v1050
      %1756 = vmatmul.mubr.bf16.gmra.mrb[0].mxu0 %v1049
      %v1757 = vpop.f32.mrb[0].mxu0
      %v1758 = vadd.f32 %v1693, %v1757
      %v1759 = vpop.f32.mrb[0].mxu0
      %v1760 = vpop.f32.mrb[0].mxu0
      %v1761 = vadd.f32 %v1696, %v1760
      %v1762 = vpop.f32.mrb[0].mxu0
      %1763 = vmatprep.mubr.bf16.mxu0 %v1059
      %1764 = vmatmul.mubr.bf16.gmra.mrb[0].mxu0 %v1058
      %v1765 = vpop.f32.mrb[0].mxu0
      %v1766 = vadd.f32 %v1701, %v1765
      %v1767 = vpop.f32.mrb[0].mxu0
      %v1768 = vpop.f32.mrb[0].mxu0
      %v1769 = vadd.f32 %v1704, %v1768
      %v1770 = vpop.f32.mrb[0].mxu0
      %1771 = vmatprep.mubr.bf16.mxu0 %v1068
      %1772 = vmatmul.mubr.bf16.gmra.mrb[0].mxu0 %v1067
      %v1773 = vpop.f32.mrb[0].mxu0
      %v1774 = vadd.f32 %v1709, %v1773
      %v1775 = vpop.f32.mrb[0].mxu0
      %v1776 = vpop.f32.mrb[0].mxu0
      %v1777 = vadd.f32 %v1712, %v1776
      %v1778 = vpop.f32.mrb[0].mxu0
      %1779 = vdwg.mxu0
      %1780 = vmatprep.subr.bf16.mxu0 0
      %1781 = vmatpush1.bf16.msra.mxu0 %v1538
      %1782 = vmatprep.subr.bf16.mxu0 0
      %1783 = vmatpush1.bf16.msra.mxu0 %v1539
      %1784 = vmatprep.subr.bf16.mxu0 0
      %1785 = vmatpush1.bf16.msra.mxu0 %v1540
      %1786 = vmatprep.subr.bf16.mxu0 0
      %1787 = vmatpush1.bf16.msra.mxu0 %v1541
      %1788 = vmatprep.subr.bf16.mxu0 0
      %1789 = vmatpush1.bf16.msra.mxu0 %v1542
      %1790 = vmatprep.subr.bf16.mxu0 0
      %1791 = vmatpush1.bf16.msra.mxu0 %v1543
      %1792 = vmatprep.subr.bf16.mxu0 0
      %1793 = vmatpush1.bf16.msra.mxu0 %v1544
      %1794 = vmatprep.subr.bf16.mxu0 0
      %1795 = vmatpush1.bf16.msra.mxu0 %v1545
      %1796 = vmatprep.subr.bf16.mxu0 0
      %1797 = vmatpush1.bf16.msra.mxu0 %v1546
      %1798 = vmatprep.subr.bf16.mxu0 0
      %1799 = vmatpush1.bf16.msra.mxu0 %v1547
      %1800 = vmatprep.subr.bf16.mxu0 0
      %1801 = vmatpush1.bf16.msra.mxu0 %v1548
      %1802 = vmatprep.subr.bf16.mxu0 0
      %1803 = vmatpush1.bf16.msra.mxu0 %v1549
      %1804 = vmatprep.subr.bf16.mxu0 0
      %1805 = vmatpush1.bf16.msra.mxu0 %v1550
      %1806 = vmatprep.subr.bf16.mxu0 0
      %1807 = vmatpush1.bf16.msra.mxu0 %v1551
      %1808 = vmatprep.subr.bf16.mxu0 0
      %1809 = vmatpush1.bf16.msra.mxu0 %v1552
      %1810 = vmatprep.subr.bf16.mxu0 0
      %1811 = vmatpush1.bf16.msra.mxu0 %v1553
      %1812 = vmatprep.mubr.bf16.mxu0 %v1043
      %1813 = vmatmul.mubr.bf16.gmra.mrb[0].mxu0 %v1042
      %v1814 = vpop.f32.mrb[0].mxu0
      %v1815 = vadd.f32 %v1750, %v1814
      %v1816 = vpop.f32.mrb[0].mxu0
      %v1817 = vpop.f32.mrb[0].mxu0
      %v1818 = vadd.f32 %v1753, %v1817
      %v1819 = vpop.f32.mrb[0].mxu0
      %1820 = vmatprep.mubr.bf16.mxu0 %v1052
      %1821 = vmatmul.mubr.bf16.gmra.mrb[0].mxu0 %v1051
      %v1822 = vpop.f32.mrb[0].mxu0
      %v1823 = vadd.f32 %v1758, %v1822
      %v1824 = vpop.f32.mrb[0].mxu0
      %v1825 = vpop.f32.mrb[0].mxu0
      %v1826 = vadd.f32 %v1761, %v1825
      %v1827 = vpop.f32.mrb[0].mxu0
      %1828 = vmatprep.mubr.bf16.mxu0 %v1061
      %1829 = vmatmul.mubr.bf16.gmra.mrb[0].mxu0 %v1060
      %v1830 = vpop.f32.mrb[0].mxu0
      %v1831 = vadd.f32 %v1766, %v1830
      %v1832 = vpop.f32.mrb[0].mxu0
      %v1833 = vpop.f32.mrb[0].mxu0
      %v1834 = vadd.f32 %v1769, %v1833
      %v1835 = vpop.f32.mrb[0].mxu0
      %1836 = vmatprep.mubr.bf16.mxu0 %v1070
      %1837 = vmatmul.mubr.bf16.gmra.mrb[0].mxu0 %v1069
      %v1838 = vpop.f32.mrb[0].mxu0
      %v1839 = vadd.f32 %v1774, %v1838
      %v1840 = vpop.f32.mrb[0].mxu0
      %v1841 = vpop.f32.mrb[0].mxu0
      %v1842 = vadd.f32 %v1777, %v1841
      %v1843 = vpop.f32.mrb[0].mxu0
      %1844 = vdwg.mxu0
      %1845 = vmatprep.subr.bf16.mxu0 0
      %1846 = vmatpush1.bf16.msra.mxu0 %v1554
      %1847 = vmatprep.subr.bf16.mxu0 0
      %1848 = vmatpush1.bf16.msra.mxu0 %v1555
      %1849 = vmatprep.subr.bf16.mxu0 0
      %1850 = vmatpush1.bf16.msra.mxu0 %v1556
      %1851 = vmatprep.subr.bf16.mxu0 0
      %1852 = vmatpush1.bf16.msra.mxu0 %v1557
      %1853 = vmatprep.subr.bf16.mxu0 0
      %1854 = vmatpush1.bf16.msra.mxu0 %v1558
      %1855 = vmatprep.subr.bf16.mxu0 0
      %1856 = vmatpush1.bf16.msra.mxu0 %v1559
      %1857 = vmatprep.subr.bf16.mxu0 0
      %1858 = vmatpush1.bf16.msra.mxu0 %v1560
      %1859 = vmatprep.subr.bf16.mxu0 0
      %1860 = vmatpush1.bf16.msra.mxu0 %v1561
      %1861 = vmatprep.subr.bf16.mxu0 0
      %1862 = vmatpush1.bf16.msra.mxu0 %v1562
      %1863 = vmatprep.subr.bf16.mxu0 0
      %1864 = vmatpush1.bf16.msra.mxu0 %v1563
      %1865 = vmatprep.subr.bf16.mxu0 0
      %1866 = vmatpush1.bf16.msra.mxu0 %v1564
      %1867 = vmatprep.subr.bf16.mxu0 0
      %1868 = vmatpush1.bf16.msra.mxu0 %v1565
      %1869 = vmatprep.subr.bf16.mxu0 0
      %1870 = vmatpush1.bf16.msra.mxu0 %v1566
      %1871 = vmatprep.subr.bf16.mxu0 0
      %1872 = vmatpush1.bf16.msra.mxu0 %v1567
      %1873 = vmatprep.subr.bf16.mxu0 0
      %1874 = vmatpush1.bf16.msra.mxu0 %v1568
      %1875 = vmatprep.subr.bf16.mxu0 0
      %1876 = vmatpush1.bf16.msra.mxu0 %v1569
      %1877 = vmatprep.mubr.bf16.mxu0 %v1045
      %1878 = vmatmul.mubr.bf16.gmra.mrb[0].mxu0 %v1044
      %v1879 = vpop.f32.mrb[0].mxu0
      %v1880 = vadd.f32 %v1815, %v1879
      %v1881 = vpop.f32.mrb[0].mxu0
      %v1882 = vpop.f32.mrb[0].mxu0
      %v1883 = vadd.f32 %v1818, %v1882
      %v1884 = vpop.f32.mrb[0].mxu0
      %1885 = vmatprep.mubr.bf16.mxu0 %v1054
      %1886 = vmatmul.mubr.bf16.gmra.mrb[0].mxu0 %v1053
      %v1887 = vpop.f32.mrb[0].mxu0
      %v1888 = vadd.f32 %v1823, %v1887
      %v1889 = vpop.f32.mrb[0].mxu0
      %v1890 = vpop.f32.mrb[0].mxu0
      %v1891 = vadd.f32 %v1826, %v1890
      %v1892 = vpop.f32.mrb[0].mxu0
      %1893 = vmatprep.mubr.bf16.mxu0 %v1063
      %1894 = vmatmul.mubr.bf16.gmra.mrb[0].mxu0 %v1062
      %v1895 = vpop.f32.mrb[0].mxu0
      %v1896 = vadd.f32 %v1831, %v1895
      %v1897 = vpop.f32.mrb[0].mxu0
      %v1898 = vpop.f32.mrb[0].mxu0
      %v1899 = vadd.f32 %v1834, %v1898
      %v1900 = vpop.f32.mrb[0].mxu0
      %1901 = vmatprep.mubr.bf16.mxu0 %v1072
      %1902 = vmatmul.mubr.bf16.gmra.mrb[0].mxu0 %v1071
      %v1903 = vpop.f32.mrb[0].mxu0
      %v1904 = vadd.f32 %v1839, %v1903
      %v1905 = vpop.f32.mrb[0].mxu0
      %v1906 = vpop.f32.mrb[0].mxu0
      %v1907 = vadd.f32 %v1842, %v1906
      %v1908 = vpop.f32.mrb[0].mxu0
      %1909 = vdwg.mxu0
      %1910 = vmatprep.subr.bf16.mxu0 0
      %1911 = vmatpush1.bf16.msra.mxu0 %v1570
      %1912 = vmatprep.subr.bf16.mxu0 0
      %1913 = vmatpush1.bf16.msra.mxu0 %v1571
      %1914 = vmatprep.subr.bf16.mxu0 0
      %1915 = vmatpush1.bf16.msra.mxu0 %v1572
      %1916 = vmatprep.subr.bf16.mxu0 0
      %1917 = vmatpush1.bf16.msra.mxu0 %v1573
      %1918 = vmatprep.subr.bf16.mxu0 0
      %1919 = vmatpush1.bf16.msra.mxu0 %v1574
      %1920 = vmatprep.subr.bf16.mxu0 0
      %1921 = vmatpush1.bf16.msra.mxu0 %v1575
      %1922 = vmatprep.subr.bf16.mxu0 0
      %1923 = vmatpush1.bf16.msra.mxu0 %v1576
      %1924 = vmatprep.subr.bf16.mxu0 0
      %1925 = vmatpush1.bf16.msra.mxu0 %v1577
      %1926 = vmatprep.subr.bf16.mxu0 0
      %1927 = vmatpush1.bf16.msra.mxu0 0
      %1928 = vmatprep.subr.bf16.mxu0 0
      %1929 = vmatpush1.bf16.msra.mxu0 0
      %1930 = vmatprep.subr.bf16.mxu0 0
      %1931 = vmatpush1.bf16.msra.mxu0 0
      %1932 = vmatprep.subr.bf16.mxu0 0
      %1933 = vmatpush1.bf16.msra.mxu0 0
      %1934 = vmatprep.subr.bf16.mxu0 0
      %1935 = vmatpush1.bf16.msra.mxu0 0
      %1936 = vmatprep.subr.bf16.mxu0 0
      %1937 = vmatpush1.bf16.msra.mxu0 0
      %1938 = vmatprep.subr.bf16.mxu0 0
      %1939 = vmatpush1.bf16.msra.mxu0 0
      %1940 = vmatprep.subr.bf16.mxu0 0
      %1941 = vmatpush1.bf16.msra.mxu0 0
      %1942 = vmatprep.mubr.bf16.mxu0 0
      %1943 = vmatmul.mubr.bf16.gmra.mrb[0].mxu0 %v1046
      %v1944 = vpop.f32.mrb[0].mxu0
      %v1945 = vadd.f32 %v1880, %v1944
      %v1946 = vpop.f32.mrb[0].mxu0
      %v1947 = vpop.f32.mrb[0].mxu0
      %v1948 = vadd.f32 %v1883, %v1947
      %v1949 = vpop.f32.mrb[0].mxu0
      %1950 = vmatprep.mubr.bf16.mxu0 0
      %1951 = vmatmul.mubr.bf16.gmra.mrb[0].mxu0 %v1055
      %v1952 = vpop.f32.mrb[0].mxu0
      %v1953 = vadd.f32 %v1888, %v1952
      %v1954 = vpop.f32.mrb[0].mxu0
      %v1955 = vpop.f32.mrb[0].mxu0
      %v1956 = vadd.f32 %v1891, %v1955
      %v1957 = vpop.f32.mrb[0].mxu0
      %1958 = vmatprep.mubr.bf16.mxu0 0
      %1959 = vmatmul.mubr.bf16.gmra.mrb[0].mxu0 %v1064
      %v1960 = vpop.f32.mrb[0].mxu0
      %v1961 = vadd.f32 %v1896, %v1960
      %v1962 = vpop.f32.mrb[0].mxu0
      %v1963 = vpop.f32.mrb[0].mxu0
      %v1964 = vadd.f32 %v1899, %v1963
      %v1965 = vpop.f32.mrb[0].mxu0
      %1966 = vmatprep.mubr.bf16.mxu0 0
      %1967 = vmatmul.mubr.bf16.gmra.mrb[0].mxu0 %v1073
      %v1968 = vpop.f32.mrb[0].mxu0
      %v1969 = vadd.f32 %v1904, %v1968
      %v1970 = vpop.f32.mrb[0].mxu0
      %v1971 = vpop.f32.mrb[0].mxu0
      %v1972 = vadd.f32 %v1907, %v1971
      %v1973 = vpop.f32.mrb[0].mxu0
      %1974 = vdwg.mxu0
      %v1975 = vpack.c.bf16 %v1945, %v1945
      %v1976 = vpack.c.bf16 %v1948, %v1948
      %v1977 = vpack.c.bf16 %v1953, %v1953
      %v1978 = vpack.c.bf16 %v1956, %v1956
      %v1979 = vpack.c.bf16 %v1961, %v1961
      %v1980 = vpack.c.bf16 %v1964, %v1964
      %v1981 = vpack.c.bf16 %v1969, %v1969
      %v1982 = vpack.c.bf16 %v1972, %v1972
      %1983 = vst [vmem:[%s205] sm:$0xf] %v1975
      %1984 = vst [vmem:[%s205 + $0x4] sm:$0xf] %v1976
      %1985 = vst [vmem:[%s205 + $0x8] sm:$0xf] %v1977
      %1986 = vst [vmem:[%s205 + $0xc] sm:$0xf] %v1978
      %1987 = vst [vmem:[%s205 + $0x10] sm:$0xf] %v1979
      %1988 = vst [vmem:[%s205 + $0x14] sm:$0xf] %v1980
      %1989 = vst [vmem:[%s205 + $0x18] sm:$0xf] %v1981
      %1990 = vst [vmem:[%s205 + $0x1c] sm:$0xf] %v1982
      %v1991 = vadd.f32 %v1945, %v1948
      %v1992 = vadd.f32 %v1991, %v1953
      %v1993 = vadd.f32 %v1992, %v1956
      %v1994 = vadd.f32 %v1993, %v1961
      %v1995 = vadd.f32 %v1994, %v1964
      %v1996 = vadd.f32 %v1995, %v1969
      %v1997 = vadd.f32 %v1996, %v1972
      %v1998 = vrot.slane %v1997, 4
      %v1999 = vadd.f32 %v1997, %v1998
      %v2000 = vrot.slane %v1999, 2
      %v2001 = vadd.f32 %v1999, %v2000
      %v2002 = vrot.slane %v2001, 1
      %v2003 = vadd.f32 %v2001, %v2002
      %v2004 = vmul.f32 %v1945, %v1945
      %v2005 = vmul.f32 %v1948, %v1948
      %v2006 = vmul.f32 %v1953, %v1953
      %v2007 = vmul.f32 %v1956, %v1956
      %v2008 = vmul.f32 %v1961, %v1961
      %v2009 = vmul.f32 %v1964, %v1964
      %v2010 = vmul.f32 %v1969, %v1969
      %v2011 = vmul.f32 %v1972, %v1972
      %v2012 = vadd.f32 %v2004, %v2005
      %v2013 = vadd.f32 %v2012, %v2006
      %v2014 = vadd.f32 %v2013, %v2007
      %v2015 = vadd.f32 %v2014, %v2008
      %v2016 = vadd.f32 %v2015, %v2009
      %v2017 = vadd.f32 %v2016, %v2010
      %v2018 = vadd.f32 %v2017, %v2011
      %v2019 = vrot.slane %v2018, 4
      %v2020 = vadd.f32 %v2018, %v2019
      %v2021 = vrot.slane %v2020, 2
      %v2022 = vadd.f32 %v2020, %v2021
      %v2023 = vrot.slane %v2022, 1
      %v2024 = vadd.f32 %v2022, %v2023
      %v2027 = vcombine.low %v2003, %v2024
      %v2029 = vunpack.c.l.s4 1966171168
      %v2030 = vunpack.c.0.s8 %v2029
      %v2031 = vlaneseq
      %v2032 = vshrl.u32 %v2031, 7
      %v2033 = vsub.s32 %v2030, %v2032
      %v2034 = vrot.slane %v2027, %v2033
      %v2036 = vunpack.c.l.s4 1966171168
      %v2037 = vunpack.c.0.s8 %v2036
      %v2038 = vlaneseq
      %v2039 = vshrl.u32 %v2038, 7
      %v2040 = vsub.s32 %v2037, %v2039
      %v2041 = vrot.slane %v2034, %v2040
      %v2043 = vlaneseq
      %vm2044 = vcmp.ge.s32.totalorder %v2043, 0
      %vm2045 = vcmp.lt.s32.totalorder %v2043, 256
      %vm2046 = vmand %vm2044, %vm2045
      %2047 = vst.msk [vmem:[%s214] sm:$0x3] %vm2046, %v2041
      %s2048 = smul.u32 8, %s20
      %p2049 = scmp.lt.s32.totalorder %s19, 1
      %s2050 = scalar_select %p2049, %s19, 1
      %p2051 = scmp.lt.s32.totalorder %s2048, 7
      %s2052 = scalar_select %p2051, %s2048, 7
      %s2053 = smul.addr %s2050, 8
      %s2054 = sadd.s32 %s2052, %s2053
      %s2055 = smul.addr %s2054, 4
      %s2056 = scalar_lea.vmem %s2, %s2055
      %p2057 = scmp.lt.s32.totalorder %s19, 1
      %s2058 = scalar_select %p2057, %s19, 1
      %p2059 = scmp.lt.s32.totalorder %s20, 0
      %s2060 = scalar_select %p2059, %s20, 0
      %s2061 = smul.addr %s2060, 2
      %s2062 = smul.addr %s2058, 2
      %s2063 = sadd.s32 %s2061, %s2062
      %s2064 = scalar_lea.vmem %s3, %s2063
      // Predicated region
      $region29: #{down_forward.5} parent=27 // pred_check
        %p2065 = pneg %p94
      $region30: #{down_forward.5} parent=27 // pred_check_branch
        %2067 = sbr.rel (%p2065) target = $region32
      $region31: #{down_forward.5} parent=27 // pred_region
        %s2068 = smul.u32 8, %s20
      $region32: #{down_forward.5} parent=27 // pred_fallthru
        _
      // Predicated region
      $region33: #{down_forward.5} parent=27 // pred_check
        %p2069 = pneg %p122
      $region34: #{down_forward.5} parent=27 // pred_check_branch
        %2071 = sbr.rel (%p2069) target = $region36
      $region35: #{down_forward.5} parent=27 // pred_region
        _
      $region36: #{down_forward.5} parent=27 // pred_fallthru
        _
    $region28: #{down_forward.5} parent=5 // pred_fallthru
      _
    %p2072 = scmp.le.s32.totalorder 2, %s10
    // Predicated region
    $region37: #{down_forward.5} parent=5 // pred_check
      %p2073 = pneg %p2072
    $region38: #{down_forward.5} parent=5 // pred_check_branch
      %2075 = sbr.rel (%p2073) target = $region40
    $region39: #{down_forward.5} parent=5 // pred_region
      %s2076 = ssub.s32 %s10, 2
      // Predicated region
      $region41: #{down_forward.5} parent=39 // pred_check
        %p2077 = pneg %p100
      $region42: #{down_forward.5} parent=39 // pred_check_branch
        %2079 = sbr.rel (%p2077) target = $region44
      $region43: #{down_forward.5} parent=39 // pred_region
        %s2080 = smul.u32 8, %s22
        %p2081 = scmp.lt.s32.totalorder %s21, 1
        %s2082 = scalar_select %p2081, %s21, 1
        %p2083 = scmp.lt.s32.totalorder %s2080, 7
        %s2084 = scalar_select %p2083, %s2080, 7
        %s2085 = smul.addr %s2082, 8
        %s2086 = sadd.s32 %s2084, %s2085
        %s2087 = smul.addr %s2086, 4
        %s2088 = scalar_lea.vmem %s2, %s2087
      $region44: #{down_forward.5} parent=39 // pred_fallthru
        _
      // Predicated region
      $region45: #{down_forward.5} parent=39 // pred_check
        %p2089 = pneg %p128
      $region46: #{down_forward.5} parent=39 // pred_check_branch
        %2091 = sbr.rel (%p2089) target = $region48
      $region47: #{down_forward.5} parent=39 // pred_region
        %p2092 = scmp.lt.s32.totalorder %s21, 1
        %s2093 = scalar_select %p2092, %s21, 1
        %p2094 = scmp.lt.s32.totalorder %s22, 0
        %s2095 = scalar_select %p2094, %s22, 0
        %s2096 = smul.addr %s2095, 2
        %s2097 = smul.addr %s2093, 2
        %s2098 = sadd.s32 %s2096, %s2097
        %s2099 = scalar_lea.vmem %s3, %s2098
      $region48: #{down_forward.5} parent=39 // pred_fallthru
        _
    $region40: #{down_forward.5} parent=5 // pred_fallthru
      _
  $region6: #{down_forward.5} parent=0 // loop_footer
    %s14 = sadd.s32 1, %s10
  $region7: #{down_forward.5} parent=0 // loop_footer_branch
    %9 = sbr.rel target = $region3
  $region8: #{down_forward.5} parent=0 // loop_exit
    _

// kernel: down_forward.6
$region0: #{down_forward.6}
  #allocation0 [shape = 'u32[]', space=smem, size = 0x4, offset = 0x4, fixed_abs, tag = 'smem constant byte address 0x4 - core index']
  #allocation1 [shape = 'u32[144,128]{1,0:T(1,128)}', space=vmem, size = 0x12000, scoped, tag = 'internal scratch']
  #allocation2 [shape = 'bf16[10,10,128]{2,1,0:T(8,128)(2,1)}', space=vmem, size = 0xa000, scoped, tag = 'scratch operand']
  #allocation3 [shape = 'bf16[64,1152]{1,0:T(16,128)(2,1)}', space=vmem, size = 0x24000, scoped, tag = 'scratch operand']
  %s0 = inlined_call_operand.vmem [shape: bf16[2,10,10,128], index: 0, kind: input, shape index: {}]
  %s1 = inlined_call_operand.vmem [shape: bf16[1152,128], index: 1, kind: input, shape index: {}]
  %s2 = inlined_call_operand.vmem [shape: f32[1,128], index: 2, kind: input, shape index: {}]
  %s3 = inlined_call_operand.vmem [shape: f32[1,128], index: 3, kind: input, shape index: {}]
  %s4 = inlined_call_operand.vmem [shape: bf16[2,8,8,128], index: 4, kind: output, shape index: {0}]
  %s5 = inlined_call_operand.vmem [shape: f32[2,1,1,256], index: 5, kind: output, shape index: {1}]
  %6 = xla_tuple %s4, %s5
  %s7 = sld [smem:[#allocation0]]
  $region57: #{down_forward.6} parent=0
    _
  %s9 = ssub.s32 1, %s7
  %s10 = scalar_select 0, %s9, %s7
  loop: start=0, step=1, limit=4
  $region2: #{down_forward.6} parent=0 // loop_pre_header
    _
  $region3: #{down_forward.6} parent=0 // loop_header
    %s12 = sphi 0, %s16
    %p13 = scmp.ge.s32.totalorder %s12, 4
    %s19 = sphi 0, %s31
    %s20 = sphi 0, %s27
    %s21 = sphi 0, %s19
    %s22 = sphi 0, %s20
    %s23 = sphi 0, %s21
    %s24 = sphi 0, %s22
    %s34 = sphi 0, %s36
    %s37 = sphi 0, %s34
    %s38 = sphi 0, %s37
    %s54 = sphi 0, %s38
    %s58 = sphi 0, %s58
    %s60 = sphi 0, %s58
    %s61 = sphi 0, %s60
    %s75 = sphi 0, %s61
    %s79 = sphi 0, %s79
    %s81 = sphi 0, %s79
    %s82 = sphi 0, %s81
    %s96 = sphi 0, %s82
    %s100 = sphi 0, %s100
    %s102 = sphi 0, %s100
    %s103 = sphi 0, %s102
    %s117 = sphi 0, %s103
    %s125 = sphi 0, %s127
    %s128 = sphi 0, %s125
    %s129 = sphi 0, %s128
    %s145 = sphi 0, %s129
    %s153 = sphi 0, %s155
    %s156 = sphi 0, %s153
    %s157 = sphi 0, %s156
    %s173 = sphi 0, %s157
  $region4: #{down_forward.6} parent=0 // loop_header_branch
    %15 = sbr.rel (%p13) target = $region8
  $region5: #{down_forward.6} parent=0 // loop_body
    %s17 = ssub.s32 %s12, 1
    %s18 = ssub.s32 %s12, 2
    %s25 = sadd.s32 1, %s20
    %p26 = scmp.ge.s32.totalorder %s25, 1
    %s27 = scalar_select %p26, 0, %s25
    %s28 = sadd.s32 1, %s19
    %s29 = scalar_select %p26, %s28, %s19
    %p30 = scmp.ge.s32.totalorder %s29, 2
    %s31 = scalar_select %p30, 0, %s29
    %s32 = ssub.s32 %s19, %s31
    %p33 = scmp.eq.s32.totalorder %s32, 0
    %s35 = sadd.s32 %s34, 1
    %s36 = scalar_select %p33, %s34, %s35
    %p39 = pneg %p33
    %p40 = scmp.eq.s32.totalorder %s12, 1
    %p41 = por %p39, %p40
    %p42 = scmp.ne.s32.totalorder %s34, %s37
    %p43 = scmp.eq.s32.totalorder %s12, 0
    %p44 = por %p42, %p43
    %p45 = scmp.ne.s32.totalorder %s34, %s37
    %p46 = scmp.eq.s32.totalorder %s17, 1
    %p47 = por %p45, %p46
    %p48 = scmp.ne.s32.totalorder %s37, %s38
    %p49 = scmp.eq.s32.totalorder %s17, 0
    %p50 = por %p48, %p49
    %p51 = scmp.ne.s32.totalorder %s37, %s38
    %p52 = scmp.eq.s32.totalorder %s18, 1
    %p53 = por %p51, %p52
    %p55 = scmp.ne.s32.totalorder %s38, %s54
    %p56 = scmp.eq.s32.totalorder %s18, 0
    %p57 = por %p55, %p56
    %s59 = sadd.s32 %s58, 1
    %p62 = scmp.eq.s32.totalorder %s12, 1
    %p63 = scmp.ne.s32.totalorder %s58, %s60
    %p64 = scmp.eq.s32.totalorder %s12, 0
    %p65 = por %p63, %p64
    %p66 = scmp.ne.s32.totalorder %s58, %s60
    %p67 = scmp.eq.s32.totalorder %s17, 1
    %p68 = por %p66, %p67
    %p69 = scmp.ne.s32.totalorder %s60, %s61
    %p70 = scmp.eq.s32.totalorder %s17, 0
    %p71 = por %p69, %p70
    %p72 = scmp.ne.s32.totalorder %s60, %s61
    %p73 = scmp.eq.s32.totalorder %s18, 1
    %p74 = por %p72, %p73
    %p76 = scmp.ne.s32.totalorder %s61, %s75
    %p77 = scmp.eq.s32.totalorder %s18, 0
    %p78 = por %p76, %p77
    %s80 = sadd.s32 %s79, 1
    %p83 = scmp.eq.s32.totalorder %s12, 1
    %p84 = scmp.ne.s32.totalorder %s79, %s81
    %p85 = scmp.eq.s32.totalorder %s12, 0
    %p86 = por %p84, %p85
    %p87 = scmp.ne.s32.totalorder %s79, %s81
    %p88 = scmp.eq.s32.totalorder %s17, 1
    %p89 = por %p87, %p88
    %p90 = scmp.ne.s32.totalorder %s81, %s82
    %p91 = scmp.eq.s32.totalorder %s17, 0
    %p92 = por %p90, %p91
    %p93 = scmp.ne.s32.totalorder %s81, %s82
    %p94 = scmp.eq.s32.totalorder %s18, 1
    %p95 = por %p93, %p94
    %p97 = scmp.ne.s32.totalorder %s82, %s96
    %p98 = scmp.eq.s32.totalorder %s18, 0
    %p99 = por %p97, %p98
    %s101 = sadd.s32 %s100, 1
    %p104 = scmp.eq.s32.totalorder %s12, 1
    %p105 = scmp.ne.s32.totalorder %s100, %s102
    %p106 = scmp.eq.s32.totalorder %s12, 0
    %p107 = por %p105, %p106
    %p108 = scmp.ne.s32.totalorder %s100, %s102
    %p109 = scmp.eq.s32.totalorder %s17, 1
    %p110 = por %p108, %p109
    %p111 = scmp.ne.s32.totalorder %s102, %s103
    %p112 = scmp.eq.s32.totalorder %s17, 0
    %p113 = por %p111, %p112
    %p114 = scmp.ne.s32.totalorder %s102, %s103
    %p115 = scmp.eq.s32.totalorder %s18, 1
    %p116 = por %p114, %p115
    %p118 = scmp.ne.s32.totalorder %s103, %s117
    %p119 = scmp.eq.s32.totalorder %s18, 0
    %p120 = por %p118, %p119
    %s121 = ssub.s32 %s19, %s31
    %s122 = ssub.s32 %s20, %s27
    %s123 = sor.u32 %s121, %s122
    %p124 = scmp.eq.s32.totalorder %s123, 0
    %s126 = sadd.s32 %s125, 1
    %s127 = scalar_select %p124, %s125, %s126
    %p130 = pneg %p124
    %p131 = scmp.eq.s32.totalorder %s12, 1
    %p132 = por %p130, %p131
    %p133 = scmp.ne.s32.totalorder %s125, %s128
    %p134 = scmp.eq.s32.totalorder %s12, 0
    %p135 = por %p133, %p134
    %p136 = scmp.ne.s32.totalorder %s125, %s128
    %p137 = scmp.eq.s32.totalorder %s17, 1
    %p138 = por %p136, %p137
    %p139 = scmp.ne.s32.totalorder %s128, %s129
    %p140 = scmp.eq.s32.totalorder %s17, 0
    %p141 = por %p139, %p140
    %p142 = scmp.ne.s32.totalorder %s128, %s129
    %p143 = scmp.eq.s32.totalorder %s18, 1
    %p144 = por %p142, %p143
    %p146 = scmp.ne.s32.totalorder %s129, %s145
    %p147 = scmp.eq.s32.totalorder %s18, 0
    %p148 = por %p146, %p147
    %s149 = ssub.s32 %s19, %s31
    %s150 = ssub.s32 %s20, %s27
    %s151 = sor.u32 %s149, %s150
    %p152 = scmp.eq.s32.totalorder %s151, 0
    %s154 = sadd.s32 %s153, 1
    %s155 = scalar_select %p152, %s153, %s154
    %p158 = pneg %p152
    %p159 = scmp.eq.s32.totalorder %s12, 1
    %p160 = por %p158, %p159
    %p161 = scmp.ne.s32.totalorder %s153, %s156
    %p162 = scmp.eq.s32.totalorder %s12, 0
    %p163 = por %p161, %p162
    %p164 = scmp.ne.s32.totalorder %s153, %s156
    %p165 = scmp.eq.s32.totalorder %s17, 1
    %p166 = por %p164, %p165
    %p167 = scmp.ne.s32.totalorder %s156, %s157
    %p168 = scmp.eq.s32.totalorder %s17, 0
    %p169 = por %p167, %p168
    %p170 = scmp.ne.s32.totalorder %s156, %s157
    %p171 = scmp.eq.s32.totalorder %s18, 1
    %p172 = por %p170, %p171
    %p174 = scmp.ne.s32.totalorder %s157, %s173
    %p175 = scmp.eq.s32.totalorder %s18, 0
    %p176 = por %p174, %p175
    %p177 = scmp.le.s32.totalorder 1, %s12
    %p178 = scmp.lt.s32.totalorder %s12, 3
    %p179 = pnand %p177, %p178
    %p180 = pneg %p179
    // Predicated region
    $region9: #{down_forward.6} parent=5 // pred_check
      _
    $region10: #{down_forward.6} parent=5 // pred_check_branch
      %182 = sbr.rel (%p179) target = $region12
    $region11: #{down_forward.6} parent=5 // pred_region
      %s183 = ssub.s32 %s12, 1
      // Predicated region
      $region13: #{down_forward.6} parent=11 // pred_check
        %p184 = pneg %p71
      $region14: #{down_forward.6} parent=11 // pred_check_branch
        %186 = sbr.rel (%p184) target = $region16
      $region15: #{down_forward.6} parent=11 // pred_region
        _
      $region16: #{down_forward.6} parent=11 // pred_fallthru
        _
      // Predicated region
      $region17: #{down_forward.6} parent=11 // pred_check
        %p187 = pneg %p92
      $region18: #{down_forward.6} parent=11 // pred_check_branch
        %189 = sbr.rel (%p187) target = $region20
      $region19: #{down_forward.6} parent=11 // pred_region
        _
      $region20: #{down_forward.6} parent=11 // pred_fallthru
        _
      // Predicated region
      $region21: #{down_forward.6} parent=11 // pred_check
        %p190 = pneg %p113
      $region22: #{down_forward.6} parent=11 // pred_check_branch
        %192 = sbr.rel (%p190) target = $region24
      $region23: #{down_forward.6} parent=11 // pred_region
        _
      $region24: #{down_forward.6} parent=11 // pred_fallthru
        _
    $region12: #{down_forward.6} parent=5 // pred_fallthru
      _
    %p193 = scmp.lt.s32.totalorder %s12, 2
    // Predicated region
    $region25: #{down_forward.6} parent=5 // pred_check
      %p194 = pneg %p193
    $region26: #{down_forward.6} parent=5 // pred_check_branch
      %196 = sbr.rel (%p194) target = $region28
    $region27: #{down_forward.6} parent=5 // pred_region
      // Predicated region
      $region29: #{down_forward.6} parent=27 // pred_check
        %p197 = pneg %p44
      $region30: #{down_forward.6} parent=27 // pred_check_branch
        %199 = sbr.rel (%p197) target = $region32
      $region31: #{down_forward.6} parent=27 // pred_region
        %p200 = scmp.lt.s32.totalorder %s19, 1
        %s201 = scalar_select %p200, %s19, 1
        %s202 = smul.addr %s201, 20
        %s203 = smul.addr %s202, 4
        %s204 = scalar_lea.vmem %s0, %s203
      $region32: #{down_forward.6} parent=27 // pred_fallthru
        _
    $region28: #{down_forward.6} parent=5 // pred_fallthru
      _
    %p205 = scmp.le.s32.totalorder 1, %s12
    %p206 = scmp.lt.s32.totalorder %s12, 3
    %p207 = pnand %p205, %p206
    %p208 = pneg %p207
    // Predicated region
    $region33: #{down_forward.6} parent=5 // pred_check
      _
    $region34: #{down_forward.6} parent=5 // pred_check_branch
      %210 = sbr.rel (%p207) target = $region36
    $region35: #{down_forward.6} parent=5 // pred_region
      %s211 = ssub.s32 %s12, 1
      %p212 = scmp.lt.s32.totalorder %s21, 1
      %s213 = scalar_select %p212, %s21, 1
      %s214 = smul.addr %s213, 20
      %s215 = smul.addr %s214, 4
      %s216 = scalar_lea.vmem %s0, %s215
      %p217 = pneg %p50
      %p218 = pneg %p47
      %p219 = pneg %p71
      %p220 = pneg %p68
      %p221 = pneg %p92
      %p222 = pneg %p89
      %p223 = pneg %p113
      %p224 = pneg %p110
      %p225 = pneg %p141
      %p226 = pneg %p138
      %s227 = smul.u32 8, %s22
      %p228 = scmp.lt.s32.totalorder %s21, 1
      %s229 = scalar_select %p228, %s21, 1
      %p230 = scmp.lt.s32.totalorder %s227, 7
      %s231 = scalar_select %p230, %s227, 7
      %s232 = smul.addr %s229, 8
      %s233 = sadd.s32 %s231, %s232
      %s234 = smul.addr %s233, 4
      %s235 = scalar_lea.vmem %s4, %s234
      %p236 = pneg %p169
      %p237 = pneg %p166
      %p238 = scmp.lt.s32.totalorder %s21, 1
      %s239 = scalar_select %p238, %s21, 1
      %p240 = scmp.lt.s32.totalorder %s22, 0
      %s241 = scalar_select %p240, %s22, 0
      %s242 = smul.addr %s241, 2
      %s243 = smul.addr %s239, 2
      %s244 = sadd.s32 %s242, %s243
      %s245 = scalar_lea.vmem %s5, %s244
      %p246 = scmp.lt.s32.totalorder %s21, 1
      %s247 = scalar_select %p246, %s21, 1
      %s248 = smul.addr %s247, 20
      %s249 = smul.addr %s248, 4
      %s250 = scalar_lea.vmem %s0, %s249
      %s251 = smul.u32 8, %s22
      %p252 = scmp.lt.s32.totalorder %s21, 1
      %s253 = scalar_select %p252, %s21, 1
      %p254 = scmp.lt.s32.totalorder %s251, 7
      %s255 = scalar_select %p254, %s251, 7
      %s256 = smul.addr %s253, 8
      %s257 = sadd.s32 %s255, %s256
      %s258 = smul.addr %s257, 4
      %s259 = scalar_lea.vmem %s4, %s258
      %s260 = smul.u32 8, %s22
      %p261 = scmp.lt.s32.totalorder %s21, 1
      %s262 = scalar_select %p261, %s21, 1
      %p263 = scmp.lt.s32.totalorder %s22, 0
      %s264 = scalar_select %p263, %s22, 0
      %s265 = smul.addr %s264, 2
      %s266 = smul.addr %s262, 2
      %s267 = sadd.s32 %s265, %s266
      %s268 = scalar_lea.vmem %s5, %s267
      %s270 = smul.u32 %s22, 8
      %s271 = smul.u32 %s270, 2
      %s272 = smul.addr %s271, 4
      %s273 = scalar_lea.vmem %s250, %s272
      %v274 = vld [vmem:[%s273] sm:$0xf]
      %v275 = vld [vmem:[%s273 + $0x4] sm:$0x1]
      %v276 = vld [vmem:[%s273 + $0x8] sm:$0xf]
      %v277 = vld [vmem:[%s273 + $0xc] sm:$0x1]
      %v278 = vld [vmem:[%s273 + $0x10] sm:$0xf]
      %v279 = vld [vmem:[%s273 + $0x14] sm:$0x1]
      %v280 = vld [vmem:[%s273 + $0x18] sm:$0xf]
      %v281 = vld [vmem:[%s273 + $0x1c] sm:$0x1]
      %v282 = vld [vmem:[%s273 + $0x20] sm:$0xf]
      %v283 = vld [vmem:[%s273 + $0x24] sm:$0x1]
      %v284 = vld [vmem:[%s273 + $0x28] sm:$0xf]
      %v285 = vld [vmem:[%s273 + $0x2c] sm:$0x1]
      %v286 = vld [vmem:[%s273 + $0x30] sm:$0xf]
      %v287 = vld [vmem:[%s273 + $0x34] sm:$0x1]
      %v288 = vld [vmem:[%s273 + $0x38] sm:$0xf]
      %v289 = vld [vmem:[%s273 + $0x3c] sm:$0x1]
      %v290 = vld [vmem:[%s273 + $0x40] sm:$0xf]
      %v291 = vld [vmem:[%s273 + $0x44] sm:$0x1]
      %v292 = vld [vmem:[%s273 + $0x48] sm:$0xf]
      %v293 = vld [vmem:[%s273 + $0x4c] sm:$0x1]
      %v294 = vunpack.c.l.bf16 %v274
      %v295 = vunpack.c.l.bf16 %v275
      %v296 = vunpack.c.l.bf16 %v276
      %v297 = vunpack.c.l.bf16 %v277
      %v298 = vunpack.c.l.bf16 %v278
      %v299 = vunpack.c.l.bf16 %v279
      %v300 = vunpack.c.l.bf16 %v280
      %v301 = vunpack.c.l.bf16 %v281
      %v302 = vunpack.c.l.bf16 %v282
      %v303 = vunpack.c.l.bf16 %v283
      %v304 = vunpack.c.l.bf16 %v284
      %v305 = vunpack.c.l.bf16 %v285
      %v306 = vunpack.c.l.bf16 %v286
      %v307 = vunpack.c.l.bf16 %v287
      %v308 = vunpack.c.l.bf16 %v288
      %v309 = vunpack.c.l.bf16 %v289
      %v310 = vunpack.c.l.bf16 %v290
      %v311 = vunpack.c.l.bf16 %v291
      %v312 = vunpack.c.l.bf16 %v292
      %v313 = vunpack.c.l.bf16 %v293
      %v314 = vld [vmem:[%s2] sm:$0x1]
      %v316 = vlaneseq
      %v317 = vshrl.u32 %v316, 7
      %v318 = vsub.s32 0, %v317
      %v319 = vrot.slane %v314, %v318
      %v321 = vmul.f32 %v294, %v319
      %v322 = vmul.f32 %v295, %v319
      %v323 = vmul.f32 %v296, %v319
      %v324 = vmul.f32 %v297, %v319
      %v325 = vmul.f32 %v298, %v319
      %v326 = vmul.f32 %v299, %v319
      %v327 = vmul.f32 %v300, %v319
      %v328 = vmul.f32 %v301, %v319
      %v329 = vmul.f32 %v302, %v319
      %v330 = vmul.f32 %v303, %v319
      %v331 = vmul.f32 %v304, %v319
      %v332 = vmul.f32 %v305, %v319
      %v333 = vmul.f32 %v306, %v319
      %v334 = vmul.f32 %v307, %v319
      %v335 = vmul.f32 %v308, %v319
      %v336 = vmul.f32 %v309, %v319
      %v337 = vmul.f32 %v310, %v319
      %v338 = vmul.f32 %v311, %v319
      %v339 = vmul.f32 %v312, %v319
      %v340 = vmul.f32 %v313, %v319
      %v341 = vld [vmem:[%s3] sm:$0x1]
      %v343 = vlaneseq
      %v344 = vshrl.u32 %v343, 7
      %v345 = vsub.s32 0, %v344
      %v346 = vrot.slane %v341, %v345
      %v348 = vadd.f32 %v321, %v346
      %v349 = vadd.f32 %v322, %v346
      %v350 = vadd.f32 %v323, %v346
      %v351 = vadd.f32 %v324, %v346
      %v352 = vadd.f32 %v325, %v346
      %v353 = vadd.f32 %v326, %v346
      %v354 = vadd.f32 %v327, %v346
      %v355 = vadd.f32 %v328, %v346
      %v356 = vadd.f32 %v329, %v346
      %v357 = vadd.f32 %v330, %v346
      %v358 = vadd.f32 %v331, %v346
      %v359 = vadd.f32 %v332, %v346
      %v360 = vadd.f32 %v333, %v346
      %v361 = vadd.f32 %v334, %v346
      %v362 = vadd.f32 %v335, %v346
      %v363 = vadd.f32 %v336, %v346
      %v364 = vadd.f32 %v337, %v346
      %v365 = vadd.f32 %v338, %v346
      %v366 = vadd.f32 %v339, %v346
      %v367 = vadd.f32 %v340, %v346
      %v368 = vmax.f32 %v348, 0.0
      %v369 = vmax.f32 %v349, 0.0
      %v370 = vmax.f32 %v350, 0.0
      %v371 = vmax.f32 %v351, 0.0
      %v372 = vmax.f32 %v352, 0.0
      %v373 = vmax.f32 %v353, 0.0
      %v374 = vmax.f32 %v354, 0.0
      %v375 = vmax.f32 %v355, 0.0
      %v376 = vmax.f32 %v356, 0.0
      %v377 = vmax.f32 %v357, 0.0
      %v378 = vmax.f32 %v358, 0.0
      %v379 = vmax.f32 %v359, 0.0
      %v380 = vmax.f32 %v360, 0.0
      %v381 = vmax.f32 %v361, 0.0
      %v382 = vmax.f32 %v362, 0.0
      %v383 = vmax.f32 %v363, 0.0
      %v384 = vmax.f32 %v364, 0.0
      %v385 = vmax.f32 %v365, 0.0
      %v386 = vmax.f32 %v366, 0.0
      %v387 = vmax.f32 %v367, 0.0
      %v388 = vlaneseq
      %v389 = vshrl.u32 %v388, 7
      %v390 = vadd.s32 %v389, 8
      %p391 = scmp.eq.s32.totalorder %s22, 0
      %s392 = scalar_select %p391, 1, 0
      %s393 = scalar_select %p391, 8, 9
      %v394 = vstv %s392
      %vm395 = vcmp.le.s32.totalorder %v394, 0
      %vm396 = vcmp.le.s32.totalorder %v394, 1
      %vm397 = vcmp.le.s32.totalorder %v394, 2
      %vm398 = vcmp.le.s32.totalorder %v394, 3
      %vm399 = vcmp.le.s32.totalorder %v394, 4
      %vm400 = vcmp.le.s32.totalorder %v394, 5
      %vm401 = vcmp.le.s32.totalorder %v394, 6
      %vm402 = vcmp.le.s32.totalorder %v394, 7
      %vm403 = vcmp.le.s32.totalorder %v394, 8
      %vm404 = vcmp.le.s32.totalorder %v394, 9
      %v405 = vstv %s393
      %vm406 = vcmp.ge.s32.totalorder %v405, 0
      %vm407 = vcmp.ge.s32.totalorder %v405, 1
      %vm408 = vcmp.ge.s32.totalorder %v405, 2
      %vm409 = vcmp.ge.s32.totalorder %v405, 3
      %vm410 = vcmp.ge.s32.totalorder %v405, 4
      %vm411 = vcmp.ge.s32.totalorder %v405, 5
      %vm412 = vcmp.ge.s32.totalorder %v405, 6
      %vm413 = vcmp.ge.s32.totalorder %v405, 7
      %vm414 = vcmp.ge.s32.totalorder %v405, 8
      %vm415 = vcmp.ge.s32.totalorder %v405, 9
      %vm416 = vmand %vm395, %vm406
      %vm417 = vmand %vm396, %vm407
      %vm418 = vmand %vm397, %vm408
      %vm419 = vmand %vm398, %vm409
      %vm420 = vmand %vm399, %vm410
      %vm421 = vmand %vm400, %vm411
      %vm422 = vmand %vm401, %vm412
      %vm423 = vmand %vm402, %vm413
      %vm424 = vmand %vm403, %vm414
      %vm425 = vmand %vm404, %vm415
      %vm426 = vcmp.ge.s32.totalorder %v389, 1
      %vm427 = vcmp.ge.s32.totalorder %v390, 1
      %vm428 = vmand %vm416, %vm426
      %vm429 = vmand %vm416, %vm427
      %vm430 = vmand %vm417, %vm426
      %vm431 = vmand %vm417, %vm427
      %vm432 = vmand %vm418, %vm426
      %vm433 = vmand %vm418, %vm427
      %vm434 = vmand %vm419, %vm426
      %vm435 = vmand %vm419, %vm427
      %vm436 = vmand %vm420, %vm426
      %vm437 = vmand %vm420, %vm427
      %vm438 = vmand %vm421, %vm426
      %vm439 = vmand %vm421, %vm427
      %vm440 = vmand %vm422, %vm426
      %vm441 = vmand %vm422, %vm427
      %vm442 = vmand %vm423, %vm426
      %vm443 = vmand %vm423, %vm427
      %vm444 = vmand %vm424, %vm426
      %vm445 = vmand %vm424, %vm427
      %vm446 = vmand %vm425, %vm426
      %vm447 = vmand %vm425, %vm427
      %vm448 = vcmp.le.s32.totalorder %v389, 8
      %vm449 = vcmp.le.s32.totalorder %v390, 8
      %vm450 = vmand %vm428, %vm448
      %vm451 = vmand %vm429, %vm449
      %vm452 = vmand %vm430, %vm448
      %vm453 = vmand %vm431, %vm449
      %vm454 = vmand %vm432, %vm448
      %vm455 = vmand %vm433, %vm449
      %vm456 = vmand %vm434, %vm448
      %vm457 = vmand %vm435, %vm449
      %vm458 = vmand %vm436, %vm448
      %vm459 = vmand %vm437, %vm449
      %vm460 = vmand %vm438, %vm448
      %vm461 = vmand %vm439, %vm449
      %vm462 = vmand %vm440, %vm448
      %vm463 = vmand %vm441, %vm449
      %vm464 = vmand %vm442, %vm448
      %vm465 = vmand %vm443, %vm449
      %vm466 = vmand %vm444, %vm448
      %vm467 = vmand %vm445, %vm449
      %vm468 = vmand %vm446, %vm448
      %vm469 = vmand %vm447, %vm449
      %v470 = vsel %vm450, 1, 0
      %v471 = vsel %vm451, 1, 0
      %v472 = vsel %vm452, 1, 0
      %v473 = vsel %vm453, 1, 0
      %v474 = vsel %vm454, 1, 0
      %v475 = vsel %vm455, 1, 0
      %v476 = vsel %vm456, 1, 0
      %v477 = vsel %vm457, 1, 0
      %v478 = vsel %vm458, 1, 0
      %v479 = vsel %vm459, 1, 0
      %v480 = vsel %vm460, 1, 0
      %v481 = vsel %vm461, 1, 0
      %v482 = vsel %vm462, 1, 0
      %v483 = vsel %vm463, 1, 0
      %v484 = vsel %vm464, 1, 0
      %v485 = vsel %vm465, 1, 0
      %v486 = vsel %vm466, 1, 0
      %v487 = vsel %vm467, 1, 0
      %v488 = vsel %vm468, 1, 0
      %v489 = vsel %vm469, 1, 0
      %vm490 = vcmp.eq.s32.totalorder %v470, 1
      %vm491 = vcmp.eq.s32.totalorder %v471, 1
      %vm492 = vcmp.eq.s32.totalorder %v472, 1
      %vm493 = vcmp.eq.s32.totalorder %v473, 1
      %vm494 = vcmp.eq.s32.totalorder %v474, 1
      %vm495 = vcmp.eq.s32.totalorder %v475, 1
      %vm496 = vcmp.eq.s32.totalorder %v476, 1
      %vm497 = vcmp.eq.s32.totalorder %v477, 1
      %vm498 = vcmp.eq.s32.totalorder %v478, 1
      %vm499 = vcmp.eq.s32.totalorder %v479, 1
      %vm500 = vcmp.eq.s32.totalorder %v480, 1
      %vm501 = vcmp.eq.s32.totalorder %v481, 1
      %vm502 = vcmp.eq.s32.totalorder %v482, 1
      %vm503 = vcmp.eq.s32.totalorder %v483, 1
      %vm504 = vcmp.eq.s32.totalorder %v484, 1
      %vm505 = vcmp.eq.s32.totalorder %v485, 1
      %vm506 = vcmp.eq.s32.totalorder %v486, 1
      %vm507 = vcmp.eq.s32.totalorder %v487, 1
      %vm508 = vcmp.eq.s32.totalorder %v488, 1
      %vm509 = vcmp.eq.s32.totalorder %v489, 1
      %v510 = vsel %vm490, %v368, 0.0
      %v511 = vsel %vm491, %v369, 0.0
      %v512 = vsel %vm492, %v370, 0.0
      %v513 = vsel %vm493, %v371, 0.0
      %v514 = vsel %vm494, %v372, 0.0
      %v515 = vsel %vm495, %v373, 0.0
      %v516 = vsel %vm496, %v374, 0.0
      %v517 = vsel %vm497, %v375, 0.0
      %v518 = vsel %vm498, %v376, 0.0
      %v519 = vsel %vm499, %v377, 0.0
      %v520 = vsel %vm500, %v378, 0.0
      %v521 = vsel %vm501, %v379, 0.0
      %v522 = vsel %vm502, %v380, 0.0
      %v523 = vsel %vm503, %v381, 0.0
      %v524 = vsel %vm504, %v382, 0.0
      %v525 = vsel %vm505, %v383, 0.0
      %v526 = vsel %vm506, %v384, 0.0
      %v527 = vsel %vm507, %v385, 0.0
      %v528 = vsel %vm508, %v386, 0.0
      %v529 = vsel %vm509, %v387, 0.0
      %v530 = vpack.c.bf16 %v511, %v510
      %v531 = vpack.c.bf16 %v513, %v512
      %v532 = vpack.c.bf16 %v515, %v514
      %v533 = vpack.c.bf16 %v517, %v516
      %v534 = vpack.c.bf16 %v519, %v518
      %v535 = vpack.c.bf16 %v521, %v520
      %v536 = vpack.c.bf16 %v523, %v522
      %v537 = vpack.c.bf16 %v525, %v524
      %v538 = vpack.c.bf16 %v527, %v526
      %v539 = vpack.c.bf16 %v529, %v528
      %v550 = vunpack.c.l.b16 %v530
      %v551 = vunpack.c.h.b16 %v530
      %v552 = vunpack.c.l.b16 %v531
      %v553 = vunpack.c.h.b16 %v531
      %v554 = vunpack.c.l.b16 %v532
      %v555 = vunpack.c.h.b16 %v532
      %v556 = vunpack.c.l.b16 %v533
      %v557 = vunpack.c.h.b16 %v533
      %v558 = vunpack.c.l.b16 %v534
      %v559 = vunpack.c.h.b16 %v534
      %v560 = vunpack.c.l.b16 %v535
      %v561 = vunpack.c.h.b16 %v535
      %v562 = vunpack.c.l.b16 %v536
      %v563 = vunpack.c.h.b16 %v536
      %v564 = vunpack.c.l.b16 %v537
      %v565 = vunpack.c.h.b16 %v537
      %v566 = vunpack.c.l.b16 %v538
      %v567 = vunpack.c.h.b16 %v538
      %v568 = vunpack.c.l.b16 %v539
      %v569 = vunpack.c.h.b16 %v539
      %v570 = vpack.c.b16 %v550, %v550
      %v571 = vpack.c.b16 %v551, %v551
      %v572 = vpack.c.b16 %v552, %v552
      %v573 = vpack.c.b16 %v553, %v553
      %v574 = vpack.c.b16 %v554, %v554
      %v575 = vpack.c.b16 %v555, %v555
      %v576 = vpack.c.b16 %v556, %v556
      %v577 = vpack.c.b16 %v557, %v557
      %v578 = vpack.c.b16 %v558, %v558
      %v579 = vpack.c.b16 %v559, %v559
      %v580 = vpack.c.b16 %v560, %v560
      %v581 = vpack.c.b16 %v561, %v561
      %v582 = vpack.c.b16 %v562, %v562
      %v583 = vpack.c.b16 %v563, %v563
      %v584 = vpack.c.b16 %v564, %v564
      %v585 = vpack.c.b16 %v565, %v565
      %v586 = vpack.c.b16 %v566, %v566
      %v587 = vpack.c.b16 %v567, %v567
      %v588 = vpack.c.b16 %v568, %v568
      %v589 = vpack.c.b16 %v569, %v569
      %610 = vst [vmem:[#allocation2] sm:$0xf] %v570
      %611 = vst [vmem:[#allocation2 + $0x4] sm:$0x1] %v571
      %612 = vst [vmem:[#allocation2 + $0x8] sm:$0xf] %v572
      %613 = vst [vmem:[#allocation2 + $0xc] sm:$0x1] %v573
      %614 = vst [vmem:[#allocation2 + $0x10] sm:$0xf] %v574
      %615 = vst [vmem:[#allocation2 + $0x14] sm:$0x1] %v575
      %616 = vst [vmem:[#allocation2 + $0x18] sm:$0xf] %v576
      %617 = vst [vmem:[#allocation2 + $0x1c] sm:$0x1] %v577
      %618 = vst [vmem:[#allocation2 + $0x20] sm:$0xf] %v578
      %619 = vst [vmem:[#allocation2 + $0x24] sm:$0x1] %v579
      %620 = vst [vmem:[#allocation2 + $0x28] sm:$0xf] %v580
      %621 = vst [vmem:[#allocation2 + $0x2c] sm:$0x1] %v581
      %622 = vst [vmem:[#allocation2 + $0x30] sm:$0xf] %v582
      %623 = vst [vmem:[#allocation2 + $0x34] sm:$0x1] %v583
      %624 = vst [vmem:[#allocation2 + $0x38] sm:$0xf] %v584
      %625 = vst [vmem:[#allocation2 + $0x3c] sm:$0x1] %v585
      %626 = vst [vmem:[#allocation2 + $0x40] sm:$0xf] %v586
      %627 = vst [vmem:[#allocation2 + $0x44] sm:$0x1] %v587
      %628 = vst [vmem:[#allocation2 + $0x48] sm:$0xf] %v588
      %629 = vst [vmem:[#allocation2 + $0x4c] sm:$0x1] %v589
      %v630 = vld [vmem:[#allocation2] sm:$0xf]
      %v631 = vld [vmem:[#allocation2 + $0x8] sm:$0xf]
      %v632 = vld [vmem:[#allocation2 + $0x10] sm:$0xf]
      %v633 = vld [vmem:[#allocation2 + $0x18] sm:$0xf]
      %v634 = vld [vmem:[#allocation2 + $0x20] sm:$0xf]
      %v635 = vld [vmem:[#allocation2 + $0x28] sm:$0xf]
      %v636 = vld [vmem:[#allocation2 + $0x30] sm:$0xf]
      %v637 = vld [vmem:[#allocation2 + $0x38] sm:$0xf]
      %v646 = vunpack.c.l.b16 %v630
      %v647 = vunpack.c.l.b16 %v631
      %v648 = vunpack.c.l.b16 %v632
      %v649 = vunpack.c.l.b16 %v633
      %v650 = vunpack.c.l.b16 %v634
      %v651 = vunpack.c.l.b16 %v635
      %v652 = vunpack.c.l.b16 %v636
      %v653 = vunpack.c.l.b16 %v637
      %v654 = vpack.c.b16 %v647, %v646
      %v655 = vpack.c.b16 %v649, %v648
      %v656 = vpack.c.b16 %v651, %v650
      %v657 = vpack.c.b16 %v653, %v652
      %662 = vst [vmem:[#allocation3] sm:$0xff] %v654
      %663 = vst [vmem:[#allocation3 + $0x48] sm:$0xff] %v655
      %664 = vst [vmem:[#allocation3 + $0x90] sm:$0xff] %v656
      %665 = vst [vmem:[#allocation3 + $0xd8] sm:$0xff] %v657
      %v666 = vld [vmem:[#allocation2] sm:$0xf]
      %v667 = vld [vmem:[#allocation2 + $0x4] sm:$0x1]
      %v668 = vld [vmem:[#allocation2 + $0x8] sm:$0xf]
      %v669 = vld [vmem:[#allocation2 + $0xc] sm:$0x1]
      %v670 = vld [vmem:[#allocation2 + $0x10] sm:$0xf]
      %v671 = vld [vmem:[#allocation2 + $0x14] sm:$0x1]
      %v672 = vld [vmem:[#allocation2 + $0x18] sm:$0xf]
      %v673 = vld [vmem:[#allocation2 + $0x1c] sm:$0x1]
      %v674 = vld [vmem:[#allocation2 + $0x20] sm:$0xf]
      %v675 = vld [vmem:[#allocation2 + $0x24] sm:$0x1]
      %v676 = vld [vmem:[#allocation2 + $0x28] sm:$0xf]
      %v677 = vld [vmem:[#allocation2 + $0x2c] sm:$0x1]
      %v678 = vld [vmem:[#allocation2 + $0x30] sm:$0xf]
      %v679 = vld [vmem:[#allocation2 + $0x34] sm:$0x1]
      %v680 = vld [vmem:[#allocation2 + $0x38] sm:$0xf]
      %v681 = vld [vmem:[#allocation2 + $0x3c] sm:$0x1]
      %vm682 = vsmask.f32 3328
      %vm683 = vsmask.f32 7440
      %vm684 = vmor %vm682, %vm683
      %v686 = vshrl.u32 %v666, 16
      %v688 = vrot.slane %v686, 4
      %v689 = vshll.u32 %v666, 16
      %v691 = vrot.slane %v689, 5
      %v692 = vor.u32 %v688, %v691
      %v693 = vrot.slane %v692, 4
      %v695 = vshll.u32 %v667, 16
      %v697 = vrot.slane %v695, 5
      %v698 = vsel %vm684, %v693, %v697
      %v700 = vshrl.u32 %v668, 16
      %v702 = vrot.slane %v700, 4
      %v703 = vshll.u32 %v668, 16
      %v705 = vrot.slane %v703, 5
      %v706 = vor.u32 %v702, %v705
      %v707 = vrot.slane %v706, 4
      %v709 = vshll.u32 %v669, 16
      %v711 = vrot.slane %v709, 5
      %v712 = vsel %vm684, %v707, %v711
      %v714 = vshrl.u32 %v670, 16
      %v716 = vrot.slane %v714, 4
      %v717 = vshll.u32 %v670, 16
      %v719 = vrot.slane %v717, 5
      %v720 = vor.u32 %v716, %v719
      %v721 = vrot.slane %v720, 4
      %v723 = vshll.u32 %v671, 16
      %v725 = vrot.slane %v723, 5
      %v726 = vsel %vm684, %v721, %v725
      %v728 = vshrl.u32 %v672, 16
      %v730 = vrot.slane %v728, 4
      %v731 = vshll.u32 %v672, 16
      %v733 = vrot.slane %v731, 5
      %v734 = vor.u32 %v730, %v733
      %v735 = vrot.slane %v734, 4
      %v737 = vshll.u32 %v673, 16
      %v739 = vrot.slane %v737, 5
      %v740 = vsel %vm684, %v735, %v739
      %v742 = vshrl.u32 %v674, 16
      %v744 = vrot.slane %v742, 4
      %v745 = vshll.u32 %v674, 16
      %v747 = vrot.slane %v745, 5
      %v748 = vor.u32 %v744, %v747
      %v749 = vrot.slane %v748, 4
      %v751 = vshll.u32 %v675, 16
      %v753 = vrot.slane %v751, 5
      %v754 = vsel %vm684, %v749, %v753
      %v756 = vshrl.u32 %v676, 16
      %v758 = vrot.slane %v756, 4
      %v759 = vshll.u32 %v676, 16
      %v761 = vrot.slane %v759, 5
      %v762 = vor.u32 %v758, %v761
      %v763 = vrot.slane %v762, 4
      %v765 = vshll.u32 %v677, 16
      %v767 = vrot.slane %v765, 5
      %v768 = vsel %vm684, %v763, %v767
      %v770 = vshrl.u32 %v678, 16
      %v772 = vrot.slane %v770, 4
      %v773 = vshll.u32 %v678, 16
      %v775 = vrot.slane %v773, 5
      %v776 = vor.u32 %v772, %v775
      %v777 = vrot.slane %v776, 4
      %v779 = vshll.u32 %v679, 16
      %v781 = vrot.slane %v779, 5
      %v782 = vsel %vm684, %v777, %v781
      %v784 = vshrl.u32 %v680, 16
      %v786 = vrot.slane %v784, 4
      %v787 = vshll.u32 %v680, 16
      %v789 = vrot.slane %v787, 5
      %v790 = vor.u32 %v786, %v789
      %v791 = vrot.slane %v790, 4
      %v793 = vshll.u32 %v681, 16
      %v795 = vrot.slane %v793, 5
      %v796 = vsel %vm684, %v791, %v795
      %v797 = vunpack.c.l.b16 %v698
      %v798 = vunpack.c.l.b16 %v712
      %v799 = vunpack.c.l.b16 %v726
      %v800 = vunpack.c.l.b16 %v740
      %v801 = vunpack.c.l.b16 %v754
      %v802 = vunpack.c.l.b16 %v768
      %v803 = vunpack.c.l.b16 %v782
      %v804 = vunpack.c.l.b16 %v796
      %v805 = vpack.c.b16 %v798, %v797
      %v806 = vpack.c.b16 %v800, %v799
      %v807 = vpack.c.b16 %v802, %v801
      %v808 = vpack.c.b16 %v804, %v803
      %813 = vst [vmem:[#allocation3 + $0x8] sm:$0xff] %v805
      %814 = vst [vmem:[#allocation3 + $0x50] sm:$0xff] %v806
      %815 = vst [vmem:[#allocation3 + $0x98] sm:$0xff] %v807
      %816 = vst [vmem:[#allocation3 + $0xe0] sm:$0xff] %v808
      %v817 = vld [vmem:[#allocation2] sm:$0xe]
      %v818 = vld [vmem:[#allocation2 + $0x4] sm:$0x1]
      %v819 = vld [vmem:[#allocation2 + $0x8] sm:$0xe]
      %v820 = vld [vmem:[#allocation2 + $0xc] sm:$0x1]
      %v821 = vld [vmem:[#allocation2 + $0x10] sm:$0xe]
      %v822 = vld [vmem:[#allocation2 + $0x14] sm:$0x1]
      %v823 = vld [vmem:[#allocation2 + $0x18] sm:$0xe]
      %v824 = vld [vmem:[#allocation2 + $0x1c] sm:$0x1]
      %v825 = vld [vmem:[#allocation2 + $0x20] sm:$0xe]
      %v826 = vld [vmem:[#allocation2 + $0x24] sm:$0x1]
      %v827 = vld [vmem:[#allocation2 + $0x28] sm:$0xe]
      %v828 = vld [vmem:[#allocation2 + $0x2c] sm:$0x1]
      %v829 = vld [vmem:[#allocation2 + $0x30] sm:$0xe]
      %v830 = vld [vmem:[#allocation2 + $0x34] sm:$0x1]
      %v831 = vld [vmem:[#allocation2 + $0x38] sm:$0xe]
      %v832 = vld [vmem:[#allocation2 + $0x3c] sm:$0x1]
      %vm849 = vcmask 1042432
      %vm850 = vcmask 1046532
      %vm851 = vmor %vm849, %vm850
      %v852 = vrot.slane %v817, 5
      %v853 = vrot.slane %v852, 4
      %v854 = vrot.slane %v818, 5
      %v855 = vsel %vm851, %v853, %v854
      %v856 = vrot.slane %v819, 5
      %v857 = vrot.slane %v856, 4
      %v858 = vrot.slane %v820, 5
      %v859 = vsel %vm851, %v857, %v858
      %v860 = vrot.slane %v821, 5
      %v861 = vrot.slane %v860, 4
      %v862 = vrot.slane %v822, 5
      %v863 = vsel %vm851, %v861, %v862
      %v864 = vrot.slane %v823, 5
      %v865 = vrot.slane %v864, 4
      %v866 = vrot.slane %v824, 5
      %v867 = vsel %vm851, %v865, %v866
      %v868 = vrot.slane %v825, 5
      %v869 = vrot.slane %v868, 4
      %v870 = vrot.slane %v826, 5
      %v871 = vsel %vm851, %v869, %v870
      %v872 = vrot.slane %v827, 5
      %v873 = vrot.slane %v872, 4
      %v874 = vrot.slane %v828, 5
      %v875 = vsel %vm851, %v873, %v874
      %v876 = vrot.slane %v829, 5
      %v877 = vrot.slane %v876, 4
      %v878 = vrot.slane %v830, 5
      %v879 = vsel %vm851, %v877, %v878
      %v880 = vrot.slane %v831, 5
      %v881 = vrot.slane %v880, 4
      %v882 = vrot.slane %v832, 5
      %v883 = vsel %vm851, %v881, %v882
      %v884 = vunpack.c.l.b16 %v855
      %v885 = vunpack.c.l.b16 %v859
      %v886 = vunpack.c.l.b16 %v863
      %v887 = vunpack.c.l.b16 %v867
      %v888 = vunpack.c.l.b16 %v871
      %v889 = vunpack.c.l.b16 %v875
      %v890 = vunpack.c.l.b16 %v879
      %v891 = vunpack.c.l.b16 %v883
      %v892 = vpack.c.b16 %v885, %v884
      %v893 = vpack.c.b16 %v887, %v886
      %v894 = vpack.c.b16 %v889, %v888
      %v895 = vpack.c.b16 %v891, %v890
      %900 = vst [vmem:[#allocation3 + $0x10] sm:$0xff] %v892
      %901 = vst [vmem:[#allocation3 + $0x58] sm:$0xff] %v893
      %902 = vst [vmem:[#allocation3 + $0xa0] sm:$0xff] %v894
      %903 = vst [vmem:[#allocation3 + $0xe8] sm:$0xff] %v895
      %s904 = scalar_lea.vmem [#allocation2], 8
      %v905 = vld [vmem:[%s904] sm:$0xf]
      %v906 = vld [vmem:[%s904 + $0x8] sm:$0xf]
      %v907 = vld [vmem:[%s904 + $0x10] sm:$0xf]
      %v908 = vld [vmem:[%s904 + $0x18] sm:$0xf]
      %v909 = vld [vmem:[%s904 + $0x20] sm:$0xf]
      %v910 = vld [vmem:[%s904 + $0x28] sm:$0xf]
      %v911 = vld [vmem:[%s904 + $0x30] sm:$0xf]
      %v912 = vld [vmem:[%s904 + $0x38] sm:$0xf]
      %v921 = vunpack.c.l.b16 %v905
      %v922 = vunpack.c.l.b16 %v906
      %v923 = vunpack.c.l.b16 %v907
      %v924 = vunpack.c.l.b16 %v908
      %v925 = vunpack.c.l.b16 %v909
      %v926 = vunpack.c.l.b16 %v910
      %v927 = vunpack.c.l.b16 %v911
      %v928 = vunpack.c.l.b16 %v912
      %v929 = vpack.c.b16 %v922, %v921
      %v930 = vpack.c.b16 %v924, %v923
      %v931 = vpack.c.b16 %v926, %v925
      %v932 = vpack.c.b16 %v928, %v927
      %937 = vst [vmem:[#allocation3 + $0x18] sm:$0xff] %v929
      %938 = vst [vmem:[#allocation3 + $0x60] sm:$0xff] %v930
      %939 = vst [vmem:[#allocation3 + $0xa8] sm:$0xff] %v931
      %940 = vst [vmem:[#allocation3 + $0xf0] sm:$0xff] %v932
      %v941 = vld [vmem:[%s904] sm:$0xf]
      %v942 = vld [vmem:[%s904 + $0x4] sm:$0x1]
      %v943 = vld [vmem:[%s904 + $0x8] sm:$0xf]
      %v944 = vld [vmem:[%s904 + $0xc] sm:$0x1]
      %v945 = vld [vmem:[%s904 + $0x10] sm:$0xf]
      %v946 = vld [vmem:[%s904 + $0x14] sm:$0x1]
      %v947 = vld [vmem:[%s904 + $0x18] sm:$0xf]
      %v948 = vld [vmem:[%s904 + $0x1c] sm:$0x1]
      %v949 = vld [vmem:[%s904 + $0x20] sm:$0xf]
      %v950 = vld [vmem:[%s904 + $0x24] sm:$0x1]
      %v951 = vld [vmem:[%s904 + $0x28] sm:$0xf]
      %v952 = vld [vmem:[%s904 + $0x2c] sm:$0x1]
      %v953 = vld [vmem:[%s904 + $0x30] sm:$0xf]
      %v954 = vld [vmem:[%s904 + $0x34] sm:$0x1]
      %v955 = vld [vmem:[%s904 + $0x38] sm:$0xf]
      %v956 = vld [vmem:[%s904 + $0x3c] sm:$0x1]
      %v958 = vshrl.u32 %v941, 16
      %v960 = vrot.slane %v958, 4
      %v961 = vshll.u32 %v941, 16
      %v963 = vrot.slane %v961, 5
      %v964 = vor.u32 %v960, %v963
      %v965 = vrot.slane %v964, 4
      %v967 = vshll.u32 %v942, 16
      %v969 = vrot.slane %v967, 5
      %v970 = vsel %vm684, %v965, %v969
      %v972 = vshrl.u32 %v943, 16
      %v974 = vrot.slane %v972, 4
      %v975 = vshll.u32 %v943, 16
      %v977 = vrot.slane %v975, 5
      %v978 = vor.u32 %v974, %v977
      %v979 = vrot.slane %v978, 4
      %v981 = vshll.u32 %v944, 16
      %v983 = vrot.slane %v981, 5
      %v984 = vsel %vm684, %v979, %v983
      %v986 = vshrl.u32 %v945, 16
      %v988 = vrot.slane %v986, 4
      %v989 = vshll.u32 %v945, 16
      %v991 = vrot.slane %v989, 5
      %v992 = vor.u32 %v988, %v991
      %v993 = vrot.slane %v992, 4
      %v995 = vshll.u32 %v946, 16
      %v997 = vrot.slane %v995, 5
      %v998 = vsel %vm684, %v993, %v997
      %v1000 = vshrl.u32 %v947, 16
      %v1002 = vrot.slane %v1000, 4
      %v1003 = vshll.u32 %v947, 16
      %v1005 = vrot.slane %v1003, 5
      %v1006 = vor.u32 %v1002, %v1005
      %v1007 = vrot.slane %v1006, 4
      %v1009 = vshll.u32 %v948, 16
      %v1011 = vrot.slane %v1009, 5
      %v1012 = vsel %vm684, %v1007, %v1011
      %v1014 = vshrl.u32 %v949, 16
      %v1016 = vrot.slane %v1014, 4
      %v1017 = vshll.u32 %v949, 16
      %v1019 = vrot.slane %v1017, 5
      %v1020 = vor.u32 %v1016, %v1019
      %v1021 = vrot.slane %v1020, 4
      %v1023 = vshll.u32 %v950, 16
      %v1025 = vrot.slane %v1023, 5
      %v1026 = vsel %vm684, %v1021, %v1025
      %v1028 = vshrl.u32 %v951, 16
      %v1030 = vrot.slane %v1028, 4
      %v1031 = vshll.u32 %v951, 16
      %v1033 = vrot.slane %v1031, 5
      %v1034 = vor.u32 %v1030, %v1033
      %v1035 = vrot.slane %v1034, 4
      %v1037 = vshll.u32 %v952, 16
      %v1039 = vrot.slane %v1037, 5
      %v1040 = vsel %vm684, %v1035, %v1039
      %v1042 = vshrl.u32 %v953, 16
      %v1044 = vrot.slane %v1042, 4
      %v1045 = vshll.u32 %v953, 16
      %v1047 = vrot.slane %v1045, 5
      %v1048 = vor.u32 %v1044, %v1047
      %v1049 = vrot.slane %v1048, 4
      %v1051 = vshll.u32 %v954, 16
      %v1053 = vrot.slane %v1051, 5
      %v1054 = vsel %vm684, %v1049, %v1053
      %v1056 = vshrl.u32 %v955, 16
      %v1058 = vrot.slane %v1056, 4
      %v1059 = vshll.u32 %v955, 16
      %v1061 = vrot.slane %v1059, 5
      %v1062 = vor.u32 %v1058, %v1061
      %v1063 = vrot.slane %v1062, 4
      %v1065 = vshll.u32 %v956, 16
      %v1067 = vrot.slane %v1065, 5
      %v1068 = vsel %vm684, %v1063, %v1067
      %v1069 = vunpack.c.l.b16 %v970
      %v1070 = vunpack.c.l.b16 %v984
      %v1071 = vunpack.c.l.b16 %v998
      %v1072 = vunpack.c.l.b16 %v1012
      %v1073 = vunpack.c.l.b16 %v1026
      %v1074 = vunpack.c.l.b16 %v1040
      %v1075 = vunpack.c.l.b16 %v1054
      %v1076 = vunpack.c.l.b16 %v1068
      %v1077 = vpack.c.b16 %v1070, %v1069
      %v1078 = vpack.c.b16 %v1072, %v1071
      %v1079 = vpack.c.b16 %v1074, %v1073
      %v1080 = vpack.c.b16 %v1076, %v1075
      %1085 = vst [vmem:[#allocation3 + $0x20] sm:$0xff] %v1077
      %1086 = vst [vmem:[#allocation3 + $0x68] sm:$0xff] %v1078
      %1087 = vst [vmem:[#allocation3 + $0xb0] sm:$0xff] %v1079
      %1088 = vst [vmem:[#allocation3 + $0xf8] sm:$0xff] %v1080
      %v1089 = vld [vmem:[%s904] sm:$0xe]
      %v1090 = vld [vmem:[%s904 + $0x4] sm:$0x1]
      %v1091 = vld [vmem:[%s904 + $0x8] sm:$0xe]
      %v1092 = vld [vmem:[%s904 + $0xc] sm:$0x1]
      %v1093 = vld [vmem:[%s904 + $0x10] sm:$0xe]
      %v1094 = vld [vmem:[%s904 + $0x14] sm:$0x1]
      %v1095 = vld [vmem:[%s904 + $0x18] sm:$0xe]
      %v1096 = vld [vmem:[%s904 + $0x1c] sm:$0x1]
      %v1097 = vld [vmem:[%s904 + $0x20] sm:$0xe]
      %v1098 = vld [vmem:[%s904 + $0x24] sm:$0x1]
      %v1099 = vld [vmem:[%s904 + $0x28] sm:$0xe]
      %v1100 = vld [vmem:[%s904 + $0x2c] sm:$0x1]
      %v1101 = vld [vmem:[%s904 + $0x30] sm:$0xe]
      %v1102 = vld [vmem:[%s904 + $0x34] sm:$0x1]
      %v1103 = vld [vmem:[%s904 + $0x38] sm:$0xe]
      %v1104 = vld [vmem:[%s904 + $0x3c] sm:$0x1]
      %v1121 = vrot.slane %v1089, 5
      %v1122 = vrot.slane %v1121, 4
      %v1123 = vrot.slane %v1090, 5
      %v1124 = vsel %vm851, %v1122, %v1123
      %v1125 = vrot.slane %v1091, 5
      %v1126 = vrot.slane %v1125, 4
      %v1127 = vrot.slane %v1092, 5
      %v1128 = vsel %vm851, %v1126, %v1127
      %v1129 = vrot.slane %v1093, 5
      %v1130 = vrot.slane %v1129, 4
      %v1131 = vrot.slane %v1094, 5
      %v1132 = vsel %vm851, %v1130, %v1131
      %v1133 = vrot.slane %v1095, 5
      %v1134 = vrot.slane %v1133, 4
      %v1135 = vrot.slane %v1096, 5
      %v1136 = vsel %vm851, %v1134, %v1135
      %v1137 = vrot.slane %v1097, 5
      %v1138 = vrot.slane %v1137, 4
      %v1139 = vrot.slane %v1098, 5
      %v1140 = vsel %vm851, %v1138, %v1139
      %v1141 = vrot.slane %v1099, 5
      %v1142 = vrot.slane %v1141, 4
      %v1143 = vrot.slane %v1100, 5
      %v1144 = vsel %vm851, %v1142, %v1143
      %v1145 = vrot.slane %v1101, 5
      %v1146 = vrot.slane %v1145, 4
      %v1147 = vrot.slane %v1102, 5
      %v1148 = vsel %vm851, %v1146, %v1147
      %v1149 = vrot.slane %v1103, 5
      %v1150 = vrot.slane %v1149, 4
      %v1151 = vrot.slane %v1104, 5
      %v1152 = vsel %vm851, %v1150, %v1151
      %v1153 = vunpack.c.l.b16 %v1124
      %v1154 = vunpack.c.l.b16 %v1128
      %v1155 = vunpack.c.l.b16 %v1132
      %v1156 = vunpack.c.l.b16 %v1136
      %v1157 = vunpack.c.l.b16 %v1140
      %v1158 = vunpack.c.l.b16 %v1144
      %v1159 = vunpack.c.l.b16 %v1148
      %v1160 = vunpack.c.l.b16 %v1152
      %v1161 = vpack.c.b16 %v1154, %v1153
      %v1162 = vpack.c.b16 %v1156, %v1155
      %v1163 = vpack.c.b16 %v1158, %v1157
      %v1164 = vpack.c.b16 %v1160, %v1159
      %1169 = vst [vmem:[#allocation3 + $0x28] sm:$0xff] %v1161
      %1170 = vst [vmem:[#allocation3 + $0x70] sm:$0xff] %v1162
      %1171 = vst [vmem:[#allocation3 + $0xb8] sm:$0xff] %v1163
      %1172 = vst [vmem:[#allocation3 + $0x100] sm:$0xff] %v1164
      %s1173 = scalar_lea.vmem [#allocation2], 16
      %v1174 = vld [vmem:[%s1173] sm:$0xf]
      %v1175 = vld [vmem:[%s1173 + $0x8] sm:$0xf]
      %v1176 = vld [vmem:[%s1173 + $0x10] sm:$0xf]
      %v1177 = vld [vmem:[%s1173 + $0x18] sm:$0xf]
      %v1178 = vld [vmem:[%s1173 + $0x20] sm:$0xf]
      %v1179 = vld [vmem:[%s1173 + $0x28] sm:$0xf]
      %v1180 = vld [vmem:[%s1173 + $0x30] sm:$0xf]
      %v1181 = vld [vmem:[%s1173 + $0x38] sm:$0xf]
      %v1190 = vunpack.c.l.b16 %v1174
      %v1191 = vunpack.c.l.b16 %v1175
      %v1192 = vunpack.c.l.b16 %v1176
      %v1193 = vunpack.c.l.b16 %v1177
      %v1194 = vunpack.c.l.b16 %v1178
      %v1195 = vunpack.c.l.b16 %v1179
      %v1196 = vunpack.c.l.b16 %v1180
      %v1197 = vunpack.c.l.b16 %v1181
      %v1198 = vpack.c.b16 %v1191, %v1190
      %v1199 = vpack.c.b16 %v1193, %v1192
      %v1200 = vpack.c.b16 %v1195, %v1194
      %v1201 = vpack.c.b16 %v1197, %v1196
      %1206 = vst [vmem:[#allocation3 + $0x30] sm:$0xff] %v1198
      %1207 = vst [vmem:[#allocation3 + $0x78] sm:$0xff] %v1199
      %1208 = vst [vmem:[#allocation3 + $0xc0] sm:$0xff] %v1200
      %1209 = vst [vmem:[#allocation3 + $0x108] sm:$0xff] %v1201
      %v1210 = vld [vmem:[%s1173] sm:$0xf]
      %v1211 = vld [vmem:[%s1173 + $0x4] sm:$0x1]
      %v1212 = vld [vmem:[%s1173 + $0x8] sm:$0xf]
      %v1213 = vld [vmem:[%s1173 + $0xc] sm:$0x1]
      %v1214 = vld [vmem:[%s1173 + $0x10] sm:$0xf]
      %v1215 = vld [vmem:[%s1173 + $0x14] sm:$0x1]
      %v1216 = vld [vmem:[%s1173 + $0x18] sm:$0xf]
      %v1217 = vld [vmem:[%s1173 + $0x1c] sm:$0x1]
      %v1218 = vld [vmem:[%s1173 + $0x20] sm:$0xf]
      %v1219 = vld [vmem:[%s1173 + $0x24] sm:$0x1]
      %v1220 = vld [vmem:[%s1173 + $0x28] sm:$0xf]
      %v1221 = vld [vmem:[%s1173 + $0x2c] sm:$0x1]
      %v1222 = vld [vmem:[%s1173 + $0x30] sm:$0xf]
      %v1223 = vld [vmem:[%s1173 + $0x34] sm:$0x1]
      %v1224 = vld [vmem:[%s1173 + $0x38] sm:$0xf]
      %v1225 = vld [vmem:[%s1173 + $0x3c] sm:$0x1]
      %v1227 = vshrl.u32 %v1210, 16
      %v1229 = vrot.slane %v1227, 4
      %v1230 = vshll.u32 %v1210, 16
      %v1232 = vrot.slane %v1230, 5
      %v1233 = vor.u32 %v1229, %v1232
      %v1234 = vrot.slane %v1233, 4
      %v1236 = vshll.u32 %v1211, 16
      %v1238 = vrot.slane %v1236, 5
      %v1239 = vsel %vm684, %v1234, %v1238
      %v1241 = vshrl.u32 %v1212, 16
      %v1243 = vrot.slane %v1241, 4
      %v1244 = vshll.u32 %v1212, 16
      %v1246 = vrot.slane %v1244, 5
      %v1247 = vor.u32 %v1243, %v1246
      %v1248 = vrot.slane %v1247, 4
      %v1250 = vshll.u32 %v1213, 16
      %v1252 = vrot.slane %v1250, 5
      %v1253 = vsel %vm684, %v1248, %v1252
      %v1255 = vshrl.u32 %v1214, 16
      %v1257 = vrot.slane %v1255, 4
      %v1258 = vshll.u32 %v1214, 16
      %v1260 = vrot.slane %v1258, 5
      %v1261 = vor.u32 %v1257, %v1260
      %v1262 = vrot.slane %v1261, 4
      %v1264 = vshll.u32 %v1215, 16
      %v1266 = vrot.slane %v1264, 5
      %v1267 = vsel %vm684, %v1262, %v1266
      %v1269 = vshrl.u32 %v1216, 16
      %v1271 = vrot.slane %v1269, 4
      %v1272 = vshll.u32 %v1216, 16
      %v1274 = vrot.slane %v1272, 5
      %v1275 = vor.u32 %v1271, %v1274
      %v1276 = vrot.slane %v1275, 4
      %v1278 = vshll.u32 %v1217, 16
      %v1280 = vrot.slane %v1278, 5
      %v1281 = vsel %vm684, %v1276, %v1280
      %v1283 = vshrl.u32 %v1218, 16
      %v1285 = vrot.slane %v1283, 4
      %v1286 = vshll.u32 %v1218, 16
      %v1288 = vrot.slane %v1286, 5
      %v1289 = vor.u32 %v1285, %v1288
      %v1290 = vrot.slane %v1289, 4
      %v1292 = vshll.u32 %v1219, 16
      %v1294 = vrot.slane %v1292, 5
      %v1295 = vsel %vm684, %v1290, %v1294
      %v1297 = vshrl.u32 %v1220, 16
      %v1299 = vrot.slane %v1297, 4
      %v1300 = vshll.u32 %v1220, 16
      %v1302 = vrot.slane %v1300, 5
      %v1303 = vor.u32 %v1299, %v1302
      %v1304 = vrot.slane %v1303, 4
      %v1306 = vshll.u32 %v1221, 16
      %v1308 = vrot.slane %v1306, 5
      %v1309 = vsel %vm684, %v1304, %v1308
      %v1311 = vshrl.u32 %v1222, 16
      %v1313 = vrot.slane %v1311, 4
      %v1314 = vshll.u32 %v1222, 16
      %v1316 = vrot.slane %v1314, 5
      %v1317 = vor.u32 %v1313, %v1316
      %v1318 = vrot.slane %v1317, 4
      %v1320 = vshll.u32 %v1223, 16
      %v1322 = vrot.slane %v1320, 5
      %v1323 = vsel %vm684, %v1318, %v1322
      %v1325 = vshrl.u32 %v1224, 16
      %v1327 = vrot.slane %v1325, 4
      %v1328 = vshll.u32 %v1224, 16
      %v1330 = vrot.slane %v1328, 5
      %v1331 = vor.u32 %v1327, %v1330
      %v1332 = vrot.slane %v1331, 4
      %v1334 = vshll.u32 %v1225, 16
      %v1336 = vrot.slane %v1334, 5
      %v1337 = vsel %vm684, %v1332, %v1336
      %v1338 = vunpack.c.l.b16 %v1239
      %v1339 = vunpack.c.l.b16 %v1253
      %v1340 = vunpack.c.l.b16 %v1267
      %v1341 = vunpack.c.l.b16 %v1281
      %v1342 = vunpack.c.l.b16 %v1295
      %v1343 = vunpack.c.l.b16 %v1309
      %v1344 = vunpack.c.l.b16 %v1323
      %v1345 = vunpack.c.l.b16 %v1337
      %v1346 = vpack.c.b16 %v1339, %v1338
      %v1347 = vpack.c.b16 %v1341, %v1340
      %v1348 = vpack.c.b16 %v1343, %v1342
      %v1349 = vpack.c.b16 %v1345, %v1344
      %1354 = vst [vmem:[#allocation3 + $0x38] sm:$0xff] %v1346
      %1355 = vst [vmem:[#allocation3 + $0x80] sm:$0xff] %v1347
      %1356 = vst [vmem:[#allocation3 + $0xc8] sm:$0xff] %v1348
      %1357 = vst [vmem:[#allocation3 + $0x110] sm:$0xff] %v1349
      %v1358 = vld [vmem:[%s1173] sm:$0xe]
      %v1359 = vld [vmem:[%s1173 + $0x4] sm:$0x1]
      %v1360 = vld [vmem:[%s1173 + $0x8] sm:$0xe]
      %v1361 = vld [vmem:[%s1173 + $0xc] sm:$0x1]
      %v1362 = vld [vmem:[%s1173 + $0x10] sm:$0xe]
      %v1363 = vld [vmem:[%s1173 + $0x14] sm:$0x1]
      %v1364 = vld [vmem:[%s1173 + $0x18] sm:$0xe]
      %v1365 = vld [vmem:[%s1173 + $0x1c] sm:$0x1]
      %v1366 = vld [vmem:[%s1173 + $0x20] sm:$0xe]
      %v1367 = vld [vmem:[%s1173 + $0x24] sm:$0x1]
      %v1368 = vld [vmem:[%s1173 + $0x28] sm:$0xe]
      %v1369 = vld [vmem:[%s1173 + $0x2c] sm:$0x1]
      %v1370 = vld [vmem:[%s1173 + $0x30] sm:$0xe]
      %v1371 = vld [vmem:[%s1173 + $0x34] sm:$0x1]
      %v1372 = vld [vmem:[%s1173 + $0x38] sm:$0xe]
      %v1373 = vld [vmem:[%s1173 + $0x3c] sm:$0x1]
      %v1390 = vrot.slane %v1358, 5
      %v1391 = vrot.slane %v1390, 4
      %v1392 = vrot.slane %v1359, 5
      %v1393 = vsel %vm851, %v1391, %v1392
      %v1394 = vrot.slane %v1360, 5
      %v1395 = vrot.slane %v1394, 4
      %v1396 = vrot.slane %v1361, 5
      %v1397 = vsel %vm851, %v1395, %v1396
      %v1398 = vrot.slane %v1362, 5
      %v1399 = vrot.slane %v1398, 4
      %v1400 = vrot.slane %v1363, 5
      %v1401 = vsel %vm851, %v1399, %v1400
      %v1402 = vrot.slane %v1364, 5
      %v1403 = vrot.slane %v1402, 4
      %v1404 = vrot.slane %v1365, 5
      %v1405 = vsel %vm851, %v1403, %v1404
      %v1406 = vrot.slane %v1366, 5
      %v1407 = vrot.slane %v1406, 4
      %v1408 = vrot.slane %v1367, 5
      %v1409 = vsel %vm851, %v1407, %v1408
      %v1410 = vrot.slane %v1368, 5
      %v1411 = vrot.slane %v1410, 4
      %v1412 = vrot.slane %v1369, 5
      %v1413 = vsel %vm851, %v1411, %v1412
      %v1414 = vrot.slane %v1370, 5
      %v1415 = vrot.slane %v1414, 4
      %v1416 = vrot.slane %v1371, 5
      %v1417 = vsel %vm851, %v1415, %v1416
      %v1418 = vrot.slane %v1372, 5
      %v1419 = vrot.slane %v1418, 4
      %v1420 = vrot.slane %v1373, 5
      %v1421 = vsel %vm851, %v1419, %v1420
      %v1422 = vunpack.c.l.b16 %v1393
      %v1423 = vunpack.c.l.b16 %v1397
      %v1424 = vunpack.c.l.b16 %v1401
      %v1425 = vunpack.c.l.b16 %v1405
      %v1426 = vunpack.c.l.b16 %v1409
      %v1427 = vunpack.c.l.b16 %v1413
      %v1428 = vunpack.c.l.b16 %v1417
      %v1429 = vunpack.c.l.b16 %v1421
      %v1430 = vpack.c.b16 %v1423, %v1422
      %v1431 = vpack.c.b16 %v1425, %v1424
      %v1432 = vpack.c.b16 %v1427, %v1426
      %v1433 = vpack.c.b16 %v1429, %v1428
      %1438 = vst [vmem:[#allocation3 + $0x40] sm:$0xff] %v1430
      %1439 = vst [vmem:[#allocation3 + $0x88] sm:$0xff] %v1431
      %1440 = vst [vmem:[#allocation3 + $0xd0] sm:$0xff] %v1432
      %1441 = vst [vmem:[#allocation3 + $0x118] sm:$0xff] %v1433
      %v1442 = vld [vmem:[#allocation3] sm:$0xff]
      %v1443 = vld [vmem:[#allocation3 + $0x8] sm:$0xff]
      %v1444 = vld [vmem:[#allocation3 + $0x10] sm:$0xff]
      %v1445 = vld [vmem:[#allocation3 + $0x18] sm:$0xff]
      %v1446 = vld [vmem:[#allocation3 + $0x20] sm:$0xff]
      %v1447 = vld [vmem:[#allocation3 + $0x28] sm:$0xff]
      %v1448 = vld [vmem:[#allocation3 + $0x30] sm:$0xff]
      %v1449 = vld [vmem:[#allocation3 + $0x38] sm:$0xff]
      %v1450 = vld [vmem:[#allocation3 + $0x40] sm:$0xff]
      %v1451 = vld [vmem:[#allocation3 + $0x48] sm:$0xff]
      %v1452 = vld [vmem:[#allocation3 + $0x50] sm:$0xff]
      %v1453 = vld [vmem:[#allocation3 + $0x58] sm:$0xff]
      %v1454 = vld [vmem:[#allocation3 + $0x60] sm:$0xff]
      %v1455 = vld [vmem:[#allocation3 + $0x68] sm:$0xff]
      %v1456 = vld [vmem:[#allocation3 + $0x70] sm:$0xff]
      %v1457 = vld [vmem:[#allocation3 + $0x78] sm:$0xff]
      %v1458 = vld [vmem:[#allocation3 + $0x80] sm:$0xff]
      %v1459 = vld [vmem:[#allocation3 + $0x88] sm:$0xff]
      %v1460 = vld [vmem:[#allocation3 + $0x90] sm:$0xff]
      %v1461 = vld [vmem:[#allocation3 + $0x98] sm:$0xff]
      %v1462 = vld [vmem:[#allocation3 + $0xa0] sm:$0xff]
      %v1463 = vld [vmem:[#allocation3 + $0xa8] sm:$0xff]
      %v1464 = vld [vmem:[#allocation3 + $0xb0] sm:$0xff]
      %v1465 = vld [vmem:[#allocation3 + $0xb8] sm:$0xff]
      %v1466 = vld [vmem:[#allocation3 + $0xc0] sm:$0xff]
      %v1467 = vld [vmem:[#allocation3 + $0xc8] sm:$0xff]
      %v1468 = vld [vmem:[#allocation3 + $0xd0] sm:$0xff]
      %v1469 = vld [vmem:[#allocation3 + $0xd8] sm:$0xff]
      %v1470 = vld [vmem:[#allocation3 + $0xe0] sm:$0xff]
      %v1471 = vld [vmem:[#allocation3 + $0xe8] sm:$0xff]
      %v1472 = vld [vmem:[#allocation3 + $0xf0] sm:$0xff]
      %v1473 = vld [vmem:[#allocation3 + $0xf8] sm:$0xff]
      %v1474 = vld [vmem:[#allocation3 + $0x100] sm:$0xff]
      %v1475 = vld [vmem:[#allocation3 + $0x108] sm:$0xff]
      %v1476 = vld [vmem:[#allocation3 + $0x110] sm:$0xff]
      %v1477 = vld [vmem:[#allocation3 + $0x118] sm:$0xff]
      %v1478 = vld [vmem:[%s1] sm:$0xf]
      %v1479 = vld [vmem:[%s1 + $0x4] sm:$0xf]
      %v1480 = vld [vmem:[%s1 + $0x8] sm:$0xf]
      %v1481 = vld [vmem:[%s1 + $0xc] sm:$0xf]
      %v1482 = vld [vmem:[%s1 + $0x10] sm:$0xf]
      %v1483 = vld [vmem:[%s1 + $0x14] sm:$0xf]
      %v1484 = vld [vmem:[%s1 + $0x18] sm:$0xf]
      %v1485 = vld [vmem:[%s1 + $0x1c] sm:$0xf]
      %v1486 = vld [vmem:[%s1 + $0x20] sm:$0xf]
      %v1487 = vld [vmem:[%s1 + $0x24] sm:$0xf]
      %v1488 = vld [vmem:[%s1 + $0x28] sm:$0xf]
      %v1489 = vld [vmem:[%s1 + $0x2c] sm:$0xf]
      %v1490 = vld [vmem:[%s1 + $0x30] sm:$0xf]
      %v1491 = vld [vmem:[%s1 + $0x34] sm:$0xf]
      %v1492 = vld [vmem:[%s1 + $0x38] sm:$0xf]
      %v1493 = vld [vmem:[%s1 + $0x3c] sm:$0xf]
      %v1494 = vld [vmem:[%s1 + $0x40] sm:$0xf]
      %v1495 = vld [vmem:[%s1 + $0x44] sm:$0xf]
      %v1496 = vld [vmem:[%s1 + $0x48] sm:$0xf]
      %v1497 = vld [vmem:[%s1 + $0x4c] sm:$0xf]
      %v1498 = vld [vmem:[%s1 + $0x50] sm:$0xf]
      %v1499 = vld [vmem:[%s1 + $0x54] sm:$0xf]
      %v1500 = vld [vmem:[%s1 + $0x58] sm:$0xf]
      %v1501 = vld [vmem:[%s1 + $0x5c] sm:$0xf]
      %v1502 = vld [vmem:[%s1 + $0x60] sm:$0xf]
      %v1503 = vld [vmem:[%s1 + $0x64] sm:$0xf]
      %v1504 = vld [vmem:[%s1 + $0x68] sm:$0xf]
      %v1505 = vld [vmem:[%s1 + $0x6c] sm:$0xf]
      %v1506 = vld [vmem:[%s1 + $0x70] sm:$0xf]
      %v1507 = vld [vmem:[%s1 + $0x74] sm:$0xf]
      %v1508 = vld [vmem:[%s1 + $0x78] sm:$0xf]
      %v1509 = vld [vmem:[%s1 + $0x7c] sm:$0xf]
      %v1510 = vld [vmem:[%s1 + $0x80] sm:$0xf]
      %v1511 = vld [vmem:[%s1 + $0x84] sm:$0xf]
      %v1512 = vld [vmem:[%s1 + $0x88] sm:$0xf]
      %v1513 = vld [vmem:[%s1 + $0x8c] sm:$0xf]
      %v1514 = vld [vmem:[%s1 + $0x90] sm:$0xf]
      %v1515 = vld [vmem:[%s1 + $0x94] sm:$0xf]
      %v1516 = vld [vmem:[%s1 + $0x98] sm:$0xf]
      %v1517 = vld [vmem:[%s1 + $0x9c] sm:$0xf]
      %v1518 = vld [vmem:[%s1 + $0xa0] sm:$0xf]
      %v1519 = vld [vmem:[%s1 + $0xa4] sm:$0xf]
      %v1520 = vld [vmem:[%s1 + $0xa8] sm:$0xf]
      %v1521 = vld [vmem:[%s1 + $0xac] sm:$0xf]
      %v1522 = vld [vmem:[%s1 + $0xb0] sm:$0xf]
      %v1523 = vld [vmem:[%s1 + $0xb4] sm:$0xf]
      %v1524 = vld [vmem:[%s1 + $0xb8] sm:$0xf]
      %v1525 = vld [vmem:[%s1 + $0xbc] sm:$0xf]
      %v1526 = vld [vmem:[%s1 + $0xc0] sm:$0xf]
      %v1527 = vld [vmem:[%s1 + $0xc4] sm:$0xf]
      %v1528 = vld [vmem:[%s1 + $0xc8] sm:$0xf]
      %v1529 = vld [vmem:[%s1 + $0xcc] sm:$0xf]
      %v1530 = vld [vmem:[%s1 + $0xd0] sm:$0xf]
      %v1531 = vld [vmem:[%s1 + $0xd4] sm:$0xf]
      %v1532 = vld [vmem:[%s1 + $0xd8] sm:$0xf]
      %v1533 = vld [vmem:[%s1 + $0xdc] sm:$0xf]
      %v1534 = vld [vmem:[%s1 + $0xe0] sm:$0xf]
      %v1535 = vld [vmem:[%s1 + $0xe4] sm:$0xf]
      %v1536 = vld [vmem:[%s1 + $0xe8] sm:$0xf]
      %v1537 = vld [vmem:[%s1 + $0xec] sm:$0xf]
      %v1538 = vld [vmem:[%s1 + $0xf0] sm:$0xf]
      %v1539 = vld [vmem:[%s1 + $0xf4] sm:$0xf]
      %v1540 = vld [vmem:[%s1 + $0xf8] sm:$0xf]
      %v1541 = vld [vmem:[%s1 + $0xfc] sm:$0xf]
      %v1542 = vld [vmem:[%s1 + $0x100] sm:$0xf]
      %v1543 = vld [vmem:[%s1 + $0x104] sm:$0xf]
      %v1544 = vld [vmem:[%s1 + $0x108] sm:$0xf]
      %v1545 = vld [vmem:[%s1 + $0x10c] sm:$0xf]
      %v1546 = vld [vmem:[%s1 + $0x110] sm:$0xf]
      %v1547 = vld [vmem:[%s1 + $0x114] sm:$0xf]
      %v1548 = vld [vmem:[%s1 + $0x118] sm:$0xf]
      %v1549 = vld [vmem:[%s1 + $0x11c] sm:$0xf]
      %v1550 = vld [vmem:[%s1 + $0x120] sm:$0xf]
      %v1551 = vld [vmem:[%s1 + $0x124] sm:$0xf]
      %v1552 = vld [vmem:[%s1 + $0x128] sm:$0xf]
      %v1553 = vld [vmem:[%s1 + $0x12c] sm:$0xf]
      %v1554 = vld [vmem:[%s1 + $0x130] sm:$0xf]
      %v1555 = vld [vmem:[%s1 + $0x134] sm:$0xf]
      %v1556 = vld [vmem:[%s1 + $0x138] sm:$0xf]
      %v1557 = vld [vmem:[%s1 + $0x13c] sm:$0xf]
      %v1558 = vld [vmem:[%s1 + $0x140] sm:$0xf]
      %v1559 = vld [vmem:[%s1 + $0x144] sm:$0xf]
      %v1560 = vld [vmem:[%s1 + $0x148] sm:$0xf]
      %v1561 = vld [vmem:[%s1 + $0x14c] sm:$0xf]
      %v1562 = vld [vmem:[%s1 + $0x150] sm:$0xf]
      %v1563 = vld [vmem:[%s1 + $0x154] sm:$0xf]
      %v1564 = vld [vmem:[%s1 + $0x158] sm:$0xf]
      %v1565 = vld [vmem:[%s1 + $0x15c] sm:$0xf]
      %v1566 = vld [vmem:[%s1 + $0x160] sm:$0xf]
      %v1567 = vld [vmem:[%s1 + $0x164] sm:$0xf]
      %v1568 = vld [vmem:[%s1 + $0x168] sm:$0xf]
      %v1569 = vld [vmem:[%s1 + $0x16c] sm:$0xf]
      %v1570 = vld [vmem:[%s1 + $0x170] sm:$0xf]
      %v1571 = vld [vmem:[%s1 + $0x174] sm:$0xf]
      %v1572 = vld [vmem:[%s1 + $0x178] sm:$0xf]
      %v1573 = vld [vmem:[%s1 + $0x17c] sm:$0xf]
      %v1574 = vld [vmem:[%s1 + $0x180] sm:$0xf]
      %v1575 = vld [vmem:[%s1 + $0x184] sm:$0xf]
      %v1576 = vld [vmem:[%s1 + $0x188] sm:$0xf]
      %v1577 = vld [vmem:[%s1 + $0x18c] sm:$0xf]
      %v1578 = vld [vmem:[%s1 + $0x190] sm:$0xf]
      %v1579 = vld [vmem:[%s1 + $0x194] sm:$0xf]
      %v1580 = vld [vmem:[%s1 + $0x198] sm:$0xf]
      %v1581 = vld [vmem:[%s1 + $0x19c] sm:$0xf]
      %v1582 = vld [vmem:[%s1 + $0x1a0] sm:$0xf]
      %v1583 = vld [vmem:[%s1 + $0x1a4] sm:$0xf]
      %v1584 = vld [vmem:[%s1 + $0x1a8] sm:$0xf]
      %v1585 = vld [vmem:[%s1 + $0x1ac] sm:$0xf]
      %v1586 = vld [vmem:[%s1 + $0x1b0] sm:$0xf]
      %v1587 = vld [vmem:[%s1 + $0x1b4] sm:$0xf]
      %v1588 = vld [vmem:[%s1 + $0x1b8] sm:$0xf]
      %v1589 = vld [vmem:[%s1 + $0x1bc] sm:$0xf]
      %v1590 = vld [vmem:[%s1 + $0x1c0] sm:$0xf]
      %v1591 = vld [vmem:[%s1 + $0x1c4] sm:$0xf]
      %v1592 = vld [vmem:[%s1 + $0x1c8] sm:$0xf]
      %v1593 = vld [vmem:[%s1 + $0x1cc] sm:$0xf]
      %v1594 = vld [vmem:[%s1 + $0x1d0] sm:$0xf]
      %v1595 = vld [vmem:[%s1 + $0x1d4] sm:$0xf]
      %v1596 = vld [vmem:[%s1 + $0x1d8] sm:$0xf]
      %v1597 = vld [vmem:[%s1 + $0x1dc] sm:$0xf]
      %v1598 = vld [vmem:[%s1 + $0x1e0] sm:$0xf]
      %v1599 = vld [vmem:[%s1 + $0x1e4] sm:$0xf]
      %v1600 = vld [vmem:[%s1 + $0x1e8] sm:$0xf]
      %v1601 = vld [vmem:[%s1 + $0x1ec] sm:$0xf]
      %v1602 = vld [vmem:[%s1 + $0x1f0] sm:$0xf]
      %v1603 = vld [vmem:[%s1 + $0x1f4] sm:$0xf]
      %v1604 = vld [vmem:[%s1 + $0x1f8] sm:$0xf]
      %v1605 = vld [vmem:[%s1 + $0x1fc] sm:$0xf]
      %v1606 = vld [vmem:[%s1 + $0x200] sm:$0xf]
      %v1607 = vld [vmem:[%s1 + $0x204] sm:$0xf]
      %v1608 = vld [vmem:[%s1 + $0x208] sm:$0xf]
      %v1609 = vld [vmem:[%s1 + $0x20c] sm:$0xf]
      %v1610 = vld [vmem:[%s1 + $0x210] sm:$0xf]
      %v1611 = vld [vmem:[%s1 + $0x214] sm:$0xf]
      %v1612 = vld [vmem:[%s1 + $0x218] sm:$0xf]
      %v1613 = vld [vmem:[%s1 + $0x21c] sm:$0xf]
      %v1614 = vld [vmem:[%s1 + $0x220] sm:$0xf]
      %v1615 = vld [vmem:[%s1 + $0x224] sm:$0xf]
      %v1616 = vld [vmem:[%s1 + $0x228] sm:$0xf]
      %v1617 = vld [vmem:[%s1 + $0x22c] sm:$0xf]
      %v1618 = vld [vmem:[%s1 + $0x230] sm:$0xf]
      %v1619 = vld [vmem:[%s1 + $0x234] sm:$0xf]
      %v1620 = vld [vmem:[%s1 + $0x238] sm:$0xf]
      %v1621 = vld [vmem:[%s1 + $0x23c] sm:$0xf]
      %v1766 = vunpack.c.l.b16 %v1478
      %v1767 = vunpack.c.l.b16 %v1479
      %v1768 = vunpack.c.l.b16 %v1480
      %v1769 = vunpack.c.l.b16 %v1481
      %v1770 = vunpack.c.l.b16 %v1482
      %v1771 = vunpack.c.l.b16 %v1483
      %v1772 = vunpack.c.l.b16 %v1484
      %v1773 = vunpack.c.l.b16 %v1485
      %v1774 = vunpack.c.l.b16 %v1486
      %v1775 = vunpack.c.l.b16 %v1487
      %v1776 = vunpack.c.l.b16 %v1488
      %v1777 = vunpack.c.l.b16 %v1489
      %v1778 = vunpack.c.l.b16 %v1490
      %v1779 = vunpack.c.l.b16 %v1491
      %v1780 = vunpack.c.l.b16 %v1492
      %v1781 = vunpack.c.l.b16 %v1493
      %v1782 = vunpack.c.l.b16 %v1494
      %v1783 = vunpack.c.l.b16 %v1495
      %v1784 = vunpack.c.l.b16 %v1496
      %v1785 = vunpack.c.l.b16 %v1497
      %v1786 = vunpack.c.l.b16 %v1498
      %v1787 = vunpack.c.l.b16 %v1499
      %v1788 = vunpack.c.l.b16 %v1500
      %v1789 = vunpack.c.l.b16 %v1501
      %v1790 = vunpack.c.l.b16 %v1502
      %v1791 = vunpack.c.l.b16 %v1503
      %v1792 = vunpack.c.l.b16 %v1504
      %v1793 = vunpack.c.l.b16 %v1505
      %v1794 = vunpack.c.l.b16 %v1506
      %v1795 = vunpack.c.l.b16 %v1507
      %v1796 = vunpack.c.l.b16 %v1508
      %v1797 = vunpack.c.l.b16 %v1509
      %v1798 = vunpack.c.l.b16 %v1510
      %v1799 = vunpack.c.l.b16 %v1511
      %v1800 = vunpack.c.l.b16 %v1512
      %v1801 = vunpack.c.l.b16 %v1513
      %v1802 = vunpack.c.l.b16 %v1514
      %v1803 = vunpack.c.l.b16 %v1515
      %v1804 = vunpack.c.l.b16 %v1516
      %v1805 = vunpack.c.l.b16 %v1517
      %v1806 = vunpack.c.l.b16 %v1518
      %v1807 = vunpack.c.l.b16 %v1519
      %v1808 = vunpack.c.l.b16 %v1520
      %v1809 = vunpack.c.l.b16 %v1521
      %v1810 = vunpack.c.l.b16 %v1522
      %v1811 = vunpack.c.l.b16 %v1523
      %v1812 = vunpack.c.l.b16 %v1524
      %v1813 = vunpack.c.l.b16 %v1525
      %v1814 = vunpack.c.l.b16 %v1526
      %v1815 = vunpack.c.l.b16 %v1527
      %v1816 = vunpack.c.l.b16 %v1528
      %v1817 = vunpack.c.l.b16 %v1529
      %v1818 = vunpack.c.l.b16 %v1530
      %v1819 = vunpack.c.l.b16 %v1531
      %v1820 = vunpack.c.l.b16 %v1532
      %v1821 = vunpack.c.l.b16 %v1533
      %v1822 = vunpack.c.l.b16 %v1534
      %v1823 = vunpack.c.l.b16 %v1535
      %v1824 = vunpack.c.l.b16 %v1536
      %v1825 = vunpack.c.l.b16 %v1537
      %v1826 = vunpack.c.l.b16 %v1538
      %v1827 = vunpack.c.l.b16 %v1539
      %v1828 = vunpack.c.l.b16 %v1540
      %v1829 = vunpack.c.l.b16 %v1541
      %v1830 = vunpack.c.l.b16 %v1542
      %v1831 = vunpack.c.l.b16 %v1543
      %v1832 = vunpack.c.l.b16 %v1544
      %v1833 = vunpack.c.l.b16 %v1545
      %v1834 = vunpack.c.l.b16 %v1546
      %v1835 = vunpack.c.l.b16 %v1547
      %v1836 = vunpack.c.l.b16 %v1548
      %v1837 = vunpack.c.l.b16 %v1549
      %v1838 = vunpack.c.l.b16 %v1550
      %v1839 = vunpack.c.l.b16 %v1551
      %v1840 = vunpack.c.l.b16 %v1552
      %v1841 = vunpack.c.l.b16 %v1553
      %v1842 = vunpack.c.l.b16 %v1554
      %v1843 = vunpack.c.l.b16 %v1555
      %v1844 = vunpack.c.l.b16 %v1556
      %v1845 = vunpack.c.l.b16 %v1557
      %v1846 = vunpack.c.l.b16 %v1558
      %v1847 = vunpack.c.l.b16 %v1559
      %v1848 = vunpack.c.l.b16 %v1560
      %v1849 = vunpack.c.l.b16 %v1561
      %v1850 = vunpack.c.l.b16 %v1562
      %v1851 = vunpack.c.l.b16 %v1563
      %v1852 = vunpack.c.l.b16 %v1564
      %v1853 = vunpack.c.l.b16 %v1565
      %v1854 = vunpack.c.l.b16 %v1566
      %v1855 = vunpack.c.l.b16 %v1567
      %v1856 = vunpack.c.l.b16 %v1568
      %v1857 = vunpack.c.l.b16 %v1569
      %v1858 = vunpack.c.l.b16 %v1570
      %v1859 = vunpack.c.l.b16 %v1571
      %v1860 = vunpack.c.l.b16 %v1572
      %v1861 = vunpack.c.l.b16 %v1573
      %v1862 = vunpack.c.l.b16 %v1574
      %v1863 = vunpack.c.l.b16 %v1575
      %v1864 = vunpack.c.l.b16 %v1576
      %v1865 = vunpack.c.l.b16 %v1577
      %v1866 = vunpack.c.l.b16 %v1578
      %v1867 = vunpack.c.l.b16 %v1579
      %v1868 = vunpack.c.l.b16 %v1580
      %v1869 = vunpack.c.l.b16 %v1581
      %v1870 = vunpack.c.l.b16 %v1582
      %v1871 = vunpack.c.l.b16 %v1583
      %v1872 = vunpack.c.l.b16 %v1584
      %v1873 = vunpack.c.l.b16 %v1585
      %v1874 = vunpack.c.l.b16 %v1586
      %v1875 = vunpack.c.l.b16 %v1587
      %v1876 = vunpack.c.l.b16 %v1588
      %v1877 = vunpack.c.l.b16 %v1589
      %v1878 = vunpack.c.l.b16 %v1590
      %v1879 = vunpack.c.l.b16 %v1591
      %v1880 = vunpack.c.l.b16 %v1592
      %v1881 = vunpack.c.l.b16 %v1593
      %v1882 = vunpack.c.l.b16 %v1594
      %v1883 = vunpack.c.l.b16 %v1595
      %v1884 = vunpack.c.l.b16 %v1596
      %v1885 = vunpack.c.l.b16 %v1597
      %v1886 = vunpack.c.l.b16 %v1598
      %v1887 = vunpack.c.l.b16 %v1599
      %v1888 = vunpack.c.l.b16 %v1600
      %v1889 = vunpack.c.l.b16 %v1601
      %v1890 = vunpack.c.l.b16 %v1602
      %v1891 = vunpack.c.l.b16 %v1603
      %v1892 = vunpack.c.l.b16 %v1604
      %v1893 = vunpack.c.l.b16 %v1605
      %v1894 = vunpack.c.l.b16 %v1606
      %v1895 = vunpack.c.l.b16 %v1607
      %v1896 = vunpack.c.l.b16 %v1608
      %v1897 = vunpack.c.l.b16 %v1609
      %v1898 = vunpack.c.l.b16 %v1610
      %v1899 = vunpack.c.l.b16 %v1611
      %v1900 = vunpack.c.l.b16 %v1612
      %v1901 = vunpack.c.l.b16 %v1613
      %v1902 = vunpack.c.l.b16 %v1614
      %v1903 = vunpack.c.l.b16 %v1615
      %v1904 = vunpack.c.l.b16 %v1616
      %v1905 = vunpack.c.l.b16 %v1617
      %v1906 = vunpack.c.l.b16 %v1618
      %v1907 = vunpack.c.l.b16 %v1619
      %v1908 = vunpack.c.l.b16 %v1620
      %v1909 = vunpack.c.l.b16 %v1621
      %v1910 = vpack.c.b16 %v1767, %v1766
      %v1911 = vpack.c.b16 %v1769, %v1768
      %v1912 = vpack.c.b16 %v1771, %v1770
      %v1913 = vpack.c.b16 %v1773, %v1772
      %v1914 = vpack.c.b16 %v1775, %v1774
      %v1915 = vpack.c.b16 %v1777, %v1776
      %v1916 = vpack.c.b16 %v1779, %v1778
      %v1917 = vpack.c.b16 %v1781, %v1780
      %v1918 = vpack.c.b16 %v1783, %v1782
      %v1919 = vpack.c.b16 %v1785, %v1784
      %v1920 = vpack.c.b16 %v1787, %v1786
      %v1921 = vpack.c.b16 %v1789, %v1788
      %v1922 = vpack.c.b16 %v1791, %v1790
      %v1923 = vpack.c.b16 %v1793, %v1792
      %v1924 = vpack.c.b16 %v1795, %v1794
      %v1925 = vpack.c.b16 %v1797, %v1796
      %v1926 = vpack.c.b16 %v1799, %v1798
      %v1927 = vpack.c.b16 %v1801, %v1800
      %v1928 = vpack.c.b16 %v1803, %v1802
      %v1929 = vpack.c.b16 %v1805, %v1804
      %v1930 = vpack.c.b16 %v1807, %v1806
      %v1931 = vpack.c.b16 %v1809, %v1808
      %v1932 = vpack.c.b16 %v1811, %v1810
      %v1933 = vpack.c.b16 %v1813, %v1812
      %v1934 = vpack.c.b16 %v1815, %v1814
      %v1935 = vpack.c.b16 %v1817, %v1816
      %v1936 = vpack.c.b16 %v1819, %v1818
      %v1937 = vpack.c.b16 %v1821, %v1820
      %v1938 = vpack.c.b16 %v1823, %v1822
      %v1939 = vpack.c.b16 %v1825, %v1824
      %v1940 = vpack.c.b16 %v1827, %v1826
      %v1941 = vpack.c.b16 %v1829, %v1828
      %v1942 = vpack.c.b16 %v1831, %v1830
      %v1943 = vpack.c.b16 %v1833, %v1832
      %v1944 = vpack.c.b16 %v1835, %v1834
      %v1945 = vpack.c.b16 %v1837, %v1836
      %v1946 = vpack.c.b16 %v1839, %v1838
      %v1947 = vpack.c.b16 %v1841, %v1840
      %v1948 = vpack.c.b16 %v1843, %v1842
      %v1949 = vpack.c.b16 %v1845, %v1844
      %v1950 = vpack.c.b16 %v1847, %v1846
      %v1951 = vpack.c.b16 %v1849, %v1848
      %v1952 = vpack.c.b16 %v1851, %v1850
      %v1953 = vpack.c.b16 %v1853, %v1852
      %v1954 = vpack.c.b16 %v1855, %v1854
      %v1955 = vpack.c.b16 %v1857, %v1856
      %v1956 = vpack.c.b16 %v1859, %v1858
      %v1957 = vpack.c.b16 %v1861, %v1860
      %v1958 = vpack.c.b16 %v1863, %v1862
      %v1959 = vpack.c.b16 %v1865, %v1864
      %v1960 = vpack.c.b16 %v1867, %v1866
      %v1961 = vpack.c.b16 %v1869, %v1868
      %v1962 = vpack.c.b16 %v1871, %v1870
      %v1963 = vpack.c.b16 %v1873, %v1872
      %v1964 = vpack.c.b16 %v1875, %v1874
      %v1965 = vpack.c.b16 %v1877, %v1876
      %v1966 = vpack.c.b16 %v1879, %v1878
      %v1967 = vpack.c.b16 %v1881, %v1880
      %v1968 = vpack.c.b16 %v1883, %v1882
      %v1969 = vpack.c.b16 %v1885, %v1884
      %v1970 = vpack.c.b16 %v1887, %v1886
      %v1971 = vpack.c.b16 %v1889, %v1888
      %v1972 = vpack.c.b16 %v1891, %v1890
      %v1973 = vpack.c.b16 %v1893, %v1892
      %v1974 = vpack.c.b16 %v1895, %v1894
      %v1975 = vpack.c.b16 %v1897, %v1896
      %v1976 = vpack.c.b16 %v1899, %v1898
      %v1977 = vpack.c.b16 %v1901, %v1900
      %v1978 = vpack.c.b16 %v1903, %v1902
      %v1979 = vpack.c.b16 %v1905, %v1904
      %v1980 = vpack.c.b16 %v1907, %v1906
      %v1981 = vpack.c.b16 %v1909, %v1908
      %2054 = vmatprep.subr.bf16.mxu0 0
      %2055 = vmatpush1.bf16.msra.mxu0 %v1910
      %2056 = vmatprep.subr.bf16.mxu0 0
      %2057 = vmatpush1.bf16.msra.mxu0 %v1911
      %2058 = vmatprep.subr.bf16.mxu0 0
      %2059 = vmatpush1.bf16.msra.mxu0 %v1912
      %2060 = vmatprep.subr.bf16.mxu0 0
      %2061 = vmatpush1.bf16.msra.mxu0 %v1913
      %2062 = vmatprep.subr.bf16.mxu0 0
      %2063 = vmatpush1.bf16.msra.mxu0 %v1914
      %2064 = vmatprep.subr.bf16.mxu0 0
      %2065 = vmatpush1.bf16.msra.mxu0 %v1915
      %2066 = vmatprep.subr.bf16.mxu0 0
      %2067 = vmatpush1.bf16.msra.mxu0 %v1916
      %2068 = vmatprep.subr.bf16.mxu0 0
      %2069 = vmatpush1.bf16.msra.mxu0 %v1917
      %2070 = vmatprep.subr.bf16.mxu0 0
      %2071 = vmatpush1.bf16.msra.mxu0 %v1918
      %2072 = vmatprep.subr.bf16.mxu0 0
      %2073 = vmatpush1.bf16.msra.mxu0 %v1919
      %2074 = vmatprep.subr.bf16.mxu0 0
      %2075 = vmatpush1.bf16.msra.mxu0 %v1920
      %2076 = vmatprep.subr.bf16.mxu0 0
      %2077 = vmatpush1.bf16.msra.mxu0 %v1921
      %2078 = vmatprep.subr.bf16.mxu0 0
      %2079 = vmatpush1.bf16.msra.mxu0 %v1922
      %2080 = vmatprep.subr.bf16.mxu0 0
      %2081 = vmatpush1.bf16.msra.mxu0 %v1923
      %2082 = vmatprep.subr.bf16.mxu0 0
      %2083 = vmatpush1.bf16.msra.mxu0 %v1924
      %2084 = vmatprep.subr.bf16.mxu0 0
      %2085 = vmatpush1.bf16.msra.mxu0 %v1925
      %2086 = vmatprep.mubr.bf16.mxu0 %v1443
      %2087 = vmatmul.mubr.bf16.gmra.mrb[0].mxu0 %v1442
      %v2088 = vpop.f32.mrb[0].mxu0
      %v2089 = vadd.f32 0.0, %v2088
      %v2090 = vpop.f32.mrb[0].mxu0
      %v2091 = vpop.f32.mrb[0].mxu0
      %v2092 = vadd.f32 0.0, %v2091
      %v2093 = vpop.f32.mrb[0].mxu0
      %2094 = vmatprep.mubr.bf16.mxu0 %v1452
      %2095 = vmatmul.mubr.bf16.gmra.mrb[0].mxu0 %v1451
      %v2096 = vpop.f32.mrb[0].mxu0
      %v2097 = vadd.f32 0.0, %v2096
      %v2098 = vpop.f32.mrb[0].mxu0
      %v2099 = vpop.f32.mrb[0].mxu0
      %v2100 = vadd.f32 0.0, %v2099
      %v2101 = vpop.f32.mrb[0].mxu0
      %2102 = vmatprep.mubr.bf16.mxu0 %v1461
      %2103 = vmatmul.mubr.bf16.gmra.mrb[0].mxu0 %v1460
      %v2104 = vpop.f32.mrb[0].mxu0
      %v2105 = vadd.f32 0.0, %v2104
      %v2106 = vpop.f32.mrb[0].mxu0
      %v2107 = vpop.f32.mrb[0].mxu0
      %v2108 = vadd.f32 0.0, %v2107
      %v2109 = vpop.f32.mrb[0].mxu0
      %2110 = vmatprep.mubr.bf16.mxu0 %v1470
      %2111 = vmatmul.mubr.bf16.gmra.mrb[0].mxu0 %v1469
      %v2112 = vpop.f32.mrb[0].mxu0
      %v2113 = vadd.f32 0.0, %v2112
      %v2114 = vpop.f32.mrb[0].mxu0
      %v2115 = vpop.f32.mrb[0].mxu0
      %v2116 = vadd.f32 0.0, %v2115
      %v2117 = vpop.f32.mrb[0].mxu0
      %2118 = vdwg.mxu0
      %2119 = vmatprep.subr.bf16.mxu0 0
      %2120 = vmatpush1.bf16.msra.mxu0 %v1926
      %2121 = vmatprep.subr.bf16.mxu0 0
      %2122 = vmatpush1.bf16.msra.mxu0 %v1927
      %2123 = vmatprep.subr.bf16.mxu0 0
      %2124 = vmatpush1.bf16.msra.mxu0 %v1928
      %2125 = vmatprep.subr.bf16.mxu0 0
      %2126 = vmatpush1.bf16.msra.mxu0 %v1929
      %2127 = vmatprep.subr.bf16.mxu0 0
      %2128 = vmatpush1.bf16.msra.mxu0 %v1930
      %2129 = vmatprep.subr.bf16.mxu0 0
      %2130 = vmatpush1.bf16.msra.mxu0 %v1931
      %2131 = vmatprep.subr.bf16.mxu0 0
      %2132 = vmatpush1.bf16.msra.mxu0 %v1932
      %2133 = vmatprep.subr.bf16.mxu0 0
      %2134 = vmatpush1.bf16.msra.mxu0 %v1933
      %2135 = vmatprep.subr.bf16.mxu0 0
      %2136 = vmatpush1.bf16.msra.mxu0 %v1934
      %2137 = vmatprep.subr.bf16.mxu0 0
      %2138 = vmatpush1.bf16.msra.mxu0 %v1935
      %2139 = vmatprep.subr.bf16.mxu0 0
      %2140 = vmatpush1.bf16.msra.mxu0 %v1936
      %2141 = vmatprep.subr.bf16.mxu0 0
      %2142 = vmatpush1.bf16.msra.mxu0 %v1937
      %2143 = vmatprep.subr.bf16.mxu0 0
      %2144 = vmatpush1.bf16.msra.mxu0 %v1938
      %2145 = vmatprep.subr.bf16.mxu0 0
      %2146 = vmatpush1.bf16.msra.mxu0 %v1939
      %2147 = vmatprep.subr.bf16.mxu0 0
      %2148 = vmatpush1.bf16.msra.mxu0 %v1940
      %2149 = vmatprep.subr.bf16.mxu0 0
      %2150 = vmatpush1.bf16.msra.mxu0 %v1941
      %2151 = vmatprep.mubr.bf16.mxu0 %v1445
      %2152 = vmatmul.mubr.bf16.gmra.mrb[0].mxu0 %v1444
      %v2153 = vpop.f32.mrb[0].mxu0
      %v2154 = vadd.f32 %v2089, %v2153
      %v2155 = vpop.f32.mrb[0].mxu0
      %v2156 = vpop.f32.mrb[0].mxu0
      %v2157 = vadd.f32 %v2092, %v2156
      %v2158 = vpop.f32.mrb[0].mxu0
      %2159 = vmatprep.mubr.bf16.mxu0 %v1454
      %2160 = vmatmul.mubr.bf16.gmra.mrb[0].mxu0 %v1453
      %v2161 = vpop.f32.mrb[0].mxu0
      %v2162 = vadd.f32 %v2097, %v2161
      %v2163 = vpop.f32.mrb[0].mxu0
      %v2164 = vpop.f32.mrb[0].mxu0
      %v2165 = vadd.f32 %v2100, %v2164
      %v2166 = vpop.f32.mrb[0].mxu0
      %2167 = vmatprep.mubr.bf16.mxu0 %v1463
      %2168 = vmatmul.mubr.bf16.gmra.mrb[0].mxu0 %v1462
      %v2169 = vpop.f32.mrb[0].mxu0
      %v2170 = vadd.f32 %v2105, %v2169
      %v2171 = vpop.f32.mrb[0].mxu0
      %v2172 = vpop.f32.mrb[0].mxu0
      %v2173 = vadd.f32 %v2108, %v2172
      %v2174 = vpop.f32.mrb[0].mxu0
      %2175 = vmatprep.mubr.bf16.mxu0 %v1472
      %2176 = vmatmul.mubr.bf16.gmra.mrb[0].mxu0 %v1471
      %v2177 = vpop.f32.mrb[0].mxu0
      %v2178 = vadd.f32 %v2113, %v2177
      %v2179 = vpop.f32.mrb[0].mxu0
      %v2180 = vpop.f32.mrb[0].mxu0
      %v2181 = vadd.f32 %v2116, %v2180
      %v2182 = vpop.f32.mrb[0].mxu0
      %2183 = vdwg.mxu0
      %2184 = vmatprep.subr.bf16.mxu0 0
      %2185 = vmatpush1.bf16.msra.mxu0 %v1942
      %2186 = vmatprep.subr.bf16.mxu0 0
      %2187 = vmatpush1.bf16.msra.mxu0 %v1943
      %2188 = vmatprep.subr.bf16.mxu0 0
      %2189 = vmatpush1.bf16.msra.mxu0 %v1944
      %2190 = vmatprep.subr.bf16.mxu0 0
      %2191 = vmatpush1.bf16.msra.mxu0 %v1945
      %2192 = vmatprep.subr.bf16.mxu0 0
      %2193 = vmatpush1.bf16.msra.mxu0 %v1946
      %2194 = vmatprep.subr.bf16.mxu0 0
      %2195 = vmatpush1.bf16.msra.mxu0 %v1947
      %2196 = vmatprep.subr.bf16.mxu0 0
      %2197 = vmatpush1.bf16.msra.mxu0 %v1948
      %2198 = vmatprep.subr.bf16.mxu0 0
      %2199 = vmatpush1.bf16.msra.mxu0 %v1949
      %2200 = vmatprep.subr.bf16.mxu0 0
      %2201 = vmatpush1.bf16.msra.mxu0 %v1950
      %2202 = vmatprep.subr.bf16.mxu0 0
      %2203 = vmatpush1.bf16.msra.mxu0 %v1951
      %2204 = vmatprep.subr.bf16.mxu0 0
      %2205 = vmatpush1.bf16.msra.mxu0 %v1952
      %2206 = vmatprep.subr.bf16.mxu0 0
      %2207 = vmatpush1.bf16.msra.mxu0 %v1953
      %2208 = vmatprep.subr.bf16.mxu0 0
      %2209 = vmatpush1.bf16.msra.mxu0 %v1954
      %2210 = vmatprep.subr.bf16.mxu0 0
      %2211 = vmatpush1.bf16.msra.mxu0 %v1955
      %2212 = vmatprep.subr.bf16.mxu0 0
      %2213 = vmatpush1.bf16.msra.mxu0 %v1956
      %2214 = vmatprep.subr.bf16.mxu0 0
      %2215 = vmatpush1.bf16.msra.mxu0 %v1957
      %2216 = vmatprep.mubr.bf16.mxu0 %v1447
      %2217 = vmatmul.mubr.bf16.gmra.mrb[0].mxu0 %v1446
      %v2218 = vpop.f32.mrb[0].mxu0
      %v2219 = vadd.f32 %v2154, %v2218
      %v2220 = vpop.f32.mrb[0].mxu0
      %v2221 = vpop.f32.mrb[0].mxu0
      %v2222 = vadd.f32 %v2157, %v2221
      %v2223 = vpop.f32.mrb[0].mxu0
      %2224 = vmatprep.mubr.bf16.mxu0 %v1456
      %2225 = vmatmul.mubr.bf16.gmra.mrb[0].mxu0 %v1455
      %v2226 = vpop.f32.mrb[0].mxu0
      %v2227 = vadd.f32 %v2162, %v2226
      %v2228 = vpop.f32.mrb[0].mxu0
      %v2229 = vpop.f32.mrb[0].mxu0
      %v2230 = vadd.f32 %v2165, %v2229
      %v2231 = vpop.f32.mrb[0].mxu0
      %2232 = vmatprep.mubr.bf16.mxu0 %v1465
      %2233 = vmatmul.mubr.bf16.gmra.mrb[0].mxu0 %v1464
      %v2234 = vpop.f32.mrb[0].mxu0
      %v2235 = vadd.f32 %v2170, %v2234
      %v2236 = vpop.f32.mrb[0].mxu0
      %v2237 = vpop.f32.mrb[0].mxu0
      %v2238 = vadd.f32 %v2173, %v2237
      %v2239 = vpop.f32.mrb[0].mxu0
      %2240 = vmatprep.mubr.bf16.mxu0 %v1474
      %2241 = vmatmul.mubr.bf16.gmra.mrb[0].mxu0 %v1473
      %v2242 = vpop.f32.mrb[0].mxu0
      %v2243 = vadd.f32 %v2178, %v2242
      %v2244 = vpop.f32.mrb[0].mxu0
      %v2245 = vpop.f32.mrb[0].mxu0
      %v2246 = vadd.f32 %v2181, %v2245
      %v2247 = vpop.f32.mrb[0].mxu0
      %2248 = vdwg.mxu0
      %2249 = vmatprep.subr.bf16.mxu0 0
      %2250 = vmatpush1.bf16.msra.mxu0 %v1958
      %2251 = vmatprep.subr.bf16.mxu0 0
      %2252 = vmatpush1.bf16.msra.mxu0 %v1959
      %2253 = vmatprep.subr.bf16.mxu0 0
      %2254 = vmatpush1.bf16.msra.mxu0 %v1960
      %2255 = vmatprep.subr.bf16.mxu0 0
      %2256 = vmatpush1.bf16.msra.mxu0 %v1961
      %2257 = vmatprep.subr.bf16.mxu0 0
      %2258 = vmatpush1.bf16.msra.mxu0 %v1962
      %2259 = vmatprep.subr.bf16.mxu0 0
      %2260 = vmatpush1.bf16.msra.mxu0 %v1963
      %2261 = vmatprep.subr.bf16.mxu0 0
      %2262 = vmatpush1.bf16.msra.mxu0 %v1964
      %2263 = vmatprep.subr.bf16.mxu0 0
      %2264 = vmatpush1.bf16.msra.mxu0 %v1965
      %2265 = vmatprep.subr.bf16.mxu0 0
      %2266 = vmatpush1.bf16.msra.mxu0 %v1966
      %2267 = vmatprep.subr.bf16.mxu0 0
      %2268 = vmatpush1.bf16.msra.mxu0 %v1967
      %2269 = vmatprep.subr.bf16.mxu0 0
      %2270 = vmatpush1.bf16.msra.mxu0 %v1968
      %2271 = vmatprep.subr.bf16.mxu0 0
      %2272 = vmatpush1.bf16.msra.mxu0 %v1969
      %2273 = vmatprep.subr.bf16.mxu0 0
      %2274 = vmatpush1.bf16.msra.mxu0 %v1970
      %2275 = vmatprep.subr.bf16.mxu0 0
      %2276 = vmatpush1.bf16.msra.mxu0 %v1971
      %2277 = vmatprep.subr.bf16.mxu0 0
      %2278 = vmatpush1.bf16.msra.mxu0 %v1972
      %2279 = vmatprep.subr.bf16.mxu0 0
      %2280 = vmatpush1.bf16.msra.mxu0 %v1973
      %2281 = vmatprep.mubr.bf16.mxu0 %v1449
      %2282 = vmatmul.mubr.bf16.gmra.mrb[0].mxu0 %v1448
      %v2283 = vpop.f32.mrb[0].mxu0
      %v2284 = vadd.f32 %v2219, %v2283
      %v2285 = vpop.f32.mrb[0].mxu0
      %v2286 = vpop.f32.mrb[0].mxu0
      %v2287 = vadd.f32 %v2222, %v2286
      %v2288 = vpop.f32.mrb[0].mxu0
      %2289 = vmatprep.mubr.bf16.mxu0 %v1458
      %2290 = vmatmul.mubr.bf16.gmra.mrb[0].mxu0 %v1457
      %v2291 = vpop.f32.mrb[0].mxu0
      %v2292 = vadd.f32 %v2227, %v2291
      %v2293 = vpop.f32.mrb[0].mxu0
      %v2294 = vpop.f32.mrb[0].mxu0
      %v2295 = vadd.f32 %v2230, %v2294
      %v2296 = vpop.f32.mrb[0].mxu0
      %2297 = vmatprep.mubr.bf16.mxu0 %v1467
      %2298 = vmatmul.mubr.bf16.gmra.mrb[0].mxu0 %v1466
      %v2299 = vpop.f32.mrb[0].mxu0
      %v2300 = vadd.f32 %v2235, %v2299
      %v2301 = vpop.f32.mrb[0].mxu0
      %v2302 = vpop.f32.mrb[0].mxu0
      %v2303 = vadd.f32 %v2238, %v2302
      %v2304 = vpop.f32.mrb[0].mxu0
      %2305 = vmatprep.mubr.bf16.mxu0 %v1476
      %2306 = vmatmul.mubr.bf16.gmra.mrb[0].mxu0 %v1475
      %v2307 = vpop.f32.mrb[0].mxu0
      %v2308 = vadd.f32 %v2243, %v2307
      %v2309 = vpop.f32.mrb[0].mxu0
      %v2310 = vpop.f32.mrb[0].mxu0
      %v2311 = vadd.f32 %v2246, %v2310
      %v2312 = vpop.f32.mrb[0].mxu0
      %2313 = vdwg.mxu0
      %2314 = vmatprep.subr.bf16.mxu0 0
      %2315 = vmatpush1.bf16.msra.mxu0 %v1974
      %2316 = vmatprep.subr.bf16.mxu0 0
      %2317 = vmatpush1.bf16.msra.mxu0 %v1975
      %2318 = vmatprep.subr.bf16.mxu0 0
      %2319 = vmatpush1.bf16.msra.mxu0 %v1976
      %2320 = vmatprep.subr.bf16.mxu0 0
      %2321 = vmatpush1.bf16.msra.mxu0 %v1977
      %2322 = vmatprep.subr.bf16.mxu0 0
      %2323 = vmatpush1.bf16.msra.mxu0 %v1978
      %2324 = vmatprep.subr.bf16.mxu0 0
      %2325 = vmatpush1.bf16.msra.mxu0 %v1979
      %2326 = vmatprep.subr.bf16.mxu0 0
      %2327 = vmatpush1.bf16.msra.mxu0 %v1980
      %2328 = vmatprep.subr.bf16.mxu0 0
      %2329 = vmatpush1.bf16.msra.mxu0 %v1981
      %2330 = vmatprep.subr.bf16.mxu0 0
      %2331 = vmatpush1.bf16.msra.mxu0 0
      %2332 = vmatprep.subr.bf16.mxu0 0
      %2333 = vmatpush1.bf16.msra.mxu0 0
      %2334 = vmatprep.subr.bf16.mxu0 0
      %2335 = vmatpush1.bf16.msra.mxu0 0
      %2336 = vmatprep.subr.bf16.mxu0 0
      %2337 = vmatpush1.bf16.msra.mxu0 0
      %2338 = vmatprep.subr.bf16.mxu0 0
      %2339 = vmatpush1.bf16.msra.mxu0 0
      %2340 = vmatprep.subr.bf16.mxu0 0
      %2341 = vmatpush1.bf16.msra.mxu0 0
      %2342 = vmatprep.subr.bf16.mxu0 0
      %2343 = vmatpush1.bf16.msra.mxu0 0
      %2344 = vmatprep.subr.bf16.mxu0 0
      %2345 = vmatpush1.bf16.msra.mxu0 0
      %2346 = vmatprep.mubr.bf16.mxu0 0
      %2347 = vmatmul.mubr.bf16.gmra.mrb[0].mxu0 %v1450
      %v2348 = vpop.f32.mrb[0].mxu0
      %v2349 = vadd.f32 %v2284, %v2348
      %v2350 = vpop.f32.mrb[0].mxu0
      %v2351 = vpop.f32.mrb[0].mxu0
      %v2352 = vadd.f32 %v2287, %v2351
      %v2353 = vpop.f32.mrb[0].mxu0
      %2354 = vmatprep.mubr.bf16.mxu0 0
      %2355 = vmatmul.mubr.bf16.gmra.mrb[0].mxu0 %v1459
      %v2356 = vpop.f32.mrb[0].mxu0
      %v2357 = vadd.f32 %v2292, %v2356
      %v2358 = vpop.f32.mrb[0].mxu0
      %v2359 = vpop.f32.mrb[0].mxu0
      %v2360 = vadd.f32 %v2295, %v2359
      %v2361 = vpop.f32.mrb[0].mxu0
      %2362 = vmatprep.mubr.bf16.mxu0 0
      %2363 = vmatmul.mubr.bf16.gmra.mrb[0].mxu0 %v1468
      %v2364 = vpop.f32.mrb[0].mxu0
      %v2365 = vadd.f32 %v2300, %v2364
      %v2366 = vpop.f32.mrb[0].mxu0
      %v2367 = vpop.f32.mrb[0].mxu0
      %v2368 = vadd.f32 %v2303, %v2367
      %v2369 = vpop.f32.mrb[0].mxu0
      %2370 = vmatprep.mubr.bf16.mxu0 0
      %2371 = vmatmul.mubr.bf16.gmra.mrb[0].mxu0 %v1477
      %v2372 = vpop.f32.mrb[0].mxu0
      %v2373 = vadd.f32 %v2308, %v2372
      %v2374 = vpop.f32.mrb[0].mxu0
      %v2375 = vpop.f32.mrb[0].mxu0
      %v2376 = vadd.f32 %v2311, %v2375
      %v2377 = vpop.f32.mrb[0].mxu0
      %2378 = vdwg.mxu0
      %v2379 = vpack.c.bf16 %v2349, %v2349
      %v2380 = vpack.c.bf16 %v2352, %v2352
      %v2381 = vpack.c.bf16 %v2357, %v2357
      %v2382 = vpack.c.bf16 %v2360, %v2360
      %v2383 = vpack.c.bf16 %v2365, %v2365
      %v2384 = vpack.c.bf16 %v2368, %v2368
      %v2385 = vpack.c.bf16 %v2373, %v2373
      %v2386 = vpack.c.bf16 %v2376, %v2376
      %2387 = vst [vmem:[%s259] sm:$0xf] %v2379
      %2388 = vst [vmem:[%s259 + $0x4] sm:$0xf] %v2380
      %2389 = vst [vmem:[%s259 + $0x8] sm:$0xf] %v2381
      %2390 = vst [vmem:[%s259 + $0xc] sm:$0xf] %v2382
      %2391 = vst [vmem:[%s259 + $0x10] sm:$0xf] %v2383
      %2392 = vst [vmem:[%s259 + $0x14] sm:$0xf] %v2384
      %2393 = vst [vmem:[%s259 + $0x18] sm:$0xf] %v2385
      %2394 = vst [vmem:[%s259 + $0x1c] sm:$0xf] %v2386
      %v2395 = vadd.f32 %v2349, %v2352
      %v2396 = vadd.f32 %v2395, %v2357
      %v2397 = vadd.f32 %v2396, %v2360
      %v2398 = vadd.f32 %v2397, %v2365
      %v2399 = vadd.f32 %v2398, %v2368
      %v2400 = vadd.f32 %v2399, %v2373
      %v2401 = vadd.f32 %v2400, %v2376
      %v2402 = vrot.slane %v2401, 4
      %v2403 = vadd.f32 %v2401, %v2402
      %v2404 = vrot.slane %v2403, 2
      %v2405 = vadd.f32 %v2403, %v2404
      %v2406 = vrot.slane %v2405, 1
      %v2407 = vadd.f32 %v2405, %v2406
      %v2408 = vmul.f32 %v2349, %v2349
      %v2409 = vmul.f32 %v2352, %v2352
      %v2410 = vmul.f32 %v2357, %v2357
      %v2411 = vmul.f32 %v2360, %v2360
      %v2412 = vmul.f32 %v2365, %v2365
      %v2413 = vmul.f32 %v2368, %v2368
      %v2414 = vmul.f32 %v2373, %v2373
      %v2415 = vmul.f32 %v2376, %v2376
      %v2416 = vadd.f32 %v2408, %v2409
      %v2417 = vadd.f32 %v2416, %v2410
      %v2418 = vadd.f32 %v2417, %v2411
      %v2419 = vadd.f32 %v2418, %v2412
      %v2420 = vadd.f32 %v2419, %v2413
      %v2421 = vadd.f32 %v2420, %v2414
      %v2422 = vadd.f32 %v2421, %v2415
      %v2423 = vrot.slane %v2422, 4
      %v2424 = vadd.f32 %v2422, %v2423
      %v2425 = vrot.slane %v2424, 2
      %v2426 = vadd.f32 %v2424, %v2425
      %v2427 = vrot.slane %v2426, 1
      %v2428 = vadd.f32 %v2426, %v2427
      %v2431 = vcombine.low %v2407, %v2428
      %v2433 = vunpack.c.l.s4 1966171168
      %v2434 = vunpack.c.0.s8 %v2433
      %v2435 = vlaneseq
      %v2436 = vshrl.u32 %v2435, 7
      %v2437 = vsub.s32 %v2434, %v2436
      %v2438 = vrot.slane %v2431, %v2437
      %v2440 = vunpack.c.l.s4 1966171168
      %v2441 = vunpack.c.0.s8 %v2440
      %v2442 = vlaneseq
      %v2443 = vshrl.u32 %v2442, 7
      %v2444 = vsub.s32 %v2441, %v2443
      %v2445 = vrot.slane %v2438, %v2444
      %v2447 = vlaneseq
      %vm2448 = vcmp.ge.s32.totalorder %v2447, 0
      %vm2449 = vcmp.lt.s32.totalorder %v2447, 256
      %vm2450 = vmand %vm2448, %vm2449
      %2451 = vst.msk [vmem:[%s268] sm:$0x3] %vm2450, %v2445
      %s2452 = smul.u32 8, %s22
      %p2453 = scmp.lt.s32.totalorder %s21, 1
      %s2454 = scalar_select %p2453, %s21, 1
      %p2455 = scmp.lt.s32.totalorder %s2452, 7
      %s2456 = scalar_select %p2455, %s2452, 7
      %s2457 = smul.addr %s2454, 8
      %s2458 = sadd.s32 %s2456, %s2457
      %s2459 = smul.addr %s2458, 4
      %s2460 = scalar_lea.vmem %s4, %s2459
      %p2461 = scmp.lt.s32.totalorder %s21, 1
      %s2462 = scalar_select %p2461, %s21, 1
      %p2463 = scmp.lt.s32.totalorder %s22, 0
      %s2464 = scalar_select %p2463, %s22, 0
      %s2465 = smul.addr %s2464, 2
      %s2466 = smul.addr %s2462, 2
      %s2467 = sadd.s32 %s2465, %s2466
      %s2468 = scalar_lea.vmem %s5, %s2467
      // Predicated region
      $region37: #{down_forward.6} parent=35 // pred_check
        %p2469 = pneg %p138
      $region38: #{down_forward.6} parent=35 // pred_check_branch
        %2471 = sbr.rel (%p2469) target = $region40
      $region39: #{down_forward.6} parent=35 // pred_region
        %s2472 = smul.u32 8, %s22
      $region40: #{down_forward.6} parent=35 // pred_fallthru
        _
      // Predicated region
      $region41: #{down_forward.6} parent=35 // pred_check
        %p2473 = pneg %p166
      $region42: #{down_forward.6} parent=35 // pred_check_branch
        %2475 = sbr.rel (%p2473) target = $region44
      $region43: #{down_forward.6} parent=35 // pred_region
        _
      $region44: #{down_forward.6} parent=35 // pred_fallthru
        _
    $region36: #{down_forward.6} parent=5 // pred_fallthru
      _
    %p2476 = scmp.le.s32.totalorder 2, %s12
    // Predicated region
    $region45: #{down_forward.6} parent=5 // pred_check
      %p2477 = pneg %p2476
    $region46: #{down_forward.6} parent=5 // pred_check_branch
      %2479 = sbr.rel (%p2477) target = $region48
    $region47: #{down_forward.6} parent=5 // pred_region
      %s2480 = ssub.s32 %s12, 2
      // Predicated region
      $region49: #{down_forward.6} parent=47 // pred_check
        %p2481 = pneg %p144
      $region50: #{down_forward.6} parent=47 // pred_check_branch
        %2483 = sbr.rel (%p2481) target = $region52
      $region51: #{down_forward.6} parent=47 // pred_region
        %s2484 = smul.u32 8, %s24
        %p2485 = scmp.lt.s32.totalorder %s23, 1
        %s2486 = scalar_select %p2485, %s23, 1
        %p2487 = scmp.lt.s32.totalorder %s2484, 7
        %s2488 = scalar_select %p2487, %s2484, 7
        %s2489 = smul.addr %s2486, 8
        %s2490 = sadd.s32 %s2488, %s2489
        %s2491 = smul.addr %s2490, 4
        %s2492 = scalar_lea.vmem %s4, %s2491
      $region52: #{down_forward.6} parent=47 // pred_fallthru
        _
      // Predicated region
      $region53: #{down_forward.6} parent=47 // pred_check
        %p2493 = pneg %p172
      $region54: #{down_forward.6} parent=47 // pred_check_branch
        %2495 = sbr.rel (%p2493) target = $region56
      $region55: #{down_forward.6} parent=47 // pred_region
        %p2496 = scmp.lt.s32.totalorder %s23, 1
        %s2497 = scalar_select %p2496, %s23, 1
        %p2498 = scmp.lt.s32.totalorder %s24, 0
        %s2499 = scalar_select %p2498, %s24, 0
        %s2500 = smul.addr %s2499, 2
        %s2501 = smul.addr %s2497, 2
        %s2502 = sadd.s32 %s2500, %s2501
        %s2503 = scalar_lea.vmem %s5, %s2502
      $region56: #{down_forward.6} parent=47 // pred_fallthru
        _
    $region48: #{down_forward.6} parent=5 // pred_fallthru
      _
  $region6: #{down_forward.6} parent=0 // loop_footer
    %s16 = sadd.s32 1, %s12
  $region7: #{down_forward.6} parent=0 // loop_footer_branch
    %11 = sbr.rel target = $region3
  $region8: #{down_forward.6} parent=0 // loop_exit
    _

</llo_original>
